<compile_context>
chip_gen: v7x
topology: tpu7x:2x2x1
jax: 0.10.0
libtpu: 0.0.40
codegen_flags: <defaults>
</compile_context>

<pallas_src>
import jax
import jax.numpy as jnp
from jax.experimental import pallas as pl
from jax.experimental.pallas import tpu as pltpu

EPS = 1e-5
K = 4  # conv kernel size
HIGH = jax.lax.Precision.HIGHEST  # used only by the XLA reference


# ----------------------------------------------------------------------------- specs
def _full_spec(shape):
    nd = len(shape)
    return pl.BlockSpec(shape, lambda i, nd=nd: (0,) * nd)


# ----------------------------------------------------------------------------- kernel
def _unet_kernel(xpp_ref, wd_ref, wu_ref, gamma_ref, beta_ref, out_ref,
                 act_ref, downp_ref, up_ref):
    # xpp_ref  : (4*N, ho+1, wo+1, nf) f32  raw parity-split zero-padded input
    #            plane index pa*2+pb holds padded rows 2r+pa, cols 2s+pb.
    # wd_ref   : (16*nf, ni) bf16  folded down-conv weight, block order (pa,pb,dh,dw),
    #            kernel tap (kh,kw) = (2dh+pa, 2dw+pb), rows within a block are cin.
    # wu_ref   : (4, 4*ni, nf) bf16 folded transpose-conv weight, one block per output
    #            phase a*2+b, sub-block order (dh,dw) with tap (3-a-2dh, 3-b-2dw).
    # gamma/beta: (1, nf) f32
    # out_ref  : (4*N, ho, wo, 2*nf) f32  output phase (a*2+b) stacked along the batch dim
    # act_ref  : VMEM (4*N, ho+1, wo+1, nf) f32   LeakyReLU(x), computed once (hoisted)
    # downp_ref: VMEM (N, ho+2, wo+2, ni) f32     down activations + 1-wide zero halo
    # up_ref   : VMEM (4*N, ho, wo, nf) f32       raw (pre-BN) up-conv phases
    pn, hop1, wop1, nf = xpp_ref.shape
    n = pn // 4
    ho, wo = hop1 - 1, wop1 - 1
    ni = downp_ref.shape[-1]
    rows = n * ho * wo

    # ---- LeakyReLU(0.2) hoisted: each input element activated exactly once (f32 VPU) ------
    x_raw = xpp_ref[...]
    act_ref[...] = jnp.where(x_raw >= 0.0, x_raw, 0.2 * x_raw)

    # ---- down path: Conv2d(nf->ni, k4, s2, p1) as ONE (rows, 16*nf)@(16*nf, ni) matmul ----
    parts = []
    for pa in range(2):
        for pb in range(2):
            base = (pa * 2 + pb) * n
            for dh in range(2):
                for dw in range(2):
                    parts.append(
                        act_ref[base:base + n, dh:dh + ho, dw:dw + wo, :]
                        .reshape(rows, nf))
    patch = jnp.concatenate(parts, axis=-1).astype(jnp.bfloat16)      # (rows, 16*nf)
    down = jnp.maximum(                                               # ReLU (uprelu)
        jnp.dot(patch, wd_ref[...], preferred_element_type=jnp.float32), 0.0)

    # intermediate stays in VMEM; only the 1-wide halo strips are zeroed (not the full buffer)
    downp_ref[:, 1:ho + 1, 1:wo + 1, :] = down.reshape(n, ho, wo, ni)
    downp_ref[:, 0:1, :, :] = jnp.zeros((n, 1, wo + 2, ni), jnp.float32)
    downp_ref[:, ho + 1:ho + 2, :, :] = jnp.zeros((n, 1, wo + 2, ni), jnp.float32)
    downp_ref[:, :, 0:1, :] = jnp.zeros((n, ho + 2, 1, ni), jnp.float32)
    downp_ref[:, :, wo + 1:wo + 2, :] = jnp.zeros((n, ho + 2, 1, ni), jnp.float32)

    # ---- up path: ConvTranspose2d(ni->nf, k4, s2, p1); one K=4*ni matmul per output phase.
    #      Raw phases streamed to VMEM scratch; BN sum / sum-of-squares accumulated on the fly.
    s1 = jnp.zeros((1, nf), jnp.float32)
    s2 = jnp.zeros((1, nf), jnp.float32)
    for a in range(2):
        for b in range(2):
            idx = a * 2 + b
            win = jnp.concatenate(
                [downp_ref[:, a + dh:a + dh + ho, b + dw:b + dw + wo, :]
                 .reshape(rows, ni)
                 for dh in range(2) for dw in range(2)],
                axis=-1).astype(jnp.bfloat16)                          # (rows, 4*ni)
            u = jnp.dot(win, wu_ref[idx], preferred_element_type=jnp.float32)
            up_ref[idx * n:(idx + 1) * n, :, :, :] = u.reshape(n, ho, wo, nf)
            s1 = s1 + jnp.sum(u, axis=0, keepdims=True)
            s2 = s2 + jnp.sum(u * u, axis=0, keepdims=True)

    # ---- BatchNorm2d, training-mode batch statistics over all N*H*W positions (f32) -------
    cnt = jnp.float32(4 * rows)
    mean = s1 / cnt
    var = jnp.maximum(s2 / cnt - mean * mean, 0.0)
    inv = jax.lax.rsqrt(var + EPS) * gamma_ref[...]
    shift = beta_ref[...] - mean * inv

    # ---- normalize + concat([x, up]): one full-lane-width slab store per output phase -----
    for a in range(2):
        for b in range(2):
            idx = a * 2 + b
            y = up_ref[idx * n:(idx + 1) * n, :, :, :].reshape(rows, nf) * inv + shift
            # original x at output parity (a, b) lives in input parity plane (1-a, 1-b)
            q = ((1 - a) * 2 + (1 - b)) * n
            xw = xpp_ref[q:q + n, a:a + ho, b:b + wo, :].reshape(rows, nf)
            out_ref[idx * n:(idx + 1) * n, :, :, :] = \
                jnp.concatenate([xw, y], axis=-1).reshape(n, ho, wo, 2 * nf)


# ----------------------------------------------------------------------------- forward
def unet_block_innermost(x, wd, wu, gamma, beta):
    """x: (N, nf, H, W) f32.  wd: (ni, nf, 4, 4).  wu: (ni, nf, 4, 4).  gamma/beta: (nf,)."""
    n, nf, h, w = x.shape
    ni = wd.shape[0]
    ho, wo = h // 2, w // 2

    # ---- pre layout (single XLA fusion, ~1x data: no im2col, no zero-dilated buffer) -------
    x_nhwc = jnp.transpose(x, (0, 2, 3, 1))
    xpad = jnp.pad(x_nhwc, ((0, 0), (1, 1), (1, 1), (0, 0)))
    xpp = jnp.stack([xpad[:, pa::2, pb::2, :]
                     for pa in range(2) for pb in range(2)], axis=0)
    xpp = xpp.reshape(4 * n, ho + 1, wo + 1, nf)                      # parity planes

    # folded down-conv weight: (16*nf, ni); block order must match the kernel's patch concat
    wd_flat = jnp.concatenate(
        [wd[:, :, 2 * dh + pa, 2 * dw + pb].T                          # (nf, ni)
         for pa in range(2) for pb in range(2)
         for dh in range(2) for dw in range(2)],
        axis=0).astype(jnp.bfloat16)                                   # (16*nf, ni)
    # folded transpose-conv weight per output phase: (4, 4*ni, nf)
    wu_flat = jnp.stack(
        [jnp.concatenate([wu[:, :, 3 - a - 2 * dh, 3 - b - 2 * dw]     # (ni, nf)
                          for dh in range(2) for dw in range(2)], axis=0)
         for a in range(2) for b in range(2)],
        axis=0).astype(jnp.bfloat16)                                   # (4, 4*ni, nf)

    gamma2 = gamma.reshape(1, nf).astype(jnp.float32)
    beta2 = beta.reshape(1, nf).astype(jnp.float32)

    out_shape = jax.ShapeDtypeStruct((4 * n, ho, wo, 2 * nf), jnp.float32)
    args = (xpp, wd_flat, wu_flat, gamma2, beta2)
    out = pl.pallas_call(
        _unet_kernel,
        grid=(1,),
        out_shape=out_shape,
        in_specs=[_full_spec(a.shape) for a in args],
        out_specs=_full_spec(out_shape.shape),
        scratch_shapes=[
            pltpu.VMEM((4 * n, ho + 1, wo + 1, nf), jnp.float32),   # LeakyReLU(x)
            pltpu.VMEM((n, ho + 2, wo + 2, ni), jnp.float32),       # down + zero halo
            pltpu.VMEM((4 * n, ho, wo, nf), jnp.float32),           # raw up phases (BN)
        ],
        compiler_params=pltpu.CompilerParams(
            dimension_semantics=("arbitrary",),
            vmem_limit_bytes=32 * 1024 * 1024),
    )(*args)

    # phase-interleave back to NCHW: out[(a*2+b)*N + m, i, j, c] == y[m, c, 2i+a, 2j+b]
    out = out.reshape(2, 2, n, ho, wo, 2 * nf)
    out = jnp.transpose(out, (2, 5, 3, 0, 4, 1)).reshape(n, 2 * nf, h, w)
    return out


# ----------------------------------------------------------------------------- reference
def unet_block_ref(x, wd, wu, gamma, beta):
    y = jnp.where(x >= 0.0, x, 0.2 * x)
    y = jax.lax.conv_general_dilated(
        y, wd, (2, 2), [(1, 1), (1, 1)],
        dimension_numbers=('NCHW', 'OIHW', 'NCHW'), precision=HIGH)
    y = jnp.maximum(y, 0.0)
    wflip = jnp.transpose(wu, (1, 0, 2, 3))[:, :, ::-1, ::-1]
    y = jax.lax.conv_general_dilated(
        y, wflip, (1, 1), [(2, 2), (2, 2)], lhs_dilation=(2, 2),
        dimension_numbers=('NCHW', 'OIHW', 'NCHW'), precision=HIGH)
    mean = jnp.mean(y, axis=(0, 2, 3), keepdims=True)
    var = jnp.mean((y - mean) ** 2, axis=(0, 2, 3), keepdims=True)
    y = (y - mean) * jax.lax.rsqrt(var + EPS) * gamma.reshape(1, -1, 1, 1) + beta.reshape(1, -1, 1, 1)
    return jnp.concatenate([x, y], axis=1)


# ----------------------------------------------------------------------------- main
if __name__ == "__main__":
    nf, ni = 4, 8
    n, h, w = 2, 16, 16

    key = jax.random.PRNGKey(0)
    k1, k2, k3, k4, k5 = jax.random.split(key, 5)
    x = jax.random.normal(k1, (n, nf, h, w), jnp.float32)
    wd = jax.random.normal(k2, (ni, nf, K, K), jnp.float32) * 0.1   # Conv2d weight (O, I, kH, kW)
    wu = jax.random.normal(k3, (ni, nf, K, K), jnp.float32) * 0.1   # ConvTranspose2d weight (I, O, kH, kW)
    gamma = 1.0 + 0.1 * jax.random.normal(k4, (nf,), jnp.float32)   # BatchNorm weight
    beta = 0.1 * jax.random.normal(k5, (nf,), jnp.float32)          # BatchNorm bias

    out = jax.jit(unet_block_innermost)(x, wd, wu, gamma, beta)
    out = jax.block_until_ready(out)

    ref = unet_block_ref(x, wd, wu, gamma, beta)
    assert out.shape == (n, 2 * nf, h, w), out.shape
    max_err = float(jnp.max(jnp.abs(out - ref)))
    assert jnp.allclose(out, ref, rtol=2e-2, atol=2e-2), f"max_err={max_err}"
    print("KERNEL_OK")
</pallas_src>

<mosaic_0001>
module attributes {stable_mosaic.version = 11 : i64} {
  func.func @_unet_kernel(%arg0: i32, %arg1: memref<8x9x9x4xf32, #tpu.memory_space<vmem>>, %arg2: memref<64x8xbf16, #tpu.memory_space<vmem>>, %arg3: memref<4x32x4xbf16, #tpu.memory_space<vmem>>, %arg4: memref<1x4xf32, #tpu.memory_space<vmem>>, %arg5: memref<1x4xf32, #tpu.memory_space<vmem>>, %arg6: memref<8x8x8x8xf32, #tpu.memory_space<vmem>>, %arg7: memref<8x9x9x4xf32, #tpu.memory_space<vmem>>, %arg8: memref<2x10x10x8xf32, #tpu.memory_space<vmem>>, %arg9: memref<8x8x8x4xf32, #tpu.memory_space<vmem>>) attributes {dimension_semantics = [#tpu.dimension_semantics<arbitrary>], iteration_bounds = array<i64: 1>, scalar_prefetch = 0 : i64, scratch_operands = 3 : i64, tpu.core_type = #tpu.core_type<tc>, window_params = [{pipeline_mode = #tpu.pipeline_mode<synchronous>, transform_indices = @transform_0, window_bounds = array<i64: 8, 9, 9, 4>}, {pipeline_mode = #tpu.pipeline_mode<synchronous>, transform_indices = @transform_1, window_bounds = array<i64: 64, 8>}, {pipeline_mode = #tpu.pipeline_mode<synchronous>, transform_indices = @transform_2, window_bounds = array<i64: 4, 32, 4>}, {pipeline_mode = #tpu.pipeline_mode<synchronous>, transform_indices = @transform_3, window_bounds = array<i64: 1, 4>}, {pipeline_mode = #tpu.pipeline_mode<synchronous>, transform_indices = @transform_4, window_bounds = array<i64: 1, 4>}, {pipeline_mode = #tpu.pipeline_mode<synchronous>, transform_indices = @transform_5, window_bounds = array<i64: 8, 8, 8, 8>}]} {
    %c0 = arith.constant 0 : index
    %c0_0 = arith.constant 0 : index
    %c0_1 = arith.constant 0 : index
    %c0_2 = arith.constant 0 : index
    %0 = vector.load %arg1[%c0, %c0_0, %c0_1, %c0_2] : memref<8x9x9x4xf32, #tpu.memory_space<vmem>>, vector<8x9x9x4xf32>
    %cst = arith.constant 0.000000e+00 : f32
    %1 = vector.broadcast %cst : f32 to vector<8x9x9x4xf32>
    %2 = arith.cmpf oge, %0, %1 : vector<8x9x9x4xf32>
    %cst_3 = arith.constant 2.000000e-01 : f32
    %3 = vector.broadcast %cst_3 : f32 to vector<8x9x9x4xf32>
    %4 = arith.mulf %3, %0 : vector<8x9x9x4xf32>
    %5 = arith.select %2, %0, %4 : vector<8x9x9x4xi1>, vector<8x9x9x4xf32>
    %c0_4 = arith.constant 0 : index
    %c0_5 = arith.constant 0 : index
    %c0_6 = arith.constant 0 : index
    %c0_7 = arith.constant 0 : index
    %6 = vector.load %arg7[%c0_4, %c0_5, %c0_6, %c0_7] : memref<8x9x9x4xf32, #tpu.memory_space<vmem>>, vector<8x9x9x4xf32>
    tpu.vector_store %arg7[%c0_4, %c0_5, %c0_6, %c0_7], %5 {strides = array<i32>} : memref<8x9x9x4xf32, #tpu.memory_space<vmem>>, vector<8x9x9x4xf32>,
    %c0_8 = arith.constant 0 : index
    %c0_9 = arith.constant 0 : index
    %c0_10 = arith.constant 0 : index
    %c0_11 = arith.constant 0 : index
    %7 = vector.load %arg7[%c0_8, %c0_9, %c0_10, %c0_11] : memref<8x9x9x4xf32, #tpu.memory_space<vmem>>, vector<2x8x8x4xf32>
    %8 = vector.shape_cast %7 : vector<2x8x8x4xf32> to vector<128x4xf32>
    %c0_12 = arith.constant 0 : index
    %c0_13 = arith.constant 0 : index
    %c1 = arith.constant 1 : index
    %c0_14 = arith.constant 0 : index
    %9 = vector.load %arg7[%c0_12, %c0_13, %c1, %c0_14] : memref<8x9x9x4xf32, #tpu.memory_space<vmem>>, vector<2x8x8x4xf32>
    %10 = vector.shape_cast %9 : vector<2x8x8x4xf32> to vector<128x4xf32>
    %c0_15 = arith.constant 0 : index
    %c1_16 = arith.constant 1 : index
    %c0_17 = arith.constant 0 : index
    %c0_18 = arith.constant 0 : index
    %11 = vector.load %arg7[%c0_15, %c1_16, %c0_17, %c0_18] : memref<8x9x9x4xf32, #tpu.memory_space<vmem>>, vector<2x8x8x4xf32>
    %12 = vector.shape_cast %11 : vector<2x8x8x4xf32> to vector<128x4xf32>
    %c0_19 = arith.constant 0 : index
    %c1_20 = arith.constant 1 : index
    %c1_21 = arith.constant 1 : index
    %c0_22 = arith.constant 0 : index
    %13 = vector.load %arg7[%c0_19, %c1_20, %c1_21, %c0_22] : memref<8x9x9x4xf32, #tpu.memory_space<vmem>>, vector<2x8x8x4xf32>
    %14 = vector.shape_cast %13 : vector<2x8x8x4xf32> to vector<128x4xf32>
    %c2 = arith.constant 2 : index
    %c0_23 = arith.constant 0 : index
    %c0_24 = arith.constant 0 : index
    %c0_25 = arith.constant 0 : index
    %15 = vector.load %arg7[%c2, %c0_23, %c0_24, %c0_25] : memref<8x9x9x4xf32, #tpu.memory_space<vmem>>, vector<2x8x8x4xf32>
    %16 = vector.shape_cast %15 : vector<2x8x8x4xf32> to vector<128x4xf32>
    %c2_26 = arith.constant 2 : index
    %c0_27 = arith.constant 0 : index
    %c1_28 = arith.constant 1 : index
    %c0_29 = arith.constant 0 : index
    %17 = vector.load %arg7[%c2_26, %c0_27, %c1_28, %c0_29] : memref<8x9x9x4xf32, #tpu.memory_space<vmem>>, vector<2x8x8x4xf32>
    %18 = vector.shape_cast %17 : vector<2x8x8x4xf32> to vector<128x4xf32>
    %c2_30 = arith.constant 2 : index
    %c1_31 = arith.constant 1 : index
    %c0_32 = arith.constant 0 : index
    %c0_33 = arith.constant 0 : index
    %19 = vector.load %arg7[%c2_30, %c1_31, %c0_32, %c0_33] : memref<8x9x9x4xf32, #tpu.memory_space<vmem>>, vector<2x8x8x4xf32>
    %20 = vector.shape_cast %19 : vector<2x8x8x4xf32> to vector<128x4xf32>
    %c2_34 = arith.constant 2 : index
    %c1_35 = arith.constant 1 : index
    %c1_36 = arith.constant 1 : index
    %c0_37 = arith.constant 0 : index
    %21 = vector.load %arg7[%c2_34, %c1_35, %c1_36, %c0_37] : memref<8x9x9x4xf32, #tpu.memory_space<vmem>>, vector<2x8x8x4xf32>
    %22 = vector.shape_cast %21 : vector<2x8x8x4xf32> to vector<128x4xf32>
    %c4 = arith.constant 4 : index
    %c0_38 = arith.constant 0 : index
    %c0_39 = arith.constant 0 : index
    %c0_40 = arith.constant 0 : index
    %23 = vector.load %arg7[%c4, %c0_38, %c0_39, %c0_40] : memref<8x9x9x4xf32, #tpu.memory_space<vmem>>, vector<2x8x8x4xf32>
    %24 = vector.shape_cast %23 : vector<2x8x8x4xf32> to vector<128x4xf32>
    %c4_41 = arith.constant 4 : index
    %c0_42 = arith.constant 0 : index
    %c1_43 = arith.constant 1 : index
    %c0_44 = arith.constant 0 : index
    %25 = vector.load %arg7[%c4_41, %c0_42, %c1_43, %c0_44] : memref<8x9x9x4xf32, #tpu.memory_space<vmem>>, vector<2x8x8x4xf32>
    %26 = vector.shape_cast %25 : vector<2x8x8x4xf32> to vector<128x4xf32>
    %c4_45 = arith.constant 4 : index
    %c1_46 = arith.constant 1 : index
    %c0_47 = arith.constant 0 : index
    %c0_48 = arith.constant 0 : index
    %27 = vector.load %arg7[%c4_45, %c1_46, %c0_47, %c0_48] : memref<8x9x9x4xf32, #tpu.memory_space<vmem>>, vector<2x8x8x4xf32>
    %28 = vector.shape_cast %27 : vector<2x8x8x4xf32> to vector<128x4xf32>
    %c4_49 = arith.constant 4 : index
    %c1_50 = arith.constant 1 : index
    %c1_51 = arith.constant 1 : index
    %c0_52 = arith.constant 0 : index
    %29 = vector.load %arg7[%c4_49, %c1_50, %c1_51, %c0_52] : memref<8x9x9x4xf32, #tpu.memory_space<vmem>>, vector<2x8x8x4xf32>
    %30 = vector.shape_cast %29 : vector<2x8x8x4xf32> to vector<128x4xf32>
    %c6 = arith.constant 6 : index
    %c0_53 = arith.constant 0 : index
    %c0_54 = arith.constant 0 : index
    %c0_55 = arith.constant 0 : index
    %31 = vector.load %arg7[%c6, %c0_53, %c0_54, %c0_55] : memref<8x9x9x4xf32, #tpu.memory_space<vmem>>, vector<2x8x8x4xf32>
    %32 = vector.shape_cast %31 : vector<2x8x8x4xf32> to vector<128x4xf32>
    %c6_56 = arith.constant 6 : index
    %c0_57 = arith.constant 0 : index
    %c1_58 = arith.constant 1 : index
    %c0_59 = arith.constant 0 : index
    %33 = vector.load %arg7[%c6_56, %c0_57, %c1_58, %c0_59] : memref<8x9x9x4xf32, #tpu.memory_space<vmem>>, vector<2x8x8x4xf32>
    %34 = vector.shape_cast %33 : vector<2x8x8x4xf32> to vector<128x4xf32>
    %c6_60 = arith.constant 6 : index
    %c1_61 = arith.constant 1 : index
    %c0_62 = arith.constant 0 : index
    %c0_63 = arith.constant 0 : index
    %35 = vector.load %arg7[%c6_60, %c1_61, %c0_62, %c0_63] : memref<8x9x9x4xf32, #tpu.memory_space<vmem>>, vector<2x8x8x4xf32>
    %36 = vector.shape_cast %35 : vector<2x8x8x4xf32> to vector<128x4xf32>
    %c6_64 = arith.constant 6 : index
    %c1_65 = arith.constant 1 : index
    %c1_66 = arith.constant 1 : index
    %c0_67 = arith.constant 0 : index
    %37 = vector.load %arg7[%c6_64, %c1_65, %c1_66, %c0_67] : memref<8x9x9x4xf32, #tpu.memory_space<vmem>>, vector<2x8x8x4xf32>
    %38 = vector.shape_cast %37 : vector<2x8x8x4xf32> to vector<128x4xf32>
    %39 = tpu.concatenate %8, %10, %12, %14, %16, %18, %20, %22, %24, %26, %28, %30, %32, %34, %36, %38 in 1 : vector<128x4xf32>, vector<128x4xf32>, vector<128x4xf32>, vector<128x4xf32>, vector<128x4xf32>, vector<128x4xf32>, vector<128x4xf32>, vector<128x4xf32>, vector<128x4xf32>, vector<128x4xf32>, vector<128x4xf32>, vector<128x4xf32>, vector<128x4xf32>, vector<128x4xf32>, vector<128x4xf32>, vector<128x4xf32> -> vector<128x64xf32>
    %40 = arith.truncf %39 : vector<128x64xf32> to vector<128x64xbf16>
    %c0_68 = arith.constant 0 : index
    %c0_69 = arith.constant 0 : index
    %41 = vector.load %arg2[%c0_68, %c0_69] : memref<64x8xbf16, #tpu.memory_space<vmem>>, vector<64x8xbf16>
    %cst_70 = arith.constant dense<0.000000e+00> : vector<128x8xf32>
    %42 = tpu.matmul %40, %41, %cst_70 {dimension_numbers = #tpu.dot_dimension_numbers<[1], [0], [0], [1], [0, 0, 1, 1], [], []>} : vector<128x64xbf16>, vector<64x8xbf16>, vector<128x8xf32> -> vector<128x8xf32>
    %cst_71 = arith.constant 0.000000e+00 : f32
    %43 = vector.broadcast %cst_71 : f32 to vector<128x8xf32>
    %44 = arith.maximumf %42, %43 : vector<128x8xf32>
    %45 = vector.shape_cast %44 : vector<128x8xf32> to vector<2x8x8x8xf32>
    %c0_72 = arith.constant 0 : index
    %c1_73 = arith.constant 1 : index
    %c1_74 = arith.constant 1 : index
    %c0_75 = arith.constant 0 : index
    %46 = vector.load %arg8[%c0_72, %c1_73, %c1_74, %c0_75] : memref<2x10x10x8xf32, #tpu.memory_space<vmem>>, vector<2x8x8x8xf32>
    tpu.vector_store %arg8[%c0_72, %c1_73, %c1_74, %c0_75], %45 {strides = array<i32>} : memref<2x10x10x8xf32, #tpu.memory_space<vmem>>, vector<2x8x8x8xf32>,
    %cst_76 = arith.constant 0.000000e+00 : f32
    %47 = vector.broadcast %cst_76 : f32 to vector<2x1x10x8xf32>
    %c0_77 = arith.constant 0 : index
    %c0_78 = arith.constant 0 : index
    %c0_79 = arith.constant 0 : index
    %c0_80 = arith.constant 0 : index
    %48 = vector.load %arg8[%c0_77, %c0_78, %c0_79, %c0_80] : memref<2x10x10x8xf32, #tpu.memory_space<vmem>>, vector<2x1x10x8xf32>
    tpu.vector_store %arg8[%c0_77, %c0_78, %c0_79, %c0_80], %47 {strides = array<i32>} : memref<2x10x10x8xf32, #tpu.memory_space<vmem>>, vector<2x1x10x8xf32>,
    %cst_81 = arith.constant 0.000000e+00 : f32
    %49 = vector.broadcast %cst_81 : f32 to vector<2x1x10x8xf32>
    %c0_82 = arith.constant 0 : index
    %c9 = arith.constant 9 : index
    %c0_83 = arith.constant 0 : index
    %c0_84 = arith.constant 0 : index
    %50 = vector.load %arg8[%c0_82, %c9, %c0_83, %c0_84] : memref<2x10x10x8xf32, #tpu.memory_space<vmem>>, vector<2x1x10x8xf32>
    tpu.vector_store %arg8[%c0_82, %c9, %c0_83, %c0_84], %49 {strides = array<i32>} : memref<2x10x10x8xf32, #tpu.memory_space<vmem>>, vector<2x1x10x8xf32>,
    %cst_85 = arith.constant 0.000000e+00 : f32
    %51 = vector.broadcast %cst_85 : f32 to vector<2x10x1x8xf32>
    %c0_86 = arith.constant 0 : index
    %c0_87 = arith.constant 0 : index
    %c0_88 = arith.constant 0 : index
    %c0_89 = arith.constant 0 : index
    %52 = vector.load %arg8[%c0_86, %c0_87, %c0_88, %c0_89] : memref<2x10x10x8xf32, #tpu.memory_space<vmem>>, vector<2x10x1x8xf32>
    tpu.vector_store %arg8[%c0_86, %c0_87, %c0_88, %c0_89], %51 {strides = array<i32>} : memref<2x10x10x8xf32, #tpu.memory_space<vmem>>, vector<2x10x1x8xf32>,
    %cst_90 = arith.constant 0.000000e+00 : f32
    %53 = vector.broadcast %cst_90 : f32 to vector<2x10x1x8xf32>
    %c0_91 = arith.constant 0 : index
    %c0_92 = arith.constant 0 : index
    %c9_93 = arith.constant 9 : index
    %c0_94 = arith.constant 0 : index
    %54 = vector.load %arg8[%c0_91, %c0_92, %c9_93, %c0_94] : memref<2x10x10x8xf32, #tpu.memory_space<vmem>>, vector<2x10x1x8xf32>
    tpu.vector_store %arg8[%c0_91, %c0_92, %c9_93, %c0_94], %53 {strides = array<i32>} : memref<2x10x10x8xf32, #tpu.memory_space<vmem>>, vector<2x10x1x8xf32>,
    %cst_95 = arith.constant 0.000000e+00 : f32
    %55 = vector.broadcast %cst_95 : f32 to vector<1x4xf32>
    %cst_96 = arith.constant 0.000000e+00 : f32
    %56 = vector.broadcast %cst_96 : f32 to vector<1x4xf32>
    %c0_97 = arith.constant 0 : index
    %c0_98 = arith.constant 0 : index
    %c0_99 = arith.constant 0 : index
    %c0_100 = arith.constant 0 : index
    %57 = vector.load %arg8[%c0_97, %c0_98, %c0_99, %c0_100] : memref<2x10x10x8xf32, #tpu.memory_space<vmem>>, vector<2x8x8x8xf32>
    %58 = vector.shape_cast %57 : vector<2x8x8x8xf32> to vector<128x8xf32>
    %c0_101 = arith.constant 0 : index
    %c0_102 = arith.constant 0 : index
    %c1_103 = arith.constant 1 : index
    %c0_104 = arith.constant 0 : index
    %59 = vector.load %arg8[%c0_101, %c0_102, %c1_103, %c0_104] : memref<2x10x10x8xf32, #tpu.memory_space<vmem>>, vector<2x8x8x8xf32>
    %60 = vector.shape_cast %59 : vector<2x8x8x8xf32> to vector<128x8xf32>
    %c0_105 = arith.constant 0 : index
    %c1_106 = arith.constant 1 : index
    %c0_107 = arith.constant 0 : index
    %c0_108 = arith.constant 0 : index
    %61 = vector.load %arg8[%c0_105, %c1_106, %c0_107, %c0_108] : memref<2x10x10x8xf32, #tpu.memory_space<vmem>>, vector<2x8x8x8xf32>
    %62 = vector.shape_cast %61 : vector<2x8x8x8xf32> to vector<128x8xf32>
    %c0_109 = arith.constant 0 : index
    %c1_110 = arith.constant 1 : index
    %c1_111 = arith.constant 1 : index
    %c0_112 = arith.constant 0 : index
    %63 = vector.load %arg8[%c0_109, %c1_110, %c1_111, %c0_112] : memref<2x10x10x8xf32, #tpu.memory_space<vmem>>, vector<2x8x8x8xf32>
    %64 = vector.shape_cast %63 : vector<2x8x8x8xf32> to vector<128x8xf32>
    %65 = tpu.concatenate %58, %60, %62, %64 in 1 : vector<128x8xf32>, vector<128x8xf32>, vector<128x8xf32>, vector<128x8xf32> -> vector<128x32xf32>
    %66 = arith.truncf %65 : vector<128x32xf32> to vector<128x32xbf16>
    %c0_113 = arith.constant 0 : index
    %c0_114 = arith.constant 0 : index
    %c0_115 = arith.constant 0 : index
    %67 = vector.load %arg3[%c0_113, %c0_114, %c0_115] : memref<4x32x4xbf16, #tpu.memory_space<vmem>>, vector<1x32x4xbf16>
    %68 = vector.shape_cast %67 : vector<1x32x4xbf16> to vector<32x4xbf16>
    %cst_116 = arith.constant dense<0.000000e+00> : vector<128x4xf32>
    %69 = tpu.matmul %66, %68, %cst_116 {dimension_numbers = #tpu.dot_dimension_numbers<[1], [0], [0], [1], [0, 0, 1, 1], [], []>} : vector<128x32xbf16>, vector<32x4xbf16>, vector<128x4xf32> -> vector<128x4xf32>
    %70 = vector.shape_cast %69 : vector<128x4xf32> to vector<2x8x8x4xf32>
    %c0_117 = arith.constant 0 : index
    %c0_118 = arith.constant 0 : index
    %c0_119 = arith.constant 0 : index
    %c0_120 = arith.constant 0 : index
    %71 = vector.load %arg9[%c0_117, %c0_118, %c0_119, %c0_120] : memref<8x8x8x4xf32, #tpu.memory_space<vmem>>, vector<2x8x8x4xf32>
    tpu.vector_store %arg9[%c0_117, %c0_118, %c0_119, %c0_120], %70 {strides = array<i32>} : memref<8x8x8x4xf32, #tpu.memory_space<vmem>>, vector<2x8x8x4xf32>,
    %cst_121 = arith.constant dense<0.000000e+00> : vector<4xf32>
    %72 = vector.multi_reduction <add>, %69, %cst_121 [0] : vector<128x4xf32> to vector<4xf32>
    %73 = vector.shape_cast %72 : vector<4xf32> to vector<1x4xf32>
    %74 = arith.addf %55, %73 : vector<1x4xf32>
    %75 = arith.mulf %69, %69 : vector<128x4xf32>
    %cst_122 = arith.constant dense<0.000000e+00> : vector<4xf32>
    %76 = vector.multi_reduction <add>, %75, %cst_122 [0] : vector<128x4xf32> to vector<4xf32>
    %77 = vector.shape_cast %76 : vector<4xf32> to vector<1x4xf32>
    %78 = arith.addf %56, %77 : vector<1x4xf32>
    %c0_123 = arith.constant 0 : index
    %c0_124 = arith.constant 0 : index
    %c1_125 = arith.constant 1 : index
    %c0_126 = arith.constant 0 : index
    %79 = vector.load %arg8[%c0_123, %c0_124, %c1_125, %c0_126] : memref<2x10x10x8xf32, #tpu.memory_space<vmem>>, vector<2x8x8x8xf32>
    %80 = vector.shape_cast %79 : vector<2x8x8x8xf32> to vector<128x8xf32>
    %c0_127 = arith.constant 0 : index
    %c0_128 = arith.constant 0 : index
    %c2_129 = arith.constant 2 : index
    %c0_130 = arith.constant 0 : index
    %81 = vector.load %arg8[%c0_127, %c0_128, %c2_129, %c0_130] : memref<2x10x10x8xf32, #tpu.memory_space<vmem>>, vector<2x8x8x8xf32>
    %82 = vector.shape_cast %81 : vector<2x8x8x8xf32> to vector<128x8xf32>
    %c0_131 = arith.constant 0 : index
    %c1_132 = arith.constant 1 : index
    %c1_133 = arith.constant 1 : index
    %c0_134 = arith.constant 0 : index
    %83 = vector.load %arg8[%c0_131, %c1_132, %c1_133, %c0_134] : memref<2x10x10x8xf32, #tpu.memory_space<vmem>>, vector<2x8x8x8xf32>
    %84 = vector.shape_cast %83 : vector<2x8x8x8xf32> to vector<128x8xf32>
    %c0_135 = arith.constant 0 : index
    %c1_136 = arith.constant 1 : index
    %c2_137 = arith.constant 2 : index
    %c0_138 = arith.constant 0 : index
    %85 = vector.load %arg8[%c0_135, %c1_136, %c2_137, %c0_138] : memref<2x10x10x8xf32, #tpu.memory_space<vmem>>, vector<2x8x8x8xf32>
    %86 = vector.shape_cast %85 : vector<2x8x8x8xf32> to vector<128x8xf32>
    %87 = tpu.concatenate %80, %82, %84, %86 in 1 : vector<128x8xf32>, vector<128x8xf32>, vector<128x8xf32>, vector<128x8xf32> -> vector<128x32xf32>
    %88 = arith.truncf %87 : vector<128x32xf32> to vector<128x32xbf16>
    %c1_139 = arith.constant 1 : index
    %c0_140 = arith.constant 0 : index
    %c0_141 = arith.constant 0 : index
    %89 = vector.load %arg3[%c1_139, %c0_140, %c0_141] : memref<4x32x4xbf16, #tpu.memory_space<vmem>>, vector<1x32x4xbf16>
    %90 = vector.shape_cast %89 : vector<1x32x4xbf16> to vector<32x4xbf16>
    %cst_142 = arith.constant dense<0.000000e+00> : vector<128x4xf32>
    %91 = tpu.matmul %88, %90, %cst_142 {dimension_numbers = #tpu.dot_dimension_numbers<[1], [0], [0], [1], [0, 0, 1, 1], [], []>} : vector<128x32xbf16>, vector<32x4xbf16>, vector<128x4xf32> -> vector<128x4xf32>
    %92 = vector.shape_cast %91 : vector<128x4xf32> to vector<2x8x8x4xf32>
    %c2_143 = arith.constant 2 : index
    %c0_144 = arith.constant 0 : index
    %c0_145 = arith.constant 0 : index
    %c0_146 = arith.constant 0 : index
    %93 = vector.load %arg9[%c2_143, %c0_144, %c0_145, %c0_146] : memref<8x8x8x4xf32, #tpu.memory_space<vmem>>, vector<2x8x8x4xf32>
    tpu.vector_store %arg9[%c2_143, %c0_144, %c0_145, %c0_146], %92 {strides = array<i32>} : memref<8x8x8x4xf32, #tpu.memory_space<vmem>>, vector<2x8x8x4xf32>,
    %cst_147 = arith.constant dense<0.000000e+00> : vector<4xf32>
    %94 = vector.multi_reduction <add>, %91, %cst_147 [0] : vector<128x4xf32> to vector<4xf32>
    %95 = vector.shape_cast %94 : vector<4xf32> to vector<1x4xf32>
    %96 = arith.addf %74, %95 : vector<1x4xf32>
    %97 = arith.mulf %91, %91 : vector<128x4xf32>
    %cst_148 = arith.constant dense<0.000000e+00> : vector<4xf32>
    %98 = vector.multi_reduction <add>, %97, %cst_148 [0] : vector<128x4xf32> to vector<4xf32>
    %99 = vector.shape_cast %98 : vector<4xf32> to vector<1x4xf32>
    %100 = arith.addf %78, %99 : vector<1x4xf32>
    %c0_149 = arith.constant 0 : index
    %c1_150 = arith.constant 1 : index
    %c0_151 = arith.constant 0 : index
    %c0_152 = arith.constant 0 : index
    %101 = vector.load %arg8[%c0_149, %c1_150, %c0_151, %c0_152] : memref<2x10x10x8xf32, #tpu.memory_space<vmem>>, vector<2x8x8x8xf32>
    %102 = vector.shape_cast %101 : vector<2x8x8x8xf32> to vector<128x8xf32>
    %c0_153 = arith.constant 0 : index
    %c1_154 = arith.constant 1 : index
    %c1_155 = arith.constant 1 : index
    %c0_156 = arith.constant 0 : index
    %103 = vector.load %arg8[%c0_153, %c1_154, %c1_155, %c0_156] : memref<2x10x10x8xf32, #tpu.memory_space<vmem>>, vector<2x8x8x8xf32>
    %104 = vector.shape_cast %103 : vector<2x8x8x8xf32> to vector<128x8xf32>
    %c0_157 = arith.constant 0 : index
    %c2_158 = arith.constant 2 : index
    %c0_159 = arith.constant 0 : index
    %c0_160 = arith.constant 0 : index
    %105 = vector.load %arg8[%c0_157, %c2_158, %c0_159, %c0_160] : memref<2x10x10x8xf32, #tpu.memory_space<vmem>>, vector<2x8x8x8xf32>
    %106 = vector.shape_cast %105 : vector<2x8x8x8xf32> to vector<128x8xf32>
    %c0_161 = arith.constant 0 : index
    %c2_162 = arith.constant 2 : index
    %c1_163 = arith.constant 1 : index
    %c0_164 = arith.constant 0 : index
    %107 = vector.load %arg8[%c0_161, %c2_162, %c1_163, %c0_164] : memref<2x10x10x8xf32, #tpu.memory_space<vmem>>, vector<2x8x8x8xf32>
    %108 = vector.shape_cast %107 : vector<2x8x8x8xf32> to vector<128x8xf32>
    %109 = tpu.concatenate %102, %104, %106, %108 in 1 : vector<128x8xf32>, vector<128x8xf32>, vector<128x8xf32>, vector<128x8xf32> -> vector<128x32xf32>
    %110 = arith.truncf %109 : vector<128x32xf32> to vector<128x32xbf16>
    %c2_165 = arith.constant 2 : index
    %c0_166 = arith.constant 0 : index
    %c0_167 = arith.constant 0 : index
    %111 = vector.load %arg3[%c2_165, %c0_166, %c0_167] : memref<4x32x4xbf16, #tpu.memory_space<vmem>>, vector<1x32x4xbf16>
    %112 = vector.shape_cast %111 : vector<1x32x4xbf16> to vector<32x4xbf16>
    %cst_168 = arith.constant dense<0.000000e+00> : vector<128x4xf32>
    %113 = tpu.matmul %110, %112, %cst_168 {dimension_numbers = #tpu.dot_dimension_numbers<[1], [0], [0], [1], [0, 0, 1, 1], [], []>} : vector<128x32xbf16>, vector<32x4xbf16>, vector<128x4xf32> -> vector<128x4xf32>
    %114 = vector.shape_cast %113 : vector<128x4xf32> to vector<2x8x8x4xf32>
    %c4_169 = arith.constant 4 : index
    %c0_170 = arith.constant 0 : index
    %c0_171 = arith.constant 0 : index
    %c0_172 = arith.constant 0 : index
    %115 = vector.load %arg9[%c4_169, %c0_170, %c0_171, %c0_172] : memref<8x8x8x4xf32, #tpu.memory_space<vmem>>, vector<2x8x8x4xf32>
    tpu.vector_store %arg9[%c4_169, %c0_170, %c0_171, %c0_172], %114 {strides = array<i32>} : memref<8x8x8x4xf32, #tpu.memory_space<vmem>>, vector<2x8x8x4xf32>,
    %cst_173 = arith.constant dense<0.000000e+00> : vector<4xf32>
    %116 = vector.multi_reduction <add>, %113, %cst_173 [0] : vector<128x4xf32> to vector<4xf32>
    %117 = vector.shape_cast %116 : vector<4xf32> to vector<1x4xf32>
    %118 = arith.addf %96, %117 : vector<1x4xf32>
    %119 = arith.mulf %113, %113 : vector<128x4xf32>
    %cst_174 = arith.constant dense<0.000000e+00> : vector<4xf32>
    %120 = vector.multi_reduction <add>, %119, %cst_174 [0] : vector<128x4xf32> to vector<4xf32>
    %121 = vector.shape_cast %120 : vector<4xf32> to vector<1x4xf32>
    %122 = arith.addf %100, %121 : vector<1x4xf32>
    %c0_175 = arith.constant 0 : index
    %c1_176 = arith.constant 1 : index
    %c1_177 = arith.constant 1 : index
    %c0_178 = arith.constant 0 : index
    %123 = vector.load %arg8[%c0_175, %c1_176, %c1_177, %c0_178] : memref<2x10x10x8xf32, #tpu.memory_space<vmem>>, vector<2x8x8x8xf32>
    %124 = vector.shape_cast %123 : vector<2x8x8x8xf32> to vector<128x8xf32>
    %c0_179 = arith.constant 0 : index
    %c1_180 = arith.constant 1 : index
    %c2_181 = arith.constant 2 : index
    %c0_182 = arith.constant 0 : index
    %125 = vector.load %arg8[%c0_179, %c1_180, %c2_181, %c0_182] : memref<2x10x10x8xf32, #tpu.memory_space<vmem>>, vector<2x8x8x8xf32>
    %126 = vector.shape_cast %125 : vector<2x8x8x8xf32> to vector<128x8xf32>
    %c0_183 = arith.constant 0 : index
    %c2_184 = arith.constant 2 : index
    %c1_185 = arith.constant 1 : index
    %c0_186 = arith.constant 0 : index
    %127 = vector.load %arg8[%c0_183, %c2_184, %c1_185, %c0_186] : memref<2x10x10x8xf32, #tpu.memory_space<vmem>>, vector<2x8x8x8xf32>
    %128 = vector.shape_cast %127 : vector<2x8x8x8xf32> to vector<128x8xf32>
    %c0_187 = arith.constant 0 : index
    %c2_188 = arith.constant 2 : index
    %c2_189 = arith.constant 2 : index
    %c0_190 = arith.constant 0 : index
    %129 = vector.load %arg8[%c0_187, %c2_188, %c2_189, %c0_190] : memref<2x10x10x8xf32, #tpu.memory_space<vmem>>, vector<2x8x8x8xf32>
    %130 = vector.shape_cast %129 : vector<2x8x8x8xf32> to vector<128x8xf32>
    %131 = tpu.concatenate %124, %126, %128, %130 in 1 : vector<128x8xf32>, vector<128x8xf32>, vector<128x8xf32>, vector<128x8xf32> -> vector<128x32xf32>
    %132 = arith.truncf %131 : vector<128x32xf32> to vector<128x32xbf16>
    %c3 = arith.constant 3 : index
    %c0_191 = arith.constant 0 : index
    %c0_192 = arith.constant 0 : index
    %133 = vector.load %arg3[%c3, %c0_191, %c0_192] : memref<4x32x4xbf16, #tpu.memory_space<vmem>>, vector<1x32x4xbf16>
    %134 = vector.shape_cast %133 : vector<1x32x4xbf16> to vector<32x4xbf16>
    %cst_193 = arith.constant dense<0.000000e+00> : vector<128x4xf32>
    %135 = tpu.matmul %132, %134, %cst_193 {dimension_numbers = #tpu.dot_dimension_numbers<[1], [0], [0], [1], [0, 0, 1, 1], [], []>} : vector<128x32xbf16>, vector<32x4xbf16>, vector<128x4xf32> -> vector<128x4xf32>
    %136 = vector.shape_cast %135 : vector<128x4xf32> to vector<2x8x8x4xf32>
    %c6_194 = arith.constant 6 : index
    %c0_195 = arith.constant 0 : index
    %c0_196 = arith.constant 0 : index
    %c0_197 = arith.constant 0 : index
    %137 = vector.load %arg9[%c6_194, %c0_195, %c0_196, %c0_197] : memref<8x8x8x4xf32, #tpu.memory_space<vmem>>, vector<2x8x8x4xf32>
    tpu.vector_store %arg9[%c6_194, %c0_195, %c0_196, %c0_197], %136 {strides = array<i32>} : memref<8x8x8x4xf32, #tpu.memory_space<vmem>>, vector<2x8x8x4xf32>,
    %cst_198 = arith.constant dense<0.000000e+00> : vector<4xf32>
    %138 = vector.multi_reduction <add>, %135, %cst_198 [0] : vector<128x4xf32> to vector<4xf32>
    %139 = vector.shape_cast %138 : vector<4xf32> to vector<1x4xf32>
    %140 = arith.addf %118, %139 : vector<1x4xf32>
    %141 = arith.mulf %135, %135 : vector<128x4xf32>
    %cst_199 = arith.constant dense<0.000000e+00> : vector<4xf32>
    %142 = vector.multi_reduction <add>, %141, %cst_199 [0] : vector<128x4xf32> to vector<4xf32>
    %143 = vector.shape_cast %142 : vector<4xf32> to vector<1x4xf32>
    %144 = arith.addf %122, %143 : vector<1x4xf32>
    %cst_200 = arith.constant 5.120000e+02 : f32
    %145 = vector.broadcast %cst_200 : f32 to vector<1x4xf32>
    %146 = arith.divf %140, %145 : vector<1x4xf32>
    %cst_201 = arith.constant 5.120000e+02 : f32
    %147 = vector.broadcast %cst_201 : f32 to vector<1x4xf32>
    %148 = arith.divf %144, %147 : vector<1x4xf32>
    %149 = arith.mulf %146, %146 : vector<1x4xf32>
    %150 = arith.subf %148, %149 : vector<1x4xf32>
    %cst_202 = arith.constant 0.000000e+00 : f32
    %151 = vector.broadcast %cst_202 : f32 to vector<1x4xf32>
    %152 = arith.maximumf %150, %151 : vector<1x4xf32>
    %cst_203 = arith.constant 9.99999974E-6 : f32
    %153 = vector.broadcast %cst_203 : f32 to vector<1x4xf32>
    %154 = arith.addf %152, %153 : vector<1x4xf32>
    %155 = math.rsqrt %154 : vector<1x4xf32>
    %c0_204 = arith.constant 0 : index
    %c0_205 = arith.constant 0 : index
    %156 = vector.load %arg4[%c0_204, %c0_205] : memref<1x4xf32, #tpu.memory_space<vmem>>, vector<1x4xf32>
    %157 = arith.mulf %155, %156 : vector<1x4xf32>
    %c0_206 = arith.constant 0 : index
    %c0_207 = arith.constant 0 : index
    %158 = vector.load %arg5[%c0_206, %c0_207] : memref<1x4xf32, #tpu.memory_space<vmem>>, vector<1x4xf32>
    %159 = arith.mulf %146, %157 : vector<1x4xf32>
    %160 = arith.subf %158, %159 : vector<1x4xf32>
    %c0_208 = arith.constant 0 : index
    %c0_209 = arith.constant 0 : index
    %c0_210 = arith.constant 0 : index
    %c0_211 = arith.constant 0 : index
    %161 = vector.load %arg9[%c0_208, %c0_209, %c0_210, %c0_211] : memref<8x8x8x4xf32, #tpu.memory_space<vmem>>, vector<2x8x8x4xf32>
    %162 = vector.shape_cast %161 : vector<2x8x8x4xf32> to vector<128x4xf32>
    %163 = vector.broadcast %157 : vector<1x4xf32> to vector<128x4xf32>
    %164 = arith.mulf %162, %163 : vector<128x4xf32>
    %165 = vector.broadcast %160 : vector<1x4xf32> to vector<128x4xf32>
    %166 = arith.addf %164, %165 : vector<128x4xf32>
    %c6_212 = arith.constant 6 : index
    %c0_213 = arith.constant 0 : index
    %c0_214 = arith.constant 0 : index
    %c0_215 = arith.constant 0 : index
    %167 = vector.load %arg1[%c6_212, %c0_213, %c0_214, %c0_215] : memref<8x9x9x4xf32, #tpu.memory_space<vmem>>, vector<2x8x8x4xf32>
    %168 = vector.shape_cast %167 : vector<2x8x8x4xf32> to vector<128x4xf32>
    %169 = tpu.concatenate %168, %166 in 1 : vector<128x4xf32>, vector<128x4xf32> -> vector<128x8xf32>
    %170 = vector.shape_cast %169 : vector<128x8xf32> to vector<2x8x8x8xf32>
    %c0_216 = arith.constant 0 : index
    %c0_217 = arith.constant 0 : index
    %c0_218 = arith.constant 0 : index
    %c0_219 = arith.constant 0 : index
    %171 = vector.load %arg6[%c0_216, %c0_217, %c0_218, %c0_219] : memref<8x8x8x8xf32, #tpu.memory_space<vmem>>, vector<2x8x8x8xf32>
    tpu.vector_store %arg6[%c0_216, %c0_217, %c0_218, %c0_219], %170 {strides = array<i32>} : memref<8x8x8x8xf32, #tpu.memory_space<vmem>>, vector<2x8x8x8xf32>,
    %c2_220 = arith.constant 2 : index
    %c0_221 = arith.constant 0 : index
    %c0_222 = arith.constant 0 : index
    %c0_223 = arith.constant 0 : index
    %172 = vector.load %arg9[%c2_220, %c0_221, %c0_222, %c0_223] : memref<8x8x8x4xf32, #tpu.memory_space<vmem>>, vector<2x8x8x4xf32>
    %173 = vector.shape_cast %172 : vector<2x8x8x4xf32> to vector<128x4xf32>
    %174 = vector.broadcast %157 : vector<1x4xf32> to vector<128x4xf32>
    %175 = arith.mulf %173, %174 : vector<128x4xf32>
    %176 = vector.broadcast %160 : vector<1x4xf32> to vector<128x4xf32>
    %177 = arith.addf %175, %176 : vector<128x4xf32>
    %c4_224 = arith.constant 4 : index
    %c0_225 = arith.constant 0 : index
    %c1_226 = arith.constant 1 : index
    %c0_227 = arith.constant 0 : index
    %178 = vector.load %arg1[%c4_224, %c0_225, %c1_226, %c0_227] : memref<8x9x9x4xf32, #tpu.memory_space<vmem>>, vector<2x8x8x4xf32>
    %179 = vector.shape_cast %178 : vector<2x8x8x4xf32> to vector<128x4xf32>
    %180 = tpu.concatenate %179, %177 in 1 : vector<128x4xf32>, vector<128x4xf32> -> vector<128x8xf32>
    %181 = vector.shape_cast %180 : vector<128x8xf32> to vector<2x8x8x8xf32>
    %c2_228 = arith.constant 2 : index
    %c0_229 = arith.constant 0 : index
    %c0_230 = arith.constant 0 : index
    %c0_231 = arith.constant 0 : index
    %182 = vector.load %arg6[%c2_228, %c0_229, %c0_230, %c0_231] : memref<8x8x8x8xf32, #tpu.memory_space<vmem>>, vector<2x8x8x8xf32>
    tpu.vector_store %arg6[%c2_228, %c0_229, %c0_230, %c0_231], %181 {strides = array<i32>} : memref<8x8x8x8xf32, #tpu.memory_space<vmem>>, vector<2x8x8x8xf32>,
    %c4_232 = arith.constant 4 : index
    %c0_233 = arith.constant 0 : index
    %c0_234 = arith.constant 0 : index
    %c0_235 = arith.constant 0 : index
    %183 = vector.load %arg9[%c4_232, %c0_233, %c0_234, %c0_235] : memref<8x8x8x4xf32, #tpu.memory_space<vmem>>, vector<2x8x8x4xf32>
    %184 = vector.shape_cast %183 : vector<2x8x8x4xf32> to vector<128x4xf32>
    %185 = vector.broadcast %157 : vector<1x4xf32> to vector<128x4xf32>
    %186 = arith.mulf %184, %185 : vector<128x4xf32>
    %187 = vector.broadcast %160 : vector<1x4xf32> to vector<128x4xf32>
    %188 = arith.addf %186, %187 : vector<128x4xf32>
    %c2_236 = arith.constant 2 : index
    %c1_237 = arith.constant 1 : index
    %c0_238 = arith.constant 0 : index
    %c0_239 = arith.constant 0 : index
    %189 = vector.load %arg1[%c2_236, %c1_237, %c0_238, %c0_239] : memref<8x9x9x4xf32, #tpu.memory_space<vmem>>, vector<2x8x8x4xf32>
    %190 = vector.shape_cast %189 : vector<2x8x8x4xf32> to vector<128x4xf32>
    %191 = tpu.concatenate %190, %188 in 1 : vector<128x4xf32>, vector<128x4xf32> -> vector<128x8xf32>
    %192 = vector.shape_cast %191 : vector<128x8xf32> to vector<2x8x8x8xf32>
    %c4_240 = arith.constant 4 : index
    %c0_241 = arith.constant 0 : index
    %c0_242 = arith.constant 0 : index
    %c0_243 = arith.constant 0 : index
    %193 = vector.load %arg6[%c4_240, %c0_241, %c0_242, %c0_243] : memref<8x8x8x8xf32, #tpu.memory_space<vmem>>, vector<2x8x8x8xf32>
    tpu.vector_store %arg6[%c4_240, %c0_241, %c0_242, %c0_243], %192 {strides = array<i32>} : memref<8x8x8x8xf32, #tpu.memory_space<vmem>>, vector<2x8x8x8xf32>,
    %c6_244 = arith.constant 6 : index
    %c0_245 = arith.constant 0 : index
    %c0_246 = arith.constant 0 : index
    %c0_247 = arith.constant 0 : index
    %194 = vector.load %arg9[%c6_244, %c0_245, %c0_246, %c0_247] : memref<8x8x8x4xf32, #tpu.memory_space<vmem>>, vector<2x8x8x4xf32>
    %195 = vector.shape_cast %194 : vector<2x8x8x4xf32> to vector<128x4xf32>
    %196 = vector.broadcast %157 : vector<1x4xf32> to vector<128x4xf32>
    %197 = arith.mulf %195, %196 : vector<128x4xf32>
    %198 = vector.broadcast %160 : vector<1x4xf32> to vector<128x4xf32>
    %199 = arith.addf %197, %198 : vector<128x4xf32>
    %c0_248 = arith.constant 0 : index
    %c1_249 = arith.constant 1 : index
    %c1_250 = arith.constant 1 : index
    %c0_251 = arith.constant 0 : index
    %200 = vector.load %arg1[%c0_248, %c1_249, %c1_250, %c0_251] : memref<8x9x9x4xf32, #tpu.memory_space<vmem>>, vector<2x8x8x4xf32>
    %201 = vector.shape_cast %200 : vector<2x8x8x4xf32> to vector<128x4xf32>
    %202 = tpu.concatenate %201, %199 in 1 : vector<128x4xf32>, vector<128x4xf32> -> vector<128x8xf32>
    %203 = vector.shape_cast %202 : vector<128x8xf32> to vector<2x8x8x8xf32>
    %c6_252 = arith.constant 6 : index
    %c0_253 = arith.constant 0 : index
    %c0_254 = arith.constant 0 : index
    %c0_255 = arith.constant 0 : index
    %204 = vector.load %arg6[%c6_252, %c0_253, %c0_254, %c0_255] : memref<8x8x8x8xf32, #tpu.memory_space<vmem>>, vector<2x8x8x8xf32>
    tpu.vector_store %arg6[%c6_252, %c0_253, %c0_254, %c0_255], %203 {strides = array<i32>} : memref<8x8x8x8xf32, #tpu.memory_space<vmem>>, vector<2x8x8x8xf32>,
    return
  }
  func.func @transform_0(%arg0: i32) -> (i32, i32, i32, i32) {
    %c0_i32 = arith.constant 0 : i32
    %c0_i32_0 = arith.constant 0 : i32
    %c0_i32_1 = arith.constant 0 : i32
    %c0_i32_2 = arith.constant 0 : i32
    %c0_i32_3 = arith.constant 0 : i32
    return %c0_i32, %c0_i32_0, %c0_i32_1, %c0_i32_2 : i32, i32, i32, i32
  }
  func.func @transform_1(%arg0: i32) -> (i32, i32) {
    %c0_i32 = arith.constant 0 : i32
    %c0_i32_0 = arith.constant 0 : i32
    %c0_i32_1 = arith.constant 0 : i32
    return %c0_i32, %c0_i32_0 : i32, i32
  }
  func.func @transform_2(%arg0: i32) -> (i32, i32, i32) {
    %c0_i32 = arith.constant 0 : i32
    %c0_i32_0 = arith.constant 0 : i32
    %c0_i32_1 = arith.constant 0 : i32
    %c0_i32_2 = arith.constant 0 : i32
    return %c0_i32, %c0_i32_0, %c0_i32_1 : i32, i32, i32
  }
  func.func @transform_3(%arg0: i32) -> (i32, i32) {
    %c0_i32 = arith.constant 0 : i32
    %c0_i32_0 = arith.constant 0 : i32
    %c0_i32_1 = arith.constant 0 : i32
    return %c0_i32, %c0_i32_0 : i32, i32
  }
  func.func @transform_4(%arg0: i32) -> (i32, i32) {
    %c0_i32 = arith.constant 0 : i32
    %c0_i32_0 = arith.constant 0 : i32
    %c0_i32_1 = arith.constant 0 : i32
    return %c0_i32, %c0_i32_0 : i32, i32
  }
  func.func @transform_5(%arg0: i32) -> (i32, i32, i32, i32) {
    %c0_i32 = arith.constant 0 : i32
    %c0_i32_0 = arith.constant 0 : i32
    %c0_i32_1 = arith.constant 0 : i32
    %c0_i32_2 = arith.constant 0 : i32
    %c0_i32_3 = arith.constant 0 : i32
    return %c0_i32, %c0_i32_0, %c0_i32_1, %c0_i32_2 : i32, i32, i32, i32
  }
}

</mosaic_0001>

<llo_original>
// kernel: unet_block_innermost.1
$region0: #{unet_block_innermost.1}
  #allocation0 [shape = 'u32[]', space=smem, size = 0x4, offset = 0x4, fixed_abs, tag = 'smem constant byte address 0x4 - core index']
  #allocation1 [shape = 'u32[144,128]{1,0:T(1,128)}', space=vmem, size = 0x12000, scoped, tag = 'internal scratch']
  #allocation2 [shape = 'f32[8,9,9,4]{3,2,1,0:T(8,128)}', space=vmem, size = 0x90000, scoped, tag = 'scratch operand']
  #allocation3 [shape = 'f32[2,10,10,8]{3,2,1,0:T(8,128)}', space=vmem, size = 0x28000, scoped, tag = 'scratch operand']
  #allocation4 [shape = 'f32[8,8,8,4]{3,2,1,0:T(8,128)}', space=vmem, size = 0x40000, scoped, tag = 'scratch operand']
  %s0 = inlined_call_operand.vmem [shape: f32[8,9,9,4], index: 0, kind: input, shape index: {}]
  %s1 = inlined_call_operand.vmem [shape: bf16[64,8], index: 1, kind: input, shape index: {}]
  %s2 = inlined_call_operand.vmem [shape: bf16[4,32,4], index: 2, kind: input, shape index: {}]
  %s3 = inlined_call_operand.vmem [shape: f32[1,4], index: 3, kind: input, shape index: {}]
  %s4 = inlined_call_operand.vmem [shape: f32[1,4], index: 4, kind: input, shape index: {}]
  %s5 = inlined_call_operand.vmem [shape: f32[8,8,8,8], index: 5, kind: output, shape index: {}]
  %s6 = sld [smem:[#allocation0]]
  $region30: #{unet_block_innermost.1} parent=0
    _
  %s8 = ssub.s32 1, %s6
  %s9 = scalar_select 0, %s8, %s6
  // Predicated region
  $region2: #{unet_block_innermost.1} parent=0 // pred_check
    _
  $region3: #{unet_block_innermost.1} parent=0 // pred_check_branch
    %11 = sbr.rel (0) target = $region5
  $region4: #{unet_block_innermost.1} parent=0 // pred_region
    _
  $region5: #{unet_block_innermost.1} parent=0 // pred_fallthru
    _
  // Predicated region
  $region6: #{unet_block_innermost.1} parent=0 // pred_check
    _
  $region7: #{unet_block_innermost.1} parent=0 // pred_check_branch
    %13 = sbr.rel (0) target = $region9
  $region8: #{unet_block_innermost.1} parent=0 // pred_region
    _
  $region9: #{unet_block_innermost.1} parent=0 // pred_fallthru
    _
  // Predicated region
  $region10: #{unet_block_innermost.1} parent=0 // pred_check
    _
  $region11: #{unet_block_innermost.1} parent=0 // pred_check_branch
    %15 = sbr.rel (0) target = $region13
  $region12: #{unet_block_innermost.1} parent=0 // pred_region
    _
  $region13: #{unet_block_innermost.1} parent=0 // pred_fallthru
    _
  // Predicated region
  $region14: #{unet_block_innermost.1} parent=0 // pred_check
    _
  $region15: #{unet_block_innermost.1} parent=0 // pred_check_branch
    %17 = sbr.rel (0) target = $region17
  $region16: #{unet_block_innermost.1} parent=0 // pred_region
    _
  $region17: #{unet_block_innermost.1} parent=0 // pred_fallthru
    _
  // Predicated region
  $region18: #{unet_block_innermost.1} parent=0 // pred_check
    _
  $region19: #{unet_block_innermost.1} parent=0 // pred_check_branch
    %19 = sbr.rel (0) target = $region21
  $region20: #{unet_block_innermost.1} parent=0 // pred_region
    _
  $region21: #{unet_block_innermost.1} parent=0 // pred_fallthru
    _
  %v21 = vld [vmem:[%s0] sm:$0xff]
  %v22 = vld [vmem:[%s0 + $0x8] sm:$0x1]
  %v23 = vld [vmem:[%s0 + $0x10] sm:$0xff]
  %v24 = vld [vmem:[%s0 + $0x18] sm:$0x1]
  %v25 = vld [vmem:[%s0 + $0x20] sm:$0xff]
  %v26 = vld [vmem:[%s0 + $0x28] sm:$0x1]
  %v27 = vld [vmem:[%s0 + $0x30] sm:$0xff]
  %v28 = vld [vmem:[%s0 + $0x38] sm:$0x1]
  %v29 = vld [vmem:[%s0 + $0x40] sm:$0xff]
  %v30 = vld [vmem:[%s0 + $0x48] sm:$0x1]
  %v31 = vld [vmem:[%s0 + $0x50] sm:$0xff]
  %v32 = vld [vmem:[%s0 + $0x58] sm:$0x1]
  %v33 = vld [vmem:[%s0 + $0x60] sm:$0xff]
  %v34 = vld [vmem:[%s0 + $0x68] sm:$0x1]
  %v35 = vld [vmem:[%s0 + $0x70] sm:$0xff]
  %v36 = vld [vmem:[%s0 + $0x78] sm:$0x1]
  %v37 = vld [vmem:[%s0 + $0x80] sm:$0xff]
  %v38 = vld [vmem:[%s0 + $0x88] sm:$0x1]
  %v39 = vld [vmem:[%s0 + $0x90] sm:$0xff]
  %v40 = vld [vmem:[%s0 + $0x98] sm:$0x1]
  %v41 = vld [vmem:[%s0 + $0xa0] sm:$0xff]
  %v42 = vld [vmem:[%s0 + $0xa8] sm:$0x1]
  %v43 = vld [vmem:[%s0 + $0xb0] sm:$0xff]
  %v44 = vld [vmem:[%s0 + $0xb8] sm:$0x1]
  %v45 = vld [vmem:[%s0 + $0xc0] sm:$0xff]
  %v46 = vld [vmem:[%s0 + $0xc8] sm:$0x1]
  %v47 = vld [vmem:[%s0 + $0xd0] sm:$0xff]
  %v48 = vld [vmem:[%s0 + $0xd8] sm:$0x1]
  %v49 = vld [vmem:[%s0 + $0xe0] sm:$0xff]
  %v50 = vld [vmem:[%s0 + $0xe8] sm:$0x1]
  %v51 = vld [vmem:[%s0 + $0xf0] sm:$0xff]
  %v52 = vld [vmem:[%s0 + $0xf8] sm:$0x1]
  %v53 = vld [vmem:[%s0 + $0x100] sm:$0xff]
  %v54 = vld [vmem:[%s0 + $0x108] sm:$0x1]
  %v55 = vld [vmem:[%s0 + $0x110] sm:$0xff]
  %v56 = vld [vmem:[%s0 + $0x118] sm:$0x1]
  %v57 = vld [vmem:[%s0 + $0x120] sm:$0xff]
  %v58 = vld [vmem:[%s0 + $0x128] sm:$0x1]
  %v59 = vld [vmem:[%s0 + $0x130] sm:$0xff]
  %v60 = vld [vmem:[%s0 + $0x138] sm:$0x1]
  %v61 = vld [vmem:[%s0 + $0x140] sm:$0xff]
  %v62 = vld [vmem:[%s0 + $0x148] sm:$0x1]
  %v63 = vld [vmem:[%s0 + $0x150] sm:$0xff]
  %v64 = vld [vmem:[%s0 + $0x158] sm:$0x1]
  %v65 = vld [vmem:[%s0 + $0x160] sm:$0xff]
  %v66 = vld [vmem:[%s0 + $0x168] sm:$0x1]
  %v67 = vld [vmem:[%s0 + $0x170] sm:$0xff]
  %v68 = vld [vmem:[%s0 + $0x178] sm:$0x1]
  %v69 = vld [vmem:[%s0 + $0x180] sm:$0xff]
  %v70 = vld [vmem:[%s0 + $0x188] sm:$0x1]
  %v71 = vld [vmem:[%s0 + $0x190] sm:$0xff]
  %v72 = vld [vmem:[%s0 + $0x198] sm:$0x1]
  %v73 = vld [vmem:[%s0 + $0x1a0] sm:$0xff]
  %v74 = vld [vmem:[%s0 + $0x1a8] sm:$0x1]
  %v75 = vld [vmem:[%s0 + $0x1b0] sm:$0xff]
  %v76 = vld [vmem:[%s0 + $0x1b8] sm:$0x1]
  %v77 = vld [vmem:[%s0 + $0x1c0] sm:$0xff]
  %v78 = vld [vmem:[%s0 + $0x1c8] sm:$0x1]
  %v79 = vld [vmem:[%s0 + $0x1d0] sm:$0xff]
  %v80 = vld [vmem:[%s0 + $0x1d8] sm:$0x1]
  %v81 = vld [vmem:[%s0 + $0x1e0] sm:$0xff]
  %v82 = vld [vmem:[%s0 + $0x1e8] sm:$0x1]
  %v83 = vld [vmem:[%s0 + $0x1f0] sm:$0xff]
  %v84 = vld [vmem:[%s0 + $0x1f8] sm:$0x1]
  %v85 = vld [vmem:[%s0 + $0x200] sm:$0xff]
  %v86 = vld [vmem:[%s0 + $0x208] sm:$0x1]
  %v87 = vld [vmem:[%s0 + $0x210] sm:$0xff]
  %v88 = vld [vmem:[%s0 + $0x218] sm:$0x1]
  %v89 = vld [vmem:[%s0 + $0x220] sm:$0xff]
  %v90 = vld [vmem:[%s0 + $0x228] sm:$0x1]
  %v91 = vld [vmem:[%s0 + $0x230] sm:$0xff]
  %v92 = vld [vmem:[%s0 + $0x238] sm:$0x1]
  %v93 = vld [vmem:[%s0 + $0x240] sm:$0xff]
  %v94 = vld [vmem:[%s0 + $0x248] sm:$0x1]
  %v95 = vld [vmem:[%s0 + $0x250] sm:$0xff]
  %v96 = vld [vmem:[%s0 + $0x258] sm:$0x1]
  %v97 = vld [vmem:[%s0 + $0x260] sm:$0xff]
  %v98 = vld [vmem:[%s0 + $0x268] sm:$0x1]
  %v99 = vld [vmem:[%s0 + $0x270] sm:$0xff]
  %v100 = vld [vmem:[%s0 + $0x278] sm:$0x1]
  %v101 = vld [vmem:[%s0 + $0x280] sm:$0xff]
  %v102 = vld [vmem:[%s0 + $0x288] sm:$0x1]
  %v103 = vld [vmem:[%s0 + $0x290] sm:$0xff]
  %v104 = vld [vmem:[%s0 + $0x298] sm:$0x1]
  %v105 = vld [vmem:[%s0 + $0x2a0] sm:$0xff]
  %v106 = vld [vmem:[%s0 + $0x2a8] sm:$0x1]
  %v107 = vld [vmem:[%s0 + $0x2b0] sm:$0xff]
  %v108 = vld [vmem:[%s0 + $0x2b8] sm:$0x1]
  %v109 = vld [vmem:[%s0 + $0x2c0] sm:$0xff]
  %v110 = vld [vmem:[%s0 + $0x2c8] sm:$0x1]
  %v111 = vld [vmem:[%s0 + $0x2d0] sm:$0xff]
  %v112 = vld [vmem:[%s0 + $0x2d8] sm:$0x1]
  %v113 = vld [vmem:[%s0 + $0x2e0] sm:$0xff]
  %v114 = vld [vmem:[%s0 + $0x2e8] sm:$0x1]
  %v115 = vld [vmem:[%s0 + $0x2f0] sm:$0xff]
  %v116 = vld [vmem:[%s0 + $0x2f8] sm:$0x1]
  %v117 = vld [vmem:[%s0 + $0x300] sm:$0xff]
  %v118 = vld [vmem:[%s0 + $0x308] sm:$0x1]
  %v119 = vld [vmem:[%s0 + $0x310] sm:$0xff]
  %v120 = vld [vmem:[%s0 + $0x318] sm:$0x1]
  %v121 = vld [vmem:[%s0 + $0x320] sm:$0xff]
  %v122 = vld [vmem:[%s0 + $0x328] sm:$0x1]
  %v123 = vld [vmem:[%s0 + $0x330] sm:$0xff]
  %v124 = vld [vmem:[%s0 + $0x338] sm:$0x1]
  %v125 = vld [vmem:[%s0 + $0x340] sm:$0xff]
  %v126 = vld [vmem:[%s0 + $0x348] sm:$0x1]
  %v127 = vld [vmem:[%s0 + $0x350] sm:$0xff]
  %v128 = vld [vmem:[%s0 + $0x358] sm:$0x1]
  %v129 = vld [vmem:[%s0 + $0x360] sm:$0xff]
  %v130 = vld [vmem:[%s0 + $0x368] sm:$0x1]
  %v131 = vld [vmem:[%s0 + $0x370] sm:$0xff]
  %v132 = vld [vmem:[%s0 + $0x378] sm:$0x1]
  %v133 = vld [vmem:[%s0 + $0x380] sm:$0xff]
  %v134 = vld [vmem:[%s0 + $0x388] sm:$0x1]
  %v135 = vld [vmem:[%s0 + $0x390] sm:$0xff]
  %v136 = vld [vmem:[%s0 + $0x398] sm:$0x1]
  %v137 = vld [vmem:[%s0 + $0x3a0] sm:$0xff]
  %v138 = vld [vmem:[%s0 + $0x3a8] sm:$0x1]
  %v139 = vld [vmem:[%s0 + $0x3b0] sm:$0xff]
  %v140 = vld [vmem:[%s0 + $0x3b8] sm:$0x1]
  %v141 = vld [vmem:[%s0 + $0x3c0] sm:$0xff]
  %v142 = vld [vmem:[%s0 + $0x3c8] sm:$0x1]
  %v143 = vld [vmem:[%s0 + $0x3d0] sm:$0xff]
  %v144 = vld [vmem:[%s0 + $0x3d8] sm:$0x1]
  %v145 = vld [vmem:[%s0 + $0x3e0] sm:$0xff]
  %v146 = vld [vmem:[%s0 + $0x3e8] sm:$0x1]
  %v147 = vld [vmem:[%s0 + $0x3f0] sm:$0xff]
  %v148 = vld [vmem:[%s0 + $0x3f8] sm:$0x1]
  %v149 = vld [vmem:[%s0 + $0x400] sm:$0xff]
  %v150 = vld [vmem:[%s0 + $0x408] sm:$0x1]
  %v151 = vld [vmem:[%s0 + $0x410] sm:$0xff]
  %v152 = vld [vmem:[%s0 + $0x418] sm:$0x1]
  %v153 = vld [vmem:[%s0 + $0x420] sm:$0xff]
  %v154 = vld [vmem:[%s0 + $0x428] sm:$0x1]
  %v155 = vld [vmem:[%s0 + $0x430] sm:$0xff]
  %v156 = vld [vmem:[%s0 + $0x438] sm:$0x1]
  %v157 = vld [vmem:[%s0 + $0x440] sm:$0xff]
  %v158 = vld [vmem:[%s0 + $0x448] sm:$0x1]
  %v159 = vld [vmem:[%s0 + $0x450] sm:$0xff]
  %v160 = vld [vmem:[%s0 + $0x458] sm:$0x1]
  %v161 = vld [vmem:[%s0 + $0x460] sm:$0xff]
  %v162 = vld [vmem:[%s0 + $0x468] sm:$0x1]
  %v163 = vld [vmem:[%s0 + $0x470] sm:$0xff]
  %v164 = vld [vmem:[%s0 + $0x478] sm:$0x1]
  %vm165 = vcmp.ge.f32.partialorder %v21, 0.0
  %vm166 = vcmp.ge.f32.partialorder %v22, 0.0
  %vm167 = vcmp.ge.f32.partialorder %v23, 0.0
  %vm168 = vcmp.ge.f32.partialorder %v24, 0.0
  %vm169 = vcmp.ge.f32.partialorder %v25, 0.0
  %vm170 = vcmp.ge.f32.partialorder %v26, 0.0
  %vm171 = vcmp.ge.f32.partialorder %v27, 0.0
  %vm172 = vcmp.ge.f32.partialorder %v28, 0.0
  %vm173 = vcmp.ge.f32.partialorder %v29, 0.0
  %vm174 = vcmp.ge.f32.partialorder %v30, 0.0
  %vm175 = vcmp.ge.f32.partialorder %v31, 0.0
  %vm176 = vcmp.ge.f32.partialorder %v32, 0.0
  %vm177 = vcmp.ge.f32.partialorder %v33, 0.0
  %vm178 = vcmp.ge.f32.partialorder %v34, 0.0
  %vm179 = vcmp.ge.f32.partialorder %v35, 0.0
  %vm180 = vcmp.ge.f32.partialorder %v36, 0.0
  %vm181 = vcmp.ge.f32.partialorder %v37, 0.0
  %vm182 = vcmp.ge.f32.partialorder %v38, 0.0
  %vm183 = vcmp.ge.f32.partialorder %v39, 0.0
  %vm184 = vcmp.ge.f32.partialorder %v40, 0.0
  %vm185 = vcmp.ge.f32.partialorder %v41, 0.0
  %vm186 = vcmp.ge.f32.partialorder %v42, 0.0
  %vm187 = vcmp.ge.f32.partialorder %v43, 0.0
  %vm188 = vcmp.ge.f32.partialorder %v44, 0.0
  %vm189 = vcmp.ge.f32.partialorder %v45, 0.0
  %vm190 = vcmp.ge.f32.partialorder %v46, 0.0
  %vm191 = vcmp.ge.f32.partialorder %v47, 0.0
  %vm192 = vcmp.ge.f32.partialorder %v48, 0.0
  %vm193 = vcmp.ge.f32.partialorder %v49, 0.0
  %vm194 = vcmp.ge.f32.partialorder %v50, 0.0
  %vm195 = vcmp.ge.f32.partialorder %v51, 0.0
  %vm196 = vcmp.ge.f32.partialorder %v52, 0.0
  %vm197 = vcmp.ge.f32.partialorder %v53, 0.0
  %vm198 = vcmp.ge.f32.partialorder %v54, 0.0
  %vm199 = vcmp.ge.f32.partialorder %v55, 0.0
  %vm200 = vcmp.ge.f32.partialorder %v56, 0.0
  %vm201 = vcmp.ge.f32.partialorder %v57, 0.0
  %vm202 = vcmp.ge.f32.partialorder %v58, 0.0
  %vm203 = vcmp.ge.f32.partialorder %v59, 0.0
  %vm204 = vcmp.ge.f32.partialorder %v60, 0.0
  %vm205 = vcmp.ge.f32.partialorder %v61, 0.0
  %vm206 = vcmp.ge.f32.partialorder %v62, 0.0
  %vm207 = vcmp.ge.f32.partialorder %v63, 0.0
  %vm208 = vcmp.ge.f32.partialorder %v64, 0.0
  %vm209 = vcmp.ge.f32.partialorder %v65, 0.0
  %vm210 = vcmp.ge.f32.partialorder %v66, 0.0
  %vm211 = vcmp.ge.f32.partialorder %v67, 0.0
  %vm212 = vcmp.ge.f32.partialorder %v68, 0.0
  %vm213 = vcmp.ge.f32.partialorder %v69, 0.0
  %vm214 = vcmp.ge.f32.partialorder %v70, 0.0
  %vm215 = vcmp.ge.f32.partialorder %v71, 0.0
  %vm216 = vcmp.ge.f32.partialorder %v72, 0.0
  %vm217 = vcmp.ge.f32.partialorder %v73, 0.0
  %vm218 = vcmp.ge.f32.partialorder %v74, 0.0
  %vm219 = vcmp.ge.f32.partialorder %v75, 0.0
  %vm220 = vcmp.ge.f32.partialorder %v76, 0.0
  %vm221 = vcmp.ge.f32.partialorder %v77, 0.0
  %vm222 = vcmp.ge.f32.partialorder %v78, 0.0
  %vm223 = vcmp.ge.f32.partialorder %v79, 0.0
  %vm224 = vcmp.ge.f32.partialorder %v80, 0.0
  %vm225 = vcmp.ge.f32.partialorder %v81, 0.0
  %vm226 = vcmp.ge.f32.partialorder %v82, 0.0
  %vm227 = vcmp.ge.f32.partialorder %v83, 0.0
  %vm228 = vcmp.ge.f32.partialorder %v84, 0.0
  %vm229 = vcmp.ge.f32.partialorder %v85, 0.0
  %vm230 = vcmp.ge.f32.partialorder %v86, 0.0
  %vm231 = vcmp.ge.f32.partialorder %v87, 0.0
  %vm232 = vcmp.ge.f32.partialorder %v88, 0.0
  %vm233 = vcmp.ge.f32.partialorder %v89, 0.0
  %vm234 = vcmp.ge.f32.partialorder %v90, 0.0
  %vm235 = vcmp.ge.f32.partialorder %v91, 0.0
  %vm236 = vcmp.ge.f32.partialorder %v92, 0.0
  %vm237 = vcmp.ge.f32.partialorder %v93, 0.0
  %vm238 = vcmp.ge.f32.partialorder %v94, 0.0
  %vm239 = vcmp.ge.f32.partialorder %v95, 0.0
  %vm240 = vcmp.ge.f32.partialorder %v96, 0.0
  %vm241 = vcmp.ge.f32.partialorder %v97, 0.0
  %vm242 = vcmp.ge.f32.partialorder %v98, 0.0
  %vm243 = vcmp.ge.f32.partialorder %v99, 0.0
  %vm244 = vcmp.ge.f32.partialorder %v100, 0.0
  %vm245 = vcmp.ge.f32.partialorder %v101, 0.0
  %vm246 = vcmp.ge.f32.partialorder %v102, 0.0
  %vm247 = vcmp.ge.f32.partialorder %v103, 0.0
  %vm248 = vcmp.ge.f32.partialorder %v104, 0.0
  %vm249 = vcmp.ge.f32.partialorder %v105, 0.0
  %vm250 = vcmp.ge.f32.partialorder %v106, 0.0
  %vm251 = vcmp.ge.f32.partialorder %v107, 0.0
  %vm252 = vcmp.ge.f32.partialorder %v108, 0.0
  %vm253 = vcmp.ge.f32.partialorder %v109, 0.0
  %vm254 = vcmp.ge.f32.partialorder %v110, 0.0
  %vm255 = vcmp.ge.f32.partialorder %v111, 0.0
  %vm256 = vcmp.ge.f32.partialorder %v112, 0.0
  %vm257 = vcmp.ge.f32.partialorder %v113, 0.0
  %vm258 = vcmp.ge.f32.partialorder %v114, 0.0
  %vm259 = vcmp.ge.f32.partialorder %v115, 0.0
  %vm260 = vcmp.ge.f32.partialorder %v116, 0.0
  %vm261 = vcmp.ge.f32.partialorder %v117, 0.0
  %vm262 = vcmp.ge.f32.partialorder %v118, 0.0
  %vm263 = vcmp.ge.f32.partialorder %v119, 0.0
  %vm264 = vcmp.ge.f32.partialorder %v120, 0.0
  %vm265 = vcmp.ge.f32.partialorder %v121, 0.0
  %vm266 = vcmp.ge.f32.partialorder %v122, 0.0
  %vm267 = vcmp.ge.f32.partialorder %v123, 0.0
  %vm268 = vcmp.ge.f32.partialorder %v124, 0.0
  %vm269 = vcmp.ge.f32.partialorder %v125, 0.0
  %vm270 = vcmp.ge.f32.partialorder %v126, 0.0
  %vm271 = vcmp.ge.f32.partialorder %v127, 0.0
  %vm272 = vcmp.ge.f32.partialorder %v128, 0.0
  %vm273 = vcmp.ge.f32.partialorder %v129, 0.0
  %vm274 = vcmp.ge.f32.partialorder %v130, 0.0
  %vm275 = vcmp.ge.f32.partialorder %v131, 0.0
  %vm276 = vcmp.ge.f32.partialorder %v132, 0.0
  %vm277 = vcmp.ge.f32.partialorder %v133, 0.0
  %vm278 = vcmp.ge.f32.partialorder %v134, 0.0
  %vm279 = vcmp.ge.f32.partialorder %v135, 0.0
  %vm280 = vcmp.ge.f32.partialorder %v136, 0.0
  %vm281 = vcmp.ge.f32.partialorder %v137, 0.0
  %vm282 = vcmp.ge.f32.partialorder %v138, 0.0
  %vm283 = vcmp.ge.f32.partialorder %v139, 0.0
  %vm284 = vcmp.ge.f32.partialorder %v140, 0.0
  %vm285 = vcmp.ge.f32.partialorder %v141, 0.0
  %vm286 = vcmp.ge.f32.partialorder %v142, 0.0
  %vm287 = vcmp.ge.f32.partialorder %v143, 0.0
  %vm288 = vcmp.ge.f32.partialorder %v144, 0.0
  %vm289 = vcmp.ge.f32.partialorder %v145, 0.0
  %vm290 = vcmp.ge.f32.partialorder %v146, 0.0
  %vm291 = vcmp.ge.f32.partialorder %v147, 0.0
  %vm292 = vcmp.ge.f32.partialorder %v148, 0.0
  %vm293 = vcmp.ge.f32.partialorder %v149, 0.0
  %vm294 = vcmp.ge.f32.partialorder %v150, 0.0
  %vm295 = vcmp.ge.f32.partialorder %v151, 0.0
  %vm296 = vcmp.ge.f32.partialorder %v152, 0.0
  %vm297 = vcmp.ge.f32.partialorder %v153, 0.0
  %vm298 = vcmp.ge.f32.partialorder %v154, 0.0
  %vm299 = vcmp.ge.f32.partialorder %v155, 0.0
  %vm300 = vcmp.ge.f32.partialorder %v156, 0.0
  %vm301 = vcmp.ge.f32.partialorder %v157, 0.0
  %vm302 = vcmp.ge.f32.partialorder %v158, 0.0
  %vm303 = vcmp.ge.f32.partialorder %v159, 0.0
  %vm304 = vcmp.ge.f32.partialorder %v160, 0.0
  %vm305 = vcmp.ge.f32.partialorder %v161, 0.0
  %vm306 = vcmp.ge.f32.partialorder %v162, 0.0
  %vm307 = vcmp.ge.f32.partialorder %v163, 0.0
  %vm308 = vcmp.ge.f32.partialorder %v164, 0.0
  %v309 = vmul.f32 %v21, 0.2
  %v310 = vmul.f32 %v22, 0.2
  %v311 = vmul.f32 %v23, 0.2
  %v312 = vmul.f32 %v24, 0.2
  %v313 = vmul.f32 %v25, 0.2
  %v314 = vmul.f32 %v26, 0.2
  %v315 = vmul.f32 %v27, 0.2
  %v316 = vmul.f32 %v28, 0.2
  %v317 = vmul.f32 %v29, 0.2
  %v318 = vmul.f32 %v30, 0.2
  %v319 = vmul.f32 %v31, 0.2
  %v320 = vmul.f32 %v32, 0.2
  %v321 = vmul.f32 %v33, 0.2
  %v322 = vmul.f32 %v34, 0.2
  %v323 = vmul.f32 %v35, 0.2
  %v324 = vmul.f32 %v36, 0.2
  %v325 = vmul.f32 %v37, 0.2
  %v326 = vmul.f32 %v38, 0.2
  %v327 = vmul.f32 %v39, 0.2
  %v328 = vmul.f32 %v40, 0.2
  %v329 = vmul.f32 %v41, 0.2
  %v330 = vmul.f32 %v42, 0.2
  %v331 = vmul.f32 %v43, 0.2
  %v332 = vmul.f32 %v44, 0.2
  %v333 = vmul.f32 %v45, 0.2
  %v334 = vmul.f32 %v46, 0.2
  %v335 = vmul.f32 %v47, 0.2
  %v336 = vmul.f32 %v48, 0.2
  %v337 = vmul.f32 %v49, 0.2
  %v338 = vmul.f32 %v50, 0.2
  %v339 = vmul.f32 %v51, 0.2
  %v340 = vmul.f32 %v52, 0.2
  %v341 = vmul.f32 %v53, 0.2
  %v342 = vmul.f32 %v54, 0.2
  %v343 = vmul.f32 %v55, 0.2
  %v344 = vmul.f32 %v56, 0.2
  %v345 = vmul.f32 %v57, 0.2
  %v346 = vmul.f32 %v58, 0.2
  %v347 = vmul.f32 %v59, 0.2
  %v348 = vmul.f32 %v60, 0.2
  %v349 = vmul.f32 %v61, 0.2
  %v350 = vmul.f32 %v62, 0.2
  %v351 = vmul.f32 %v63, 0.2
  %v352 = vmul.f32 %v64, 0.2
  %v353 = vmul.f32 %v65, 0.2
  %v354 = vmul.f32 %v66, 0.2
  %v355 = vmul.f32 %v67, 0.2
  %v356 = vmul.f32 %v68, 0.2
  %v357 = vmul.f32 %v69, 0.2
  %v358 = vmul.f32 %v70, 0.2
  %v359 = vmul.f32 %v71, 0.2
  %v360 = vmul.f32 %v72, 0.2
  %v361 = vmul.f32 %v73, 0.2
  %v362 = vmul.f32 %v74, 0.2
  %v363 = vmul.f32 %v75, 0.2
  %v364 = vmul.f32 %v76, 0.2
  %v365 = vmul.f32 %v77, 0.2
  %v366 = vmul.f32 %v78, 0.2
  %v367 = vmul.f32 %v79, 0.2
  %v368 = vmul.f32 %v80, 0.2
  %v369 = vmul.f32 %v81, 0.2
  %v370 = vmul.f32 %v82, 0.2
  %v371 = vmul.f32 %v83, 0.2
  %v372 = vmul.f32 %v84, 0.2
  %v373 = vmul.f32 %v85, 0.2
  %v374 = vmul.f32 %v86, 0.2
  %v375 = vmul.f32 %v87, 0.2
  %v376 = vmul.f32 %v88, 0.2
  %v377 = vmul.f32 %v89, 0.2
  %v378 = vmul.f32 %v90, 0.2
  %v379 = vmul.f32 %v91, 0.2
  %v380 = vmul.f32 %v92, 0.2
  %v381 = vmul.f32 %v93, 0.2
  %v382 = vmul.f32 %v94, 0.2
  %v383 = vmul.f32 %v95, 0.2
  %v384 = vmul.f32 %v96, 0.2
  %v385 = vmul.f32 %v97, 0.2
  %v386 = vmul.f32 %v98, 0.2
  %v387 = vmul.f32 %v99, 0.2
  %v388 = vmul.f32 %v100, 0.2
  %v389 = vmul.f32 %v101, 0.2
  %v390 = vmul.f32 %v102, 0.2
  %v391 = vmul.f32 %v103, 0.2
  %v392 = vmul.f32 %v104, 0.2
  %v393 = vmul.f32 %v105, 0.2
  %v394 = vmul.f32 %v106, 0.2
  %v395 = vmul.f32 %v107, 0.2
  %v396 = vmul.f32 %v108, 0.2
  %v397 = vmul.f32 %v109, 0.2
  %v398 = vmul.f32 %v110, 0.2
  %v399 = vmul.f32 %v111, 0.2
  %v400 = vmul.f32 %v112, 0.2
  %v401 = vmul.f32 %v113, 0.2
  %v402 = vmul.f32 %v114, 0.2
  %v403 = vmul.f32 %v115, 0.2
  %v404 = vmul.f32 %v116, 0.2
  %v405 = vmul.f32 %v117, 0.2
  %v406 = vmul.f32 %v118, 0.2
  %v407 = vmul.f32 %v119, 0.2
  %v408 = vmul.f32 %v120, 0.2
  %v409 = vmul.f32 %v121, 0.2
  %v410 = vmul.f32 %v122, 0.2
  %v411 = vmul.f32 %v123, 0.2
  %v412 = vmul.f32 %v124, 0.2
  %v413 = vmul.f32 %v125, 0.2
  %v414 = vmul.f32 %v126, 0.2
  %v415 = vmul.f32 %v127, 0.2
  %v416 = vmul.f32 %v128, 0.2
  %v417 = vmul.f32 %v129, 0.2
  %v418 = vmul.f32 %v130, 0.2
  %v419 = vmul.f32 %v131, 0.2
  %v420 = vmul.f32 %v132, 0.2
  %v421 = vmul.f32 %v133, 0.2
  %v422 = vmul.f32 %v134, 0.2
  %v423 = vmul.f32 %v135, 0.2
  %v424 = vmul.f32 %v136, 0.2
  %v425 = vmul.f32 %v137, 0.2
  %v426 = vmul.f32 %v138, 0.2
  %v427 = vmul.f32 %v139, 0.2
  %v428 = vmul.f32 %v140, 0.2
  %v429 = vmul.f32 %v141, 0.2
  %v430 = vmul.f32 %v142, 0.2
  %v431 = vmul.f32 %v143, 0.2
  %v432 = vmul.f32 %v144, 0.2
  %v433 = vmul.f32 %v145, 0.2
  %v434 = vmul.f32 %v146, 0.2
  %v435 = vmul.f32 %v147, 0.2
  %v436 = vmul.f32 %v148, 0.2
  %v437 = vmul.f32 %v149, 0.2
  %v438 = vmul.f32 %v150, 0.2
  %v439 = vmul.f32 %v151, 0.2
  %v440 = vmul.f32 %v152, 0.2
  %v441 = vmul.f32 %v153, 0.2
  %v442 = vmul.f32 %v154, 0.2
  %v443 = vmul.f32 %v155, 0.2
  %v444 = vmul.f32 %v156, 0.2
  %v445 = vmul.f32 %v157, 0.2
  %v446 = vmul.f32 %v158, 0.2
  %v447 = vmul.f32 %v159, 0.2
  %v448 = vmul.f32 %v160, 0.2
  %v449 = vmul.f32 %v161, 0.2
  %v450 = vmul.f32 %v162, 0.2
  %v451 = vmul.f32 %v163, 0.2
  %v452 = vmul.f32 %v164, 0.2
  %v453 = vsel %vm165, %v21, %v309
  %v454 = vsel %vm166, %v22, %v310
  %v455 = vsel %vm167, %v23, %v311
  %v456 = vsel %vm168, %v24, %v312
  %v457 = vsel %vm169, %v25, %v313
  %v458 = vsel %vm170, %v26, %v314
  %v459 = vsel %vm171, %v27, %v315
  %v460 = vsel %vm172, %v28, %v316
  %v461 = vsel %vm173, %v29, %v317
  %v462 = vsel %vm174, %v30, %v318
  %v463 = vsel %vm175, %v31, %v319
  %v464 = vsel %vm176, %v32, %v320
  %v465 = vsel %vm177, %v33, %v321
  %v466 = vsel %vm178, %v34, %v322
  %v467 = vsel %vm179, %v35, %v323
  %v468 = vsel %vm180, %v36, %v324
  %v469 = vsel %vm181, %v37, %v325
  %v470 = vsel %vm182, %v38, %v326
  %v471 = vsel %vm183, %v39, %v327
  %v472 = vsel %vm184, %v40, %v328
  %v473 = vsel %vm185, %v41, %v329
  %v474 = vsel %vm186, %v42, %v330
  %v475 = vsel %vm187, %v43, %v331
  %v476 = vsel %vm188, %v44, %v332
  %v477 = vsel %vm189, %v45, %v333
  %v478 = vsel %vm190, %v46, %v334
  %v479 = vsel %vm191, %v47, %v335
  %v480 = vsel %vm192, %v48, %v336
  %v481 = vsel %vm193, %v49, %v337
  %v482 = vsel %vm194, %v50, %v338
  %v483 = vsel %vm195, %v51, %v339
  %v484 = vsel %vm196, %v52, %v340
  %v485 = vsel %vm197, %v53, %v341
  %v486 = vsel %vm198, %v54, %v342
  %v487 = vsel %vm199, %v55, %v343
  %v488 = vsel %vm200, %v56, %v344
  %v489 = vsel %vm201, %v57, %v345
  %v490 = vsel %vm202, %v58, %v346
  %v491 = vsel %vm203, %v59, %v347
  %v492 = vsel %vm204, %v60, %v348
  %v493 = vsel %vm205, %v61, %v349
  %v494 = vsel %vm206, %v62, %v350
  %v495 = vsel %vm207, %v63, %v351
  %v496 = vsel %vm208, %v64, %v352
  %v497 = vsel %vm209, %v65, %v353
  %v498 = vsel %vm210, %v66, %v354
  %v499 = vsel %vm211, %v67, %v355
  %v500 = vsel %vm212, %v68, %v356
  %v501 = vsel %vm213, %v69, %v357
  %v502 = vsel %vm214, %v70, %v358
  %v503 = vsel %vm215, %v71, %v359
  %v504 = vsel %vm216, %v72, %v360
  %v505 = vsel %vm217, %v73, %v361
  %v506 = vsel %vm218, %v74, %v362
  %v507 = vsel %vm219, %v75, %v363
  %v508 = vsel %vm220, %v76, %v364
  %v509 = vsel %vm221, %v77, %v365
  %v510 = vsel %vm222, %v78, %v366
  %v511 = vsel %vm223, %v79, %v367
  %v512 = vsel %vm224, %v80, %v368
  %v513 = vsel %vm225, %v81, %v369
  %v514 = vsel %vm226, %v82, %v370
  %v515 = vsel %vm227, %v83, %v371
  %v516 = vsel %vm228, %v84, %v372
  %v517 = vsel %vm229, %v85, %v373
  %v518 = vsel %vm230, %v86, %v374
  %v519 = vsel %vm231, %v87, %v375
  %v520 = vsel %vm232, %v88, %v376
  %v521 = vsel %vm233, %v89, %v377
  %v522 = vsel %vm234, %v90, %v378
  %v523 = vsel %vm235, %v91, %v379
  %v524 = vsel %vm236, %v92, %v380
  %v525 = vsel %vm237, %v93, %v381
  %v526 = vsel %vm238, %v94, %v382
  %v527 = vsel %vm239, %v95, %v383
  %v528 = vsel %vm240, %v96, %v384
  %v529 = vsel %vm241, %v97, %v385
  %v530 = vsel %vm242, %v98, %v386
  %v531 = vsel %vm243, %v99, %v387
  %v532 = vsel %vm244, %v100, %v388
  %v533 = vsel %vm245, %v101, %v389
  %v534 = vsel %vm246, %v102, %v390
  %v535 = vsel %vm247, %v103, %v391
  %v536 = vsel %vm248, %v104, %v392
  %v537 = vsel %vm249, %v105, %v393
  %v538 = vsel %vm250, %v106, %v394
  %v539 = vsel %vm251, %v107, %v395
  %v540 = vsel %vm252, %v108, %v396
  %v541 = vsel %vm253, %v109, %v397
  %v542 = vsel %vm254, %v110, %v398
  %v543 = vsel %vm255, %v111, %v399
  %v544 = vsel %vm256, %v112, %v400
  %v545 = vsel %vm257, %v113, %v401
  %v546 = vsel %vm258, %v114, %v402
  %v547 = vsel %vm259, %v115, %v403
  %v548 = vsel %vm260, %v116, %v404
  %v549 = vsel %vm261, %v117, %v405
  %v550 = vsel %vm262, %v118, %v406
  %v551 = vsel %vm263, %v119, %v407
  %v552 = vsel %vm264, %v120, %v408
  %v553 = vsel %vm265, %v121, %v409
  %v554 = vsel %vm266, %v122, %v410
  %v555 = vsel %vm267, %v123, %v411
  %v556 = vsel %vm268, %v124, %v412
  %v557 = vsel %vm269, %v125, %v413
  %v558 = vsel %vm270, %v126, %v414
  %v559 = vsel %vm271, %v127, %v415
  %v560 = vsel %vm272, %v128, %v416
  %v561 = vsel %vm273, %v129, %v417
  %v562 = vsel %vm274, %v130, %v418
  %v563 = vsel %vm275, %v131, %v419
  %v564 = vsel %vm276, %v132, %v420
  %v565 = vsel %vm277, %v133, %v421
  %v566 = vsel %vm278, %v134, %v422
  %v567 = vsel %vm279, %v135, %v423
  %v568 = vsel %vm280, %v136, %v424
  %v569 = vsel %vm281, %v137, %v425
  %v570 = vsel %vm282, %v138, %v426
  %v571 = vsel %vm283, %v139, %v427
  %v572 = vsel %vm284, %v140, %v428
  %v573 = vsel %vm285, %v141, %v429
  %v574 = vsel %vm286, %v142, %v430
  %v575 = vsel %vm287, %v143, %v431
  %v576 = vsel %vm288, %v144, %v432
  %v577 = vsel %vm289, %v145, %v433
  %v578 = vsel %vm290, %v146, %v434
  %v579 = vsel %vm291, %v147, %v435
  %v580 = vsel %vm292, %v148, %v436
  %v581 = vsel %vm293, %v149, %v437
  %v582 = vsel %vm294, %v150, %v438
  %v583 = vsel %vm295, %v151, %v439
  %v584 = vsel %vm296, %v152, %v440
  %v585 = vsel %vm297, %v153, %v441
  %v586 = vsel %vm298, %v154, %v442
  %v587 = vsel %vm299, %v155, %v443
  %v588 = vsel %vm300, %v156, %v444
  %v589 = vsel %vm301, %v157, %v445
  %v590 = vsel %vm302, %v158, %v446
  %v591 = vsel %vm303, %v159, %v447
  %v592 = vsel %vm304, %v160, %v448
  %v593 = vsel %vm305, %v161, %v449
  %v594 = vsel %vm306, %v162, %v450
  %v595 = vsel %vm307, %v163, %v451
  %v596 = vsel %vm308, %v164, %v452
  %vm597 = vcmask 31744
  %598 = vst.msk [vmem:[#allocation2] sm:$0xff] %vm597, %v453
  %vm599 = vcmask 24576
  %600 = vst.msk [vmem:[#allocation2 + $0x8] sm:$0x1] %vm599, %v454
  %601 = vst.msk [vmem:[#allocation2 + $0x10] sm:$0xff] %vm597, %v455
  %602 = vst.msk [vmem:[#allocation2 + $0x18] sm:$0x1] %vm599, %v456
  %603 = vst.msk [vmem:[#allocation2 + $0x20] sm:$0xff] %vm597, %v457
  %604 = vst.msk [vmem:[#allocation2 + $0x28] sm:$0x1] %vm599, %v458
  %605 = vst.msk [vmem:[#allocation2 + $0x30] sm:$0xff] %vm597, %v459
  %606 = vst.msk [vmem:[#allocation2 + $0x38] sm:$0x1] %vm599, %v460
  %607 = vst.msk [vmem:[#allocation2 + $0x40] sm:$0xff] %vm597, %v461
  %608 = vst.msk [vmem:[#allocation2 + $0x48] sm:$0x1] %vm599, %v462
  %609 = vst.msk [vmem:[#allocation2 + $0x50] sm:$0xff] %vm597, %v463
  %610 = vst.msk [vmem:[#allocation2 + $0x58] sm:$0x1] %vm599, %v464
  %611 = vst.msk [vmem:[#allocation2 + $0x60] sm:$0xff] %vm597, %v465
  %612 = vst.msk [vmem:[#allocation2 + $0x68] sm:$0x1] %vm599, %v466
  %613 = vst.msk [vmem:[#allocation2 + $0x70] sm:$0xff] %vm597, %v467
  %614 = vst.msk [vmem:[#allocation2 + $0x78] sm:$0x1] %vm599, %v468
  %615 = vst.msk [vmem:[#allocation2 + $0x80] sm:$0xff] %vm597, %v469
  %616 = vst.msk [vmem:[#allocation2 + $0x88] sm:$0x1] %vm599, %v470
  %617 = vst.msk [vmem:[#allocation2 + $0x90] sm:$0xff] %vm597, %v471
  %618 = vst.msk [vmem:[#allocation2 + $0x98] sm:$0x1] %vm599, %v472
  %619 = vst.msk [vmem:[#allocation2 + $0xa0] sm:$0xff] %vm597, %v473
  %620 = vst.msk [vmem:[#allocation2 + $0xa8] sm:$0x1] %vm599, %v474
  %621 = vst.msk [vmem:[#allocation2 + $0xb0] sm:$0xff] %vm597, %v475
  %622 = vst.msk [vmem:[#allocation2 + $0xb8] sm:$0x1] %vm599, %v476
  %623 = vst.msk [vmem:[#allocation2 + $0xc0] sm:$0xff] %vm597, %v477
  %624 = vst.msk [vmem:[#allocation2 + $0xc8] sm:$0x1] %vm599, %v478
  %625 = vst.msk [vmem:[#allocation2 + $0xd0] sm:$0xff] %vm597, %v479
  %626 = vst.msk [vmem:[#allocation2 + $0xd8] sm:$0x1] %vm599, %v480
  %627 = vst.msk [vmem:[#allocation2 + $0xe0] sm:$0xff] %vm597, %v481
  %628 = vst.msk [vmem:[#allocation2 + $0xe8] sm:$0x1] %vm599, %v482
  %629 = vst.msk [vmem:[#allocation2 + $0xf0] sm:$0xff] %vm597, %v483
  %630 = vst.msk [vmem:[#allocation2 + $0xf8] sm:$0x1] %vm599, %v484
  %631 = vst.msk [vmem:[#allocation2 + $0x100] sm:$0xff] %vm597, %v485
  %632 = vst.msk [vmem:[#allocation2 + $0x108] sm:$0x1] %vm599, %v486
  %633 = vst.msk [vmem:[#allocation2 + $0x110] sm:$0xff] %vm597, %v487
  %634 = vst.msk [vmem:[#allocation2 + $0x118] sm:$0x1] %vm599, %v488
  %635 = vst.msk [vmem:[#allocation2 + $0x120] sm:$0xff] %vm597, %v489
  %636 = vst.msk [vmem:[#allocation2 + $0x128] sm:$0x1] %vm599, %v490
  %637 = vst.msk [vmem:[#allocation2 + $0x130] sm:$0xff] %vm597, %v491
  %638 = vst.msk [vmem:[#allocation2 + $0x138] sm:$0x1] %vm599, %v492
  %639 = vst.msk [vmem:[#allocation2 + $0x140] sm:$0xff] %vm597, %v493
  %640 = vst.msk [vmem:[#allocation2 + $0x148] sm:$0x1] %vm599, %v494
  %641 = vst.msk [vmem:[#allocation2 + $0x150] sm:$0xff] %vm597, %v495
  %642 = vst.msk [vmem:[#allocation2 + $0x158] sm:$0x1] %vm599, %v496
  %643 = vst.msk [vmem:[#allocation2 + $0x160] sm:$0xff] %vm597, %v497
  %644 = vst.msk [vmem:[#allocation2 + $0x168] sm:$0x1] %vm599, %v498
  %645 = vst.msk [vmem:[#allocation2 + $0x170] sm:$0xff] %vm597, %v499
  %646 = vst.msk [vmem:[#allocation2 + $0x178] sm:$0x1] %vm599, %v500
  %647 = vst.msk [vmem:[#allocation2 + $0x180] sm:$0xff] %vm597, %v501
  %648 = vst.msk [vmem:[#allocation2 + $0x188] sm:$0x1] %vm599, %v502
  %649 = vst.msk [vmem:[#allocation2 + $0x190] sm:$0xff] %vm597, %v503
  %650 = vst.msk [vmem:[#allocation2 + $0x198] sm:$0x1] %vm599, %v504
  %651 = vst.msk [vmem:[#allocation2 + $0x1a0] sm:$0xff] %vm597, %v505
  %652 = vst.msk [vmem:[#allocation2 + $0x1a8] sm:$0x1] %vm599, %v506
  %653 = vst.msk [vmem:[#allocation2 + $0x1b0] sm:$0xff] %vm597, %v507
  %654 = vst.msk [vmem:[#allocation2 + $0x1b8] sm:$0x1] %vm599, %v508
  %655 = vst.msk [vmem:[#allocation2 + $0x1c0] sm:$0xff] %vm597, %v509
  %656 = vst.msk [vmem:[#allocation2 + $0x1c8] sm:$0x1] %vm599, %v510
  %657 = vst.msk [vmem:[#allocation2 + $0x1d0] sm:$0xff] %vm597, %v511
  %658 = vst.msk [vmem:[#allocation2 + $0x1d8] sm:$0x1] %vm599, %v512
  %659 = vst.msk [vmem:[#allocation2 + $0x1e0] sm:$0xff] %vm597, %v513
  %660 = vst.msk [vmem:[#allocation2 + $0x1e8] sm:$0x1] %vm599, %v514
  %661 = vst.msk [vmem:[#allocation2 + $0x1f0] sm:$0xff] %vm597, %v515
  %662 = vst.msk [vmem:[#allocation2 + $0x1f8] sm:$0x1] %vm599, %v516
  %663 = vst.msk [vmem:[#allocation2 + $0x200] sm:$0xff] %vm597, %v517
  %664 = vst.msk [vmem:[#allocation2 + $0x208] sm:$0x1] %vm599, %v518
  %665 = vst.msk [vmem:[#allocation2 + $0x210] sm:$0xff] %vm597, %v519
  %666 = vst.msk [vmem:[#allocation2 + $0x218] sm:$0x1] %vm599, %v520
  %667 = vst.msk [vmem:[#allocation2 + $0x220] sm:$0xff] %vm597, %v521
  %668 = vst.msk [vmem:[#allocation2 + $0x228] sm:$0x1] %vm599, %v522
  %669 = vst.msk [vmem:[#allocation2 + $0x230] sm:$0xff] %vm597, %v523
  %670 = vst.msk [vmem:[#allocation2 + $0x238] sm:$0x1] %vm599, %v524
  %671 = vst.msk [vmem:[#allocation2 + $0x240] sm:$0xff] %vm597, %v525
  %672 = vst.msk [vmem:[#allocation2 + $0x248] sm:$0x1] %vm599, %v526
  %673 = vst.msk [vmem:[#allocation2 + $0x250] sm:$0xff] %vm597, %v527
  %674 = vst.msk [vmem:[#allocation2 + $0x258] sm:$0x1] %vm599, %v528
  %675 = vst.msk [vmem:[#allocation2 + $0x260] sm:$0xff] %vm597, %v529
  %676 = vst.msk [vmem:[#allocation2 + $0x268] sm:$0x1] %vm599, %v530
  %677 = vst.msk [vmem:[#allocation2 + $0x270] sm:$0xff] %vm597, %v531
  %678 = vst.msk [vmem:[#allocation2 + $0x278] sm:$0x1] %vm599, %v532
  %679 = vst.msk [vmem:[#allocation2 + $0x280] sm:$0xff] %vm597, %v533
  %680 = vst.msk [vmem:[#allocation2 + $0x288] sm:$0x1] %vm599, %v534
  %681 = vst.msk [vmem:[#allocation2 + $0x290] sm:$0xff] %vm597, %v535
  %682 = vst.msk [vmem:[#allocation2 + $0x298] sm:$0x1] %vm599, %v536
  %683 = vst.msk [vmem:[#allocation2 + $0x2a0] sm:$0xff] %vm597, %v537
  %684 = vst.msk [vmem:[#allocation2 + $0x2a8] sm:$0x1] %vm599, %v538
  %685 = vst.msk [vmem:[#allocation2 + $0x2b0] sm:$0xff] %vm597, %v539
  %686 = vst.msk [vmem:[#allocation2 + $0x2b8] sm:$0x1] %vm599, %v540
  %687 = vst.msk [vmem:[#allocation2 + $0x2c0] sm:$0xff] %vm597, %v541
  %688 = vst.msk [vmem:[#allocation2 + $0x2c8] sm:$0x1] %vm599, %v542
  %689 = vst.msk [vmem:[#allocation2 + $0x2d0] sm:$0xff] %vm597, %v543
  %690 = vst.msk [vmem:[#allocation2 + $0x2d8] sm:$0x1] %vm599, %v544
  %691 = vst.msk [vmem:[#allocation2 + $0x2e0] sm:$0xff] %vm597, %v545
  %692 = vst.msk [vmem:[#allocation2 + $0x2e8] sm:$0x1] %vm599, %v546
  %693 = vst.msk [vmem:[#allocation2 + $0x2f0] sm:$0xff] %vm597, %v547
  %694 = vst.msk [vmem:[#allocation2 + $0x2f8] sm:$0x1] %vm599, %v548
  %695 = vst.msk [vmem:[#allocation2 + $0x300] sm:$0xff] %vm597, %v549
  %696 = vst.msk [vmem:[#allocation2 + $0x308] sm:$0x1] %vm599, %v550
  %697 = vst.msk [vmem:[#allocation2 + $0x310] sm:$0xff] %vm597, %v551
  %698 = vst.msk [vmem:[#allocation2 + $0x318] sm:$0x1] %vm599, %v552
  %699 = vst.msk [vmem:[#allocation2 + $0x320] sm:$0xff] %vm597, %v553
  %700 = vst.msk [vmem:[#allocation2 + $0x328] sm:$0x1] %vm599, %v554
  %701 = vst.msk [vmem:[#allocation2 + $0x330] sm:$0xff] %vm597, %v555
  %702 = vst.msk [vmem:[#allocation2 + $0x338] sm:$0x1] %vm599, %v556
  %703 = vst.msk [vmem:[#allocation2 + $0x340] sm:$0xff] %vm597, %v557
  %704 = vst.msk [vmem:[#allocation2 + $0x348] sm:$0x1] %vm599, %v558
  %705 = vst.msk [vmem:[#allocation2 + $0x350] sm:$0xff] %vm597, %v559
  %706 = vst.msk [vmem:[#allocation2 + $0x358] sm:$0x1] %vm599, %v560
  %707 = vst.msk [vmem:[#allocation2 + $0x360] sm:$0xff] %vm597, %v561
  %708 = vst.msk [vmem:[#allocation2 + $0x368] sm:$0x1] %vm599, %v562
  %709 = vst.msk [vmem:[#allocation2 + $0x370] sm:$0xff] %vm597, %v563
  %710 = vst.msk [vmem:[#allocation2 + $0x378] sm:$0x1] %vm599, %v564
  %711 = vst.msk [vmem:[#allocation2 + $0x380] sm:$0xff] %vm597, %v565
  %712 = vst.msk [vmem:[#allocation2 + $0x388] sm:$0x1] %vm599, %v566
  %713 = vst.msk [vmem:[#allocation2 + $0x390] sm:$0xff] %vm597, %v567
  %714 = vst.msk [vmem:[#allocation2 + $0x398] sm:$0x1] %vm599, %v568
  %715 = vst.msk [vmem:[#allocation2 + $0x3a0] sm:$0xff] %vm597, %v569
  %716 = vst.msk [vmem:[#allocation2 + $0x3a8] sm:$0x1] %vm599, %v570
  %717 = vst.msk [vmem:[#allocation2 + $0x3b0] sm:$0xff] %vm597, %v571
  %718 = vst.msk [vmem:[#allocation2 + $0x3b8] sm:$0x1] %vm599, %v572
  %719 = vst.msk [vmem:[#allocation2 + $0x3c0] sm:$0xff] %vm597, %v573
  %720 = vst.msk [vmem:[#allocation2 + $0x3c8] sm:$0x1] %vm599, %v574
  %721 = vst.msk [vmem:[#allocation2 + $0x3d0] sm:$0xff] %vm597, %v575
  %722 = vst.msk [vmem:[#allocation2 + $0x3d8] sm:$0x1] %vm599, %v576
  %723 = vst.msk [vmem:[#allocation2 + $0x3e0] sm:$0xff] %vm597, %v577
  %724 = vst.msk [vmem:[#allocation2 + $0x3e8] sm:$0x1] %vm599, %v578
  %725 = vst.msk [vmem:[#allocation2 + $0x3f0] sm:$0xff] %vm597, %v579
  %726 = vst.msk [vmem:[#allocation2 + $0x3f8] sm:$0x1] %vm599, %v580
  %727 = vst.msk [vmem:[#allocation2 + $0x400] sm:$0xff] %vm597, %v581
  %728 = vst.msk [vmem:[#allocation2 + $0x408] sm:$0x1] %vm599, %v582
  %729 = vst.msk [vmem:[#allocation2 + $0x410] sm:$0xff] %vm597, %v583
  %730 = vst.msk [vmem:[#allocation2 + $0x418] sm:$0x1] %vm599, %v584
  %731 = vst.msk [vmem:[#allocation2 + $0x420] sm:$0xff] %vm597, %v585
  %732 = vst.msk [vmem:[#allocation2 + $0x428] sm:$0x1] %vm599, %v586
  %733 = vst.msk [vmem:[#allocation2 + $0x430] sm:$0xff] %vm597, %v587
  %734 = vst.msk [vmem:[#allocation2 + $0x438] sm:$0x1] %vm599, %v588
  %735 = vst.msk [vmem:[#allocation2 + $0x440] sm:$0xff] %vm597, %v589
  %736 = vst.msk [vmem:[#allocation2 + $0x448] sm:$0x1] %vm599, %v590
  %737 = vst.msk [vmem:[#allocation2 + $0x450] sm:$0xff] %vm597, %v591
  %738 = vst.msk [vmem:[#allocation2 + $0x458] sm:$0x1] %vm599, %v592
  %739 = vst.msk [vmem:[#allocation2 + $0x460] sm:$0xff] %vm597, %v593
  %740 = vst.msk [vmem:[#allocation2 + $0x468] sm:$0x1] %vm599, %v594
  %741 = vst.msk [vmem:[#allocation2 + $0x470] sm:$0xff] %vm597, %v595
  %742 = vst.msk [vmem:[#allocation2 + $0x478] sm:$0x1] %vm599, %v596
  %v743 = vld [vmem:[#allocation2] sm:$0xff]
  %v744 = vld [vmem:[#allocation2 + $0x10] sm:$0xff]
  %v745 = vld [vmem:[#allocation2 + $0x20] sm:$0xff]
  %v746 = vld [vmem:[#allocation2 + $0x30] sm:$0xff]
  %v747 = vld [vmem:[#allocation2 + $0x40] sm:$0xff]
  %v748 = vld [vmem:[#allocation2 + $0x50] sm:$0xff]
  %v749 = vld [vmem:[#allocation2 + $0x60] sm:$0xff]
  %v750 = vld [vmem:[#allocation2 + $0x70] sm:$0xff]
  %v751 = vld [vmem:[#allocation2 + $0x90] sm:$0xff]
  %v752 = vld [vmem:[#allocation2 + $0xa0] sm:$0xff]
  %v753 = vld [vmem:[#allocation2 + $0xb0] sm:$0xff]
  %v754 = vld [vmem:[#allocation2 + $0xc0] sm:$0xff]
  %v755 = vld [vmem:[#allocation2 + $0xd0] sm:$0xff]
  %v756 = vld [vmem:[#allocation2 + $0xe0] sm:$0xff]
  %v757 = vld [vmem:[#allocation2 + $0xf0] sm:$0xff]
  %v758 = vld [vmem:[#allocation2 + $0x100] sm:$0xff]
  %v759 = vld [vmem:[#allocation2 + $0x1] sm:$0xff]
  %v760 = vld [vmem:[#allocation2 + $0x11] sm:$0xff]
  %v761 = vld [vmem:[#allocation2 + $0x21] sm:$0xff]
  %v762 = vld [vmem:[#allocation2 + $0x31] sm:$0xff]
  %v763 = vld [vmem:[#allocation2 + $0x41] sm:$0xff]
  %v764 = vld [vmem:[#allocation2 + $0x51] sm:$0xff]
  %v765 = vld [vmem:[#allocation2 + $0x61] sm:$0xff]
  %v766 = vld [vmem:[#allocation2 + $0x71] sm:$0xff]
  %v767 = vld [vmem:[#allocation2 + $0x91] sm:$0xff]
  %v768 = vld [vmem:[#allocation2 + $0xa1] sm:$0xff]
  %v769 = vld [vmem:[#allocation2 + $0xb1] sm:$0xff]
  %v770 = vld [vmem:[#allocation2 + $0xc1] sm:$0xff]
  %v771 = vld [vmem:[#allocation2 + $0xd1] sm:$0xff]
  %v772 = vld [vmem:[#allocation2 + $0xe1] sm:$0xff]
  %v773 = vld [vmem:[#allocation2 + $0xf1] sm:$0xff]
  %v774 = vld [vmem:[#allocation2 + $0x101] sm:$0xff]
  %s775 = scalar_lea.vmem [#allocation2], 16
  %v776 = vld [vmem:[%s775] sm:$0xff]
  %v777 = vld [vmem:[%s775 + $0x10] sm:$0xff]
  %v778 = vld [vmem:[%s775 + $0x20] sm:$0xff]
  %v779 = vld [vmem:[%s775 + $0x30] sm:$0xff]
  %v780 = vld [vmem:[%s775 + $0x40] sm:$0xff]
  %v781 = vld [vmem:[%s775 + $0x50] sm:$0xff]
  %v782 = vld [vmem:[%s775 + $0x60] sm:$0xff]
  %v783 = vld [vmem:[%s775 + $0x70] sm:$0xff]
  %v784 = vld [vmem:[%s775 + $0x90] sm:$0xff]
  %v785 = vld [vmem:[%s775 + $0xa0] sm:$0xff]
  %v786 = vld [vmem:[%s775 + $0xb0] sm:$0xff]
  %v787 = vld [vmem:[%s775 + $0xc0] sm:$0xff]
  %v788 = vld [vmem:[%s775 + $0xd0] sm:$0xff]
  %v789 = vld [vmem:[%s775 + $0xe0] sm:$0xff]
  %v790 = vld [vmem:[%s775 + $0xf0] sm:$0xff]
  %v791 = vld [vmem:[%s775 + $0x100] sm:$0xff]
  %v792 = vld [vmem:[%s775 + $0x1] sm:$0xff]
  %v793 = vld [vmem:[%s775 + $0x11] sm:$0xff]
  %v794 = vld [vmem:[%s775 + $0x21] sm:$0xff]
  %v795 = vld [vmem:[%s775 + $0x31] sm:$0xff]
  %v796 = vld [vmem:[%s775 + $0x41] sm:$0xff]
  %v797 = vld [vmem:[%s775 + $0x51] sm:$0xff]
  %v798 = vld [vmem:[%s775 + $0x61] sm:$0xff]
  %v799 = vld [vmem:[%s775 + $0x71] sm:$0xff]
  %v800 = vld [vmem:[%s775 + $0x91] sm:$0xff]
  %v801 = vld [vmem:[%s775 + $0xa1] sm:$0xff]
  %v802 = vld [vmem:[%s775 + $0xb1] sm:$0xff]
  %v803 = vld [vmem:[%s775 + $0xc1] sm:$0xff]
  %v804 = vld [vmem:[%s775 + $0xd1] sm:$0xff]
  %v805 = vld [vmem:[%s775 + $0xe1] sm:$0xff]
  %v806 = vld [vmem:[%s775 + $0xf1] sm:$0xff]
  %v807 = vld [vmem:[%s775 + $0x101] sm:$0xff]
  %s808 = scalar_lea.vmem [#allocation2], 288
  %v809 = vld [vmem:[%s808] sm:$0xff]
  %v810 = vld [vmem:[%s808 + $0x10] sm:$0xff]
  %v811 = vld [vmem:[%s808 + $0x20] sm:$0xff]
  %v812 = vld [vmem:[%s808 + $0x30] sm:$0xff]
  %v813 = vld [vmem:[%s808 + $0x40] sm:$0xff]
  %v814 = vld [vmem:[%s808 + $0x50] sm:$0xff]
  %v815 = vld [vmem:[%s808 + $0x60] sm:$0xff]
  %v816 = vld [vmem:[%s808 + $0x70] sm:$0xff]
  %v817 = vld [vmem:[%s808 + $0x90] sm:$0xff]
  %v818 = vld [vmem:[%s808 + $0xa0] sm:$0xff]
  %v819 = vld [vmem:[%s808 + $0xb0] sm:$0xff]
  %v820 = vld [vmem:[%s808 + $0xc0] sm:$0xff]
  %v821 = vld [vmem:[%s808 + $0xd0] sm:$0xff]
  %v822 = vld [vmem:[%s808 + $0xe0] sm:$0xff]
  %v823 = vld [vmem:[%s808 + $0xf0] sm:$0xff]
  %v824 = vld [vmem:[%s808 + $0x100] sm:$0xff]
  %v825 = vld [vmem:[%s808 + $0x1] sm:$0xff]
  %v826 = vld [vmem:[%s808 + $0x11] sm:$0xff]
  %v827 = vld [vmem:[%s808 + $0x21] sm:$0xff]
  %v828 = vld [vmem:[%s808 + $0x31] sm:$0xff]
  %v829 = vld [vmem:[%s808 + $0x41] sm:$0xff]
  %v830 = vld [vmem:[%s808 + $0x51] sm:$0xff]
  %v831 = vld [vmem:[%s808 + $0x61] sm:$0xff]
  %v832 = vld [vmem:[%s808 + $0x71] sm:$0xff]
  %v833 = vld [vmem:[%s808 + $0x91] sm:$0xff]
  %v834 = vld [vmem:[%s808 + $0xa1] sm:$0xff]
  %v835 = vld [vmem:[%s808 + $0xb1] sm:$0xff]
  %v836 = vld [vmem:[%s808 + $0xc1] sm:$0xff]
  %v837 = vld [vmem:[%s808 + $0xd1] sm:$0xff]
  %v838 = vld [vmem:[%s808 + $0xe1] sm:$0xff]
  %v839 = vld [vmem:[%s808 + $0xf1] sm:$0xff]
  %v840 = vld [vmem:[%s808 + $0x101] sm:$0xff]
  %s841 = scalar_lea.vmem [#allocation2], 304
  %v842 = vld [vmem:[%s841] sm:$0xff]
  %v843 = vld [vmem:[%s841 + $0x10] sm:$0xff]
  %v844 = vld [vmem:[%s841 + $0x20] sm:$0xff]
  %v845 = vld [vmem:[%s841 + $0x30] sm:$0xff]
  %v846 = vld [vmem:[%s841 + $0x40] sm:$0xff]
  %v847 = vld [vmem:[%s841 + $0x50] sm:$0xff]
  %v848 = vld [vmem:[%s841 + $0x60] sm:$0xff]
  %v849 = vld [vmem:[%s841 + $0x70] sm:$0xff]
  %v850 = vld [vmem:[%s841 + $0x90] sm:$0xff]
  %v851 = vld [vmem:[%s841 + $0xa0] sm:$0xff]
  %v852 = vld [vmem:[%s841 + $0xb0] sm:$0xff]
  %v853 = vld [vmem:[%s841 + $0xc0] sm:$0xff]
  %v854 = vld [vmem:[%s841 + $0xd0] sm:$0xff]
  %v855 = vld [vmem:[%s841 + $0xe0] sm:$0xff]
  %v856 = vld [vmem:[%s841 + $0xf0] sm:$0xff]
  %v857 = vld [vmem:[%s841 + $0x100] sm:$0xff]
  %v858 = vld [vmem:[%s841 + $0x1] sm:$0xff]
  %v859 = vld [vmem:[%s841 + $0x11] sm:$0xff]
  %v860 = vld [vmem:[%s841 + $0x21] sm:$0xff]
  %v861 = vld [vmem:[%s841 + $0x31] sm:$0xff]
  %v862 = vld [vmem:[%s841 + $0x41] sm:$0xff]
  %v863 = vld [vmem:[%s841 + $0x51] sm:$0xff]
  %v864 = vld [vmem:[%s841 + $0x61] sm:$0xff]
  %v865 = vld [vmem:[%s841 + $0x71] sm:$0xff]
  %v866 = vld [vmem:[%s841 + $0x91] sm:$0xff]
  %v867 = vld [vmem:[%s841 + $0xa1] sm:$0xff]
  %v868 = vld [vmem:[%s841 + $0xb1] sm:$0xff]
  %v869 = vld [vmem:[%s841 + $0xc1] sm:$0xff]
  %v870 = vld [vmem:[%s841 + $0xd1] sm:$0xff]
  %v871 = vld [vmem:[%s841 + $0xe1] sm:$0xff]
  %v872 = vld [vmem:[%s841 + $0xf1] sm:$0xff]
  %v873 = vld [vmem:[%s841 + $0x101] sm:$0xff]
  %s874 = scalar_lea.vmem [#allocation2], 576
  %v875 = vld [vmem:[%s874] sm:$0xff]
  %v876 = vld [vmem:[%s874 + $0x10] sm:$0xff]
  %v877 = vld [vmem:[%s874 + $0x20] sm:$0xff]
  %v878 = vld [vmem:[%s874 + $0x30] sm:$0xff]
  %v879 = vld [vmem:[%s874 + $0x40] sm:$0xff]
  %v880 = vld [vmem:[%s874 + $0x50] sm:$0xff]
  %v881 = vld [vmem:[%s874 + $0x60] sm:$0xff]
  %v882 = vld [vmem:[%s874 + $0x70] sm:$0xff]
  %v883 = vld [vmem:[%s874 + $0x90] sm:$0xff]
  %v884 = vld [vmem:[%s874 + $0xa0] sm:$0xff]
  %v885 = vld [vmem:[%s874 + $0xb0] sm:$0xff]
  %v886 = vld [vmem:[%s874 + $0xc0] sm:$0xff]
  %v887 = vld [vmem:[%s874 + $0xd0] sm:$0xff]
  %v888 = vld [vmem:[%s874 + $0xe0] sm:$0xff]
  %v889 = vld [vmem:[%s874 + $0xf0] sm:$0xff]
  %v890 = vld [vmem:[%s874 + $0x100] sm:$0xff]
  %v891 = vld [vmem:[%s874 + $0x1] sm:$0xff]
  %v892 = vld [vmem:[%s874 + $0x11] sm:$0xff]
  %v893 = vld [vmem:[%s874 + $0x21] sm:$0xff]
  %v894 = vld [vmem:[%s874 + $0x31] sm:$0xff]
  %v895 = vld [vmem:[%s874 + $0x41] sm:$0xff]
  %v896 = vld [vmem:[%s874 + $0x51] sm:$0xff]
  %v897 = vld [vmem:[%s874 + $0x61] sm:$0xff]
  %v898 = vld [vmem:[%s874 + $0x71] sm:$0xff]
  %v899 = vld [vmem:[%s874 + $0x91] sm:$0xff]
  %v900 = vld [vmem:[%s874 + $0xa1] sm:$0xff]
  %v901 = vld [vmem:[%s874 + $0xb1] sm:$0xff]
  %v902 = vld [vmem:[%s874 + $0xc1] sm:$0xff]
  %v903 = vld [vmem:[%s874 + $0xd1] sm:$0xff]
  %v904 = vld [vmem:[%s874 + $0xe1] sm:$0xff]
  %v905 = vld [vmem:[%s874 + $0xf1] sm:$0xff]
  %v906 = vld [vmem:[%s874 + $0x101] sm:$0xff]
  %s907 = scalar_lea.vmem [#allocation2], 592
  %v908 = vld [vmem:[%s907] sm:$0xff]
  %v909 = vld [vmem:[%s907 + $0x10] sm:$0xff]
  %v910 = vld [vmem:[%s907 + $0x20] sm:$0xff]
  %v911 = vld [vmem:[%s907 + $0x30] sm:$0xff]
  %v912 = vld [vmem:[%s907 + $0x40] sm:$0xff]
  %v913 = vld [vmem:[%s907 + $0x50] sm:$0xff]
  %v914 = vld [vmem:[%s907 + $0x60] sm:$0xff]
  %v915 = vld [vmem:[%s907 + $0x70] sm:$0xff]
  %v916 = vld [vmem:[%s907 + $0x90] sm:$0xff]
  %v917 = vld [vmem:[%s907 + $0xa0] sm:$0xff]
  %v918 = vld [vmem:[%s907 + $0xb0] sm:$0xff]
  %v919 = vld [vmem:[%s907 + $0xc0] sm:$0xff]
  %v920 = vld [vmem:[%s907 + $0xd0] sm:$0xff]
  %v921 = vld [vmem:[%s907 + $0xe0] sm:$0xff]
  %v922 = vld [vmem:[%s907 + $0xf0] sm:$0xff]
  %v923 = vld [vmem:[%s907 + $0x100] sm:$0xff]
  %v924 = vld [vmem:[%s907 + $0x1] sm:$0xff]
  %v925 = vld [vmem:[%s907 + $0x11] sm:$0xff]
  %v926 = vld [vmem:[%s907 + $0x21] sm:$0xff]
  %v927 = vld [vmem:[%s907 + $0x31] sm:$0xff]
  %v928 = vld [vmem:[%s907 + $0x41] sm:$0xff]
  %v929 = vld [vmem:[%s907 + $0x51] sm:$0xff]
  %v930 = vld [vmem:[%s907 + $0x61] sm:$0xff]
  %v931 = vld [vmem:[%s907 + $0x71] sm:$0xff]
  %v932 = vld [vmem:[%s907 + $0x91] sm:$0xff]
  %v933 = vld [vmem:[%s907 + $0xa1] sm:$0xff]
  %v934 = vld [vmem:[%s907 + $0xb1] sm:$0xff]
  %v935 = vld [vmem:[%s907 + $0xc1] sm:$0xff]
  %v936 = vld [vmem:[%s907 + $0xd1] sm:$0xff]
  %v937 = vld [vmem:[%s907 + $0xe1] sm:$0xff]
  %v938 = vld [vmem:[%s907 + $0xf1] sm:$0xff]
  %v939 = vld [vmem:[%s907 + $0x101] sm:$0xff]
  %s940 = scalar_lea.vmem [#allocation2], 864
  %v941 = vld [vmem:[%s940] sm:$0xff]
  %v942 = vld [vmem:[%s940 + $0x10] sm:$0xff]
  %v943 = vld [vmem:[%s940 + $0x20] sm:$0xff]
  %v944 = vld [vmem:[%s940 + $0x30] sm:$0xff]
  %v945 = vld [vmem:[%s940 + $0x40] sm:$0xff]
  %v946 = vld [vmem:[%s940 + $0x50] sm:$0xff]
  %v947 = vld [vmem:[%s940 + $0x60] sm:$0xff]
  %v948 = vld [vmem:[%s940 + $0x70] sm:$0xff]
  %v949 = vld [vmem:[%s940 + $0x90] sm:$0xff]
  %v950 = vld [vmem:[%s940 + $0xa0] sm:$0xff]
  %v951 = vld [vmem:[%s940 + $0xb0] sm:$0xff]
  %v952 = vld [vmem:[%s940 + $0xc0] sm:$0xff]
  %v953 = vld [vmem:[%s940 + $0xd0] sm:$0xff]
  %v954 = vld [vmem:[%s940 + $0xe0] sm:$0xff]
  %v955 = vld [vmem:[%s940 + $0xf0] sm:$0xff]
  %v956 = vld [vmem:[%s940 + $0x100] sm:$0xff]
  %v957 = vld [vmem:[%s940 + $0x1] sm:$0xff]
  %v958 = vld [vmem:[%s940 + $0x11] sm:$0xff]
  %v959 = vld [vmem:[%s940 + $0x21] sm:$0xff]
  %v960 = vld [vmem:[%s940 + $0x31] sm:$0xff]
  %v961 = vld [vmem:[%s940 + $0x41] sm:$0xff]
  %v962 = vld [vmem:[%s940 + $0x51] sm:$0xff]
  %v963 = vld [vmem:[%s940 + $0x61] sm:$0xff]
  %v964 = vld [vmem:[%s940 + $0x71] sm:$0xff]
  %v965 = vld [vmem:[%s940 + $0x91] sm:$0xff]
  %v966 = vld [vmem:[%s940 + $0xa1] sm:$0xff]
  %v967 = vld [vmem:[%s940 + $0xb1] sm:$0xff]
  %v968 = vld [vmem:[%s940 + $0xc1] sm:$0xff]
  %v969 = vld [vmem:[%s940 + $0xd1] sm:$0xff]
  %v970 = vld [vmem:[%s940 + $0xe1] sm:$0xff]
  %v971 = vld [vmem:[%s940 + $0xf1] sm:$0xff]
  %v972 = vld [vmem:[%s940 + $0x101] sm:$0xff]
  %s973 = scalar_lea.vmem [#allocation2], 880
  %v974 = vld [vmem:[%s973] sm:$0xff]
  %v975 = vld [vmem:[%s973 + $0x10] sm:$0xff]
  %v976 = vld [vmem:[%s973 + $0x20] sm:$0xff]
  %v977 = vld [vmem:[%s973 + $0x30] sm:$0xff]
  %v978 = vld [vmem:[%s973 + $0x40] sm:$0xff]
  %v979 = vld [vmem:[%s973 + $0x50] sm:$0xff]
  %v980 = vld [vmem:[%s973 + $0x60] sm:$0xff]
  %v981 = vld [vmem:[%s973 + $0x70] sm:$0xff]
  %v982 = vld [vmem:[%s973 + $0x90] sm:$0xff]
  %v983 = vld [vmem:[%s973 + $0xa0] sm:$0xff]
  %v984 = vld [vmem:[%s973 + $0xb0] sm:$0xff]
  %v985 = vld [vmem:[%s973 + $0xc0] sm:$0xff]
  %v986 = vld [vmem:[%s973 + $0xd0] sm:$0xff]
  %v987 = vld [vmem:[%s973 + $0xe0] sm:$0xff]
  %v988 = vld [vmem:[%s973 + $0xf0] sm:$0xff]
  %v989 = vld [vmem:[%s973 + $0x100] sm:$0xff]
  %v990 = vld [vmem:[%s973 + $0x1] sm:$0xff]
  %v991 = vld [vmem:[%s973 + $0x11] sm:$0xff]
  %v992 = vld [vmem:[%s973 + $0x21] sm:$0xff]
  %v993 = vld [vmem:[%s973 + $0x31] sm:$0xff]
  %v994 = vld [vmem:[%s973 + $0x41] sm:$0xff]
  %v995 = vld [vmem:[%s973 + $0x51] sm:$0xff]
  %v996 = vld [vmem:[%s973 + $0x61] sm:$0xff]
  %v997 = vld [vmem:[%s973 + $0x71] sm:$0xff]
  %v998 = vld [vmem:[%s973 + $0x91] sm:$0xff]
  %v999 = vld [vmem:[%s973 + $0xa1] sm:$0xff]
  %v1000 = vld [vmem:[%s973 + $0xb1] sm:$0xff]
  %v1001 = vld [vmem:[%s973 + $0xc1] sm:$0xff]
  %v1002 = vld [vmem:[%s973 + $0xd1] sm:$0xff]
  %v1003 = vld [vmem:[%s973 + $0xe1] sm:$0xff]
  %v1004 = vld [vmem:[%s973 + $0xf1] sm:$0xff]
  %v1005 = vld [vmem:[%s973 + $0x101] sm:$0xff]
  %1022 = vrot.lane.b32.xlu0 %v759, 4
  %v1023 = vpop.permute.xlu0 %1022
  %1024 = vrot.lane.b32.xlu0 %v760, 4
  %v1025 = vpop.permute.xlu0 %1024
  %1026 = vrot.lane.b32.xlu0 %v761, 4
  %v1027 = vpop.permute.xlu0 %1026
  %1028 = vrot.lane.b32.xlu0 %v762, 4
  %v1029 = vpop.permute.xlu0 %1028
  %1030 = vrot.lane.b32.xlu0 %v763, 4
  %v1031 = vpop.permute.xlu0 %1030
  %1032 = vrot.lane.b32.xlu0 %v764, 4
  %v1033 = vpop.permute.xlu0 %1032
  %1034 = vrot.lane.b32.xlu0 %v765, 4
  %v1035 = vpop.permute.xlu0 %1034
  %1036 = vrot.lane.b32.xlu0 %v766, 4
  %v1037 = vpop.permute.xlu0 %1036
  %1038 = vrot.lane.b32.xlu0 %v767, 4
  %v1039 = vpop.permute.xlu0 %1038
  %1040 = vrot.lane.b32.xlu0 %v768, 4
  %v1041 = vpop.permute.xlu0 %1040
  %1042 = vrot.lane.b32.xlu0 %v769, 4
  %v1043 = vpop.permute.xlu0 %1042
  %1044 = vrot.lane.b32.xlu0 %v770, 4
  %v1045 = vpop.permute.xlu0 %1044
  %1046 = vrot.lane.b32.xlu0 %v771, 4
  %v1047 = vpop.permute.xlu0 %1046
  %1048 = vrot.lane.b32.xlu0 %v772, 4
  %v1049 = vpop.permute.xlu0 %1048
  %1050 = vrot.lane.b32.xlu0 %v773, 4
  %v1051 = vpop.permute.xlu0 %1050
  %1052 = vrot.lane.b32.xlu0 %v774, 4
  %v1053 = vpop.permute.xlu0 %1052
  %1086 = vrot.lane.b32.xlu0 %v776, 8
  %v1087 = vpop.permute.xlu0 %1086
  %1088 = vrot.lane.b32.xlu0 %v777, 8
  %v1089 = vpop.permute.xlu0 %1088
  %1090 = vrot.lane.b32.xlu0 %v778, 8
  %v1091 = vpop.permute.xlu0 %1090
  %1092 = vrot.lane.b32.xlu0 %v779, 8
  %v1093 = vpop.permute.xlu0 %1092
  %1094 = vrot.lane.b32.xlu0 %v780, 8
  %v1095 = vpop.permute.xlu0 %1094
  %1096 = vrot.lane.b32.xlu0 %v781, 8
  %v1097 = vpop.permute.xlu0 %1096
  %1098 = vrot.lane.b32.xlu0 %v782, 8
  %v1099 = vpop.permute.xlu0 %1098
  %1100 = vrot.lane.b32.xlu0 %v783, 8
  %v1101 = vpop.permute.xlu0 %1100
  %1102 = vrot.lane.b32.xlu0 %v784, 8
  %v1103 = vpop.permute.xlu0 %1102
  %1104 = vrot.lane.b32.xlu0 %v785, 8
  %v1105 = vpop.permute.xlu0 %1104
  %1106 = vrot.lane.b32.xlu0 %v786, 8
  %v1107 = vpop.permute.xlu0 %1106
  %1108 = vrot.lane.b32.xlu0 %v787, 8
  %v1109 = vpop.permute.xlu0 %1108
  %1110 = vrot.lane.b32.xlu0 %v788, 8
  %v1111 = vpop.permute.xlu0 %1110
  %1112 = vrot.lane.b32.xlu0 %v789, 8
  %v1113 = vpop.permute.xlu0 %1112
  %1114 = vrot.lane.b32.xlu0 %v790, 8
  %v1115 = vpop.permute.xlu0 %1114
  %1116 = vrot.lane.b32.xlu0 %v791, 8
  %v1117 = vpop.permute.xlu0 %1116
  %1150 = vrot.lane.b32.xlu0 %v792, 12
  %v1151 = vpop.permute.xlu0 %1150
  %1152 = vrot.lane.b32.xlu0 %v793, 12
  %v1153 = vpop.permute.xlu0 %1152
  %1154 = vrot.lane.b32.xlu0 %v794, 12
  %v1155 = vpop.permute.xlu0 %1154
  %1156 = vrot.lane.b32.xlu0 %v795, 12
  %v1157 = vpop.permute.xlu0 %1156
  %1158 = vrot.lane.b32.xlu0 %v796, 12
  %v1159 = vpop.permute.xlu0 %1158
  %1160 = vrot.lane.b32.xlu0 %v797, 12
  %v1161 = vpop.permute.xlu0 %1160
  %1162 = vrot.lane.b32.xlu0 %v798, 12
  %v1163 = vpop.permute.xlu0 %1162
  %1164 = vrot.lane.b32.xlu0 %v799, 12
  %v1165 = vpop.permute.xlu0 %1164
  %1166 = vrot.lane.b32.xlu0 %v800, 12
  %v1167 = vpop.permute.xlu0 %1166
  %1168 = vrot.lane.b32.xlu0 %v801, 12
  %v1169 = vpop.permute.xlu0 %1168
  %1170 = vrot.lane.b32.xlu0 %v802, 12
  %v1171 = vpop.permute.xlu0 %1170
  %1172 = vrot.lane.b32.xlu0 %v803, 12
  %v1173 = vpop.permute.xlu0 %1172
  %1174 = vrot.lane.b32.xlu0 %v804, 12
  %v1175 = vpop.permute.xlu0 %1174
  %1176 = vrot.lane.b32.xlu0 %v805, 12
  %v1177 = vpop.permute.xlu0 %1176
  %1178 = vrot.lane.b32.xlu0 %v806, 12
  %v1179 = vpop.permute.xlu0 %1178
  %1180 = vrot.lane.b32.xlu0 %v807, 12
  %v1181 = vpop.permute.xlu0 %1180
  %1214 = vrot.lane.b32.xlu0 %v809, 16
  %v1215 = vpop.permute.xlu0 %1214
  %1216 = vrot.lane.b32.xlu0 %v810, 16
  %v1217 = vpop.permute.xlu0 %1216
  %1218 = vrot.lane.b32.xlu0 %v811, 16
  %v1219 = vpop.permute.xlu0 %1218
  %1220 = vrot.lane.b32.xlu0 %v812, 16
  %v1221 = vpop.permute.xlu0 %1220
  %1222 = vrot.lane.b32.xlu0 %v813, 16
  %v1223 = vpop.permute.xlu0 %1222
  %1224 = vrot.lane.b32.xlu0 %v814, 16
  %v1225 = vpop.permute.xlu0 %1224
  %1226 = vrot.lane.b32.xlu0 %v815, 16
  %v1227 = vpop.permute.xlu0 %1226
  %1228 = vrot.lane.b32.xlu0 %v816, 16
  %v1229 = vpop.permute.xlu0 %1228
  %1230 = vrot.lane.b32.xlu0 %v817, 16
  %v1231 = vpop.permute.xlu0 %1230
  %1232 = vrot.lane.b32.xlu0 %v818, 16
  %v1233 = vpop.permute.xlu0 %1232
  %1234 = vrot.lane.b32.xlu0 %v819, 16
  %v1235 = vpop.permute.xlu0 %1234
  %1236 = vrot.lane.b32.xlu0 %v820, 16
  %v1237 = vpop.permute.xlu0 %1236
  %1238 = vrot.lane.b32.xlu0 %v821, 16
  %v1239 = vpop.permute.xlu0 %1238
  %1240 = vrot.lane.b32.xlu0 %v822, 16
  %v1241 = vpop.permute.xlu0 %1240
  %1242 = vrot.lane.b32.xlu0 %v823, 16
  %v1243 = vpop.permute.xlu0 %1242
  %1244 = vrot.lane.b32.xlu0 %v824, 16
  %v1245 = vpop.permute.xlu0 %1244
  %1278 = vrot.lane.b32.xlu0 %v825, 20
  %v1279 = vpop.permute.xlu0 %1278
  %1280 = vrot.lane.b32.xlu0 %v826, 20
  %v1281 = vpop.permute.xlu0 %1280
  %1282 = vrot.lane.b32.xlu0 %v827, 20
  %v1283 = vpop.permute.xlu0 %1282
  %1284 = vrot.lane.b32.xlu0 %v828, 20
  %v1285 = vpop.permute.xlu0 %1284
  %1286 = vrot.lane.b32.xlu0 %v829, 20
  %v1287 = vpop.permute.xlu0 %1286
  %1288 = vrot.lane.b32.xlu0 %v830, 20
  %v1289 = vpop.permute.xlu0 %1288
  %1290 = vrot.lane.b32.xlu0 %v831, 20
  %v1291 = vpop.permute.xlu0 %1290
  %1292 = vrot.lane.b32.xlu0 %v832, 20
  %v1293 = vpop.permute.xlu0 %1292
  %1294 = vrot.lane.b32.xlu0 %v833, 20
  %v1295 = vpop.permute.xlu0 %1294
  %1296 = vrot.lane.b32.xlu0 %v834, 20
  %v1297 = vpop.permute.xlu0 %1296
  %1298 = vrot.lane.b32.xlu0 %v835, 20
  %v1299 = vpop.permute.xlu0 %1298
  %1300 = vrot.lane.b32.xlu0 %v836, 20
  %v1301 = vpop.permute.xlu0 %1300
  %1302 = vrot.lane.b32.xlu0 %v837, 20
  %v1303 = vpop.permute.xlu0 %1302
  %1304 = vrot.lane.b32.xlu0 %v838, 20
  %v1305 = vpop.permute.xlu0 %1304
  %1306 = vrot.lane.b32.xlu0 %v839, 20
  %v1307 = vpop.permute.xlu0 %1306
  %1308 = vrot.lane.b32.xlu0 %v840, 20
  %v1309 = vpop.permute.xlu0 %1308
  %1342 = vrot.lane.b32.xlu0 %v842, 24
  %v1343 = vpop.permute.xlu0 %1342
  %1344 = vrot.lane.b32.xlu0 %v843, 24
  %v1345 = vpop.permute.xlu0 %1344
  %1346 = vrot.lane.b32.xlu0 %v844, 24
  %v1347 = vpop.permute.xlu0 %1346
  %1348 = vrot.lane.b32.xlu0 %v845, 24
  %v1349 = vpop.permute.xlu0 %1348
  %1350 = vrot.lane.b32.xlu0 %v846, 24
  %v1351 = vpop.permute.xlu0 %1350
  %1352 = vrot.lane.b32.xlu0 %v847, 24
  %v1353 = vpop.permute.xlu0 %1352
  %1354 = vrot.lane.b32.xlu0 %v848, 24
  %v1355 = vpop.permute.xlu0 %1354
  %1356 = vrot.lane.b32.xlu0 %v849, 24
  %v1357 = vpop.permute.xlu0 %1356
  %1358 = vrot.lane.b32.xlu0 %v850, 24
  %v1359 = vpop.permute.xlu0 %1358
  %1360 = vrot.lane.b32.xlu0 %v851, 24
  %v1361 = vpop.permute.xlu0 %1360
  %1362 = vrot.lane.b32.xlu0 %v852, 24
  %v1363 = vpop.permute.xlu0 %1362
  %1364 = vrot.lane.b32.xlu0 %v853, 24
  %v1365 = vpop.permute.xlu0 %1364
  %1366 = vrot.lane.b32.xlu0 %v854, 24
  %v1367 = vpop.permute.xlu0 %1366
  %1368 = vrot.lane.b32.xlu0 %v855, 24
  %v1369 = vpop.permute.xlu0 %1368
  %1370 = vrot.lane.b32.xlu0 %v856, 24
  %v1371 = vpop.permute.xlu0 %1370
  %1372 = vrot.lane.b32.xlu0 %v857, 24
  %v1373 = vpop.permute.xlu0 %1372
  %1406 = vrot.lane.b32.xlu0 %v858, 28
  %v1407 = vpop.permute.xlu0 %1406
  %1408 = vrot.lane.b32.xlu0 %v859, 28
  %v1409 = vpop.permute.xlu0 %1408
  %1410 = vrot.lane.b32.xlu0 %v860, 28
  %v1411 = vpop.permute.xlu0 %1410
  %1412 = vrot.lane.b32.xlu0 %v861, 28
  %v1413 = vpop.permute.xlu0 %1412
  %1414 = vrot.lane.b32.xlu0 %v862, 28
  %v1415 = vpop.permute.xlu0 %1414
  %1416 = vrot.lane.b32.xlu0 %v863, 28
  %v1417 = vpop.permute.xlu0 %1416
  %1418 = vrot.lane.b32.xlu0 %v864, 28
  %v1419 = vpop.permute.xlu0 %1418
  %1420 = vrot.lane.b32.xlu0 %v865, 28
  %v1421 = vpop.permute.xlu0 %1420
  %1422 = vrot.lane.b32.xlu0 %v866, 28
  %v1423 = vpop.permute.xlu0 %1422
  %1424 = vrot.lane.b32.xlu0 %v867, 28
  %v1425 = vpop.permute.xlu0 %1424
  %1426 = vrot.lane.b32.xlu0 %v868, 28
  %v1427 = vpop.permute.xlu0 %1426
  %1428 = vrot.lane.b32.xlu0 %v869, 28
  %v1429 = vpop.permute.xlu0 %1428
  %1430 = vrot.lane.b32.xlu0 %v870, 28
  %v1431 = vpop.permute.xlu0 %1430
  %1432 = vrot.lane.b32.xlu0 %v871, 28
  %v1433 = vpop.permute.xlu0 %1432
  %1434 = vrot.lane.b32.xlu0 %v872, 28
  %v1435 = vpop.permute.xlu0 %1434
  %1436 = vrot.lane.b32.xlu0 %v873, 28
  %v1437 = vpop.permute.xlu0 %1436
  %1470 = vrot.lane.b32.xlu0 %v875, 32
  %v1471 = vpop.permute.xlu0 %1470
  %1472 = vrot.lane.b32.xlu0 %v876, 32
  %v1473 = vpop.permute.xlu0 %1472
  %1474 = vrot.lane.b32.xlu0 %v877, 32
  %v1475 = vpop.permute.xlu0 %1474
  %1476 = vrot.lane.b32.xlu0 %v878, 32
  %v1477 = vpop.permute.xlu0 %1476
  %1478 = vrot.lane.b32.xlu0 %v879, 32
  %v1479 = vpop.permute.xlu0 %1478
  %1480 = vrot.lane.b32.xlu0 %v880, 32
  %v1481 = vpop.permute.xlu0 %1480
  %1482 = vrot.lane.b32.xlu0 %v881, 32
  %v1483 = vpop.permute.xlu0 %1482
  %1484 = vrot.lane.b32.xlu0 %v882, 32
  %v1485 = vpop.permute.xlu0 %1484
  %1486 = vrot.lane.b32.xlu0 %v883, 32
  %v1487 = vpop.permute.xlu0 %1486
  %1488 = vrot.lane.b32.xlu0 %v884, 32
  %v1489 = vpop.permute.xlu0 %1488
  %1490 = vrot.lane.b32.xlu0 %v885, 32
  %v1491 = vpop.permute.xlu0 %1490
  %1492 = vrot.lane.b32.xlu0 %v886, 32
  %v1493 = vpop.permute.xlu0 %1492
  %1494 = vrot.lane.b32.xlu0 %v887, 32
  %v1495 = vpop.permute.xlu0 %1494
  %1496 = vrot.lane.b32.xlu0 %v888, 32
  %v1497 = vpop.permute.xlu0 %1496
  %1498 = vrot.lane.b32.xlu0 %v889, 32
  %v1499 = vpop.permute.xlu0 %1498
  %1500 = vrot.lane.b32.xlu0 %v890, 32
  %v1501 = vpop.permute.xlu0 %1500
  %1534 = vrot.lane.b32.xlu0 %v891, 36
  %v1535 = vpop.permute.xlu0 %1534
  %1536 = vrot.lane.b32.xlu0 %v892, 36
  %v1537 = vpop.permute.xlu0 %1536
  %1538 = vrot.lane.b32.xlu0 %v893, 36
  %v1539 = vpop.permute.xlu0 %1538
  %1540 = vrot.lane.b32.xlu0 %v894, 36
  %v1541 = vpop.permute.xlu0 %1540
  %1542 = vrot.lane.b32.xlu0 %v895, 36
  %v1543 = vpop.permute.xlu0 %1542
  %1544 = vrot.lane.b32.xlu0 %v896, 36
  %v1545 = vpop.permute.xlu0 %1544
  %1546 = vrot.lane.b32.xlu0 %v897, 36
  %v1547 = vpop.permute.xlu0 %1546
  %1548 = vrot.lane.b32.xlu0 %v898, 36
  %v1549 = vpop.permute.xlu0 %1548
  %1550 = vrot.lane.b32.xlu0 %v899, 36
  %v1551 = vpop.permute.xlu0 %1550
  %1552 = vrot.lane.b32.xlu0 %v900, 36
  %v1553 = vpop.permute.xlu0 %1552
  %1554 = vrot.lane.b32.xlu0 %v901, 36
  %v1555 = vpop.permute.xlu0 %1554
  %1556 = vrot.lane.b32.xlu0 %v902, 36
  %v1557 = vpop.permute.xlu0 %1556
  %1558 = vrot.lane.b32.xlu0 %v903, 36
  %v1559 = vpop.permute.xlu0 %1558
  %1560 = vrot.lane.b32.xlu0 %v904, 36
  %v1561 = vpop.permute.xlu0 %1560
  %1562 = vrot.lane.b32.xlu0 %v905, 36
  %v1563 = vpop.permute.xlu0 %1562
  %1564 = vrot.lane.b32.xlu0 %v906, 36
  %v1565 = vpop.permute.xlu0 %1564
  %1598 = vrot.lane.b32.xlu0 %v908, 40
  %v1599 = vpop.permute.xlu0 %1598
  %1600 = vrot.lane.b32.xlu0 %v909, 40
  %v1601 = vpop.permute.xlu0 %1600
  %1602 = vrot.lane.b32.xlu0 %v910, 40
  %v1603 = vpop.permute.xlu0 %1602
  %1604 = vrot.lane.b32.xlu0 %v911, 40
  %v1605 = vpop.permute.xlu0 %1604
  %1606 = vrot.lane.b32.xlu0 %v912, 40
  %v1607 = vpop.permute.xlu0 %1606
  %1608 = vrot.lane.b32.xlu0 %v913, 40
  %v1609 = vpop.permute.xlu0 %1608
  %1610 = vrot.lane.b32.xlu0 %v914, 40
  %v1611 = vpop.permute.xlu0 %1610
  %1612 = vrot.lane.b32.xlu0 %v915, 40
  %v1613 = vpop.permute.xlu0 %1612
  %1614 = vrot.lane.b32.xlu0 %v916, 40
  %v1615 = vpop.permute.xlu0 %1614
  %1616 = vrot.lane.b32.xlu0 %v917, 40
  %v1617 = vpop.permute.xlu0 %1616
  %1618 = vrot.lane.b32.xlu0 %v918, 40
  %v1619 = vpop.permute.xlu0 %1618
  %1620 = vrot.lane.b32.xlu0 %v919, 40
  %v1621 = vpop.permute.xlu0 %1620
  %1622 = vrot.lane.b32.xlu0 %v920, 40
  %v1623 = vpop.permute.xlu0 %1622
  %1624 = vrot.lane.b32.xlu0 %v921, 40
  %v1625 = vpop.permute.xlu0 %1624
  %1626 = vrot.lane.b32.xlu0 %v922, 40
  %v1627 = vpop.permute.xlu0 %1626
  %1628 = vrot.lane.b32.xlu0 %v923, 40
  %v1629 = vpop.permute.xlu0 %1628
  %1662 = vrot.lane.b32.xlu0 %v924, 44
  %v1663 = vpop.permute.xlu0 %1662
  %1664 = vrot.lane.b32.xlu0 %v925, 44
  %v1665 = vpop.permute.xlu0 %1664
  %1666 = vrot.lane.b32.xlu0 %v926, 44
  %v1667 = vpop.permute.xlu0 %1666
  %1668 = vrot.lane.b32.xlu0 %v927, 44
  %v1669 = vpop.permute.xlu0 %1668
  %1670 = vrot.lane.b32.xlu0 %v928, 44
  %v1671 = vpop.permute.xlu0 %1670
  %1672 = vrot.lane.b32.xlu0 %v929, 44
  %v1673 = vpop.permute.xlu0 %1672
  %1674 = vrot.lane.b32.xlu0 %v930, 44
  %v1675 = vpop.permute.xlu0 %1674
  %1676 = vrot.lane.b32.xlu0 %v931, 44
  %v1677 = vpop.permute.xlu0 %1676
  %1678 = vrot.lane.b32.xlu0 %v932, 44
  %v1679 = vpop.permute.xlu0 %1678
  %1680 = vrot.lane.b32.xlu0 %v933, 44
  %v1681 = vpop.permute.xlu0 %1680
  %1682 = vrot.lane.b32.xlu0 %v934, 44
  %v1683 = vpop.permute.xlu0 %1682
  %1684 = vrot.lane.b32.xlu0 %v935, 44
  %v1685 = vpop.permute.xlu0 %1684
  %1686 = vrot.lane.b32.xlu0 %v936, 44
  %v1687 = vpop.permute.xlu0 %1686
  %1688 = vrot.lane.b32.xlu0 %v937, 44
  %v1689 = vpop.permute.xlu0 %1688
  %1690 = vrot.lane.b32.xlu0 %v938, 44
  %v1691 = vpop.permute.xlu0 %1690
  %1692 = vrot.lane.b32.xlu0 %v939, 44
  %v1693 = vpop.permute.xlu0 %1692
  %1726 = vrot.lane.b32.xlu0 %v941, 48
  %v1727 = vpop.permute.xlu0 %1726
  %1728 = vrot.lane.b32.xlu0 %v942, 48
  %v1729 = vpop.permute.xlu0 %1728
  %1730 = vrot.lane.b32.xlu0 %v943, 48
  %v1731 = vpop.permute.xlu0 %1730
  %1732 = vrot.lane.b32.xlu0 %v944, 48
  %v1733 = vpop.permute.xlu0 %1732
  %1734 = vrot.lane.b32.xlu0 %v945, 48
  %v1735 = vpop.permute.xlu0 %1734
  %1736 = vrot.lane.b32.xlu0 %v946, 48
  %v1737 = vpop.permute.xlu0 %1736
  %1738 = vrot.lane.b32.xlu0 %v947, 48
  %v1739 = vpop.permute.xlu0 %1738
  %1740 = vrot.lane.b32.xlu0 %v948, 48
  %v1741 = vpop.permute.xlu0 %1740
  %1742 = vrot.lane.b32.xlu0 %v949, 48
  %v1743 = vpop.permute.xlu0 %1742
  %1744 = vrot.lane.b32.xlu0 %v950, 48
  %v1745 = vpop.permute.xlu0 %1744
  %1746 = vrot.lane.b32.xlu0 %v951, 48
  %v1747 = vpop.permute.xlu0 %1746
  %1748 = vrot.lane.b32.xlu0 %v952, 48
  %v1749 = vpop.permute.xlu0 %1748
  %1750 = vrot.lane.b32.xlu0 %v953, 48
  %v1751 = vpop.permute.xlu0 %1750
  %1752 = vrot.lane.b32.xlu0 %v954, 48
  %v1753 = vpop.permute.xlu0 %1752
  %1754 = vrot.lane.b32.xlu0 %v955, 48
  %v1755 = vpop.permute.xlu0 %1754
  %1756 = vrot.lane.b32.xlu0 %v956, 48
  %v1757 = vpop.permute.xlu0 %1756
  %1790 = vrot.lane.b32.xlu0 %v957, 52
  %v1791 = vpop.permute.xlu0 %1790
  %1792 = vrot.lane.b32.xlu0 %v958, 52
  %v1793 = vpop.permute.xlu0 %1792
  %1794 = vrot.lane.b32.xlu0 %v959, 52
  %v1795 = vpop.permute.xlu0 %1794
  %1796 = vrot.lane.b32.xlu0 %v960, 52
  %v1797 = vpop.permute.xlu0 %1796
  %1798 = vrot.lane.b32.xlu0 %v961, 52
  %v1799 = vpop.permute.xlu0 %1798
  %1800 = vrot.lane.b32.xlu0 %v962, 52
  %v1801 = vpop.permute.xlu0 %1800
  %1802 = vrot.lane.b32.xlu0 %v963, 52
  %v1803 = vpop.permute.xlu0 %1802
  %1804 = vrot.lane.b32.xlu0 %v964, 52
  %v1805 = vpop.permute.xlu0 %1804
  %1806 = vrot.lane.b32.xlu0 %v965, 52
  %v1807 = vpop.permute.xlu0 %1806
  %1808 = vrot.lane.b32.xlu0 %v966, 52
  %v1809 = vpop.permute.xlu0 %1808
  %1810 = vrot.lane.b32.xlu0 %v967, 52
  %v1811 = vpop.permute.xlu0 %1810
  %1812 = vrot.lane.b32.xlu0 %v968, 52
  %v1813 = vpop.permute.xlu0 %1812
  %1814 = vrot.lane.b32.xlu0 %v969, 52
  %v1815 = vpop.permute.xlu0 %1814
  %1816 = vrot.lane.b32.xlu0 %v970, 52
  %v1817 = vpop.permute.xlu0 %1816
  %1818 = vrot.lane.b32.xlu0 %v971, 52
  %v1819 = vpop.permute.xlu0 %1818
  %1820 = vrot.lane.b32.xlu0 %v972, 52
  %v1821 = vpop.permute.xlu0 %1820
  %1854 = vrot.lane.b32.xlu0 %v974, 56
  %v1855 = vpop.permute.xlu0 %1854
  %1856 = vrot.lane.b32.xlu0 %v975, 56
  %v1857 = vpop.permute.xlu0 %1856
  %1858 = vrot.lane.b32.xlu0 %v976, 56
  %v1859 = vpop.permute.xlu0 %1858
  %1860 = vrot.lane.b32.xlu0 %v977, 56
  %v1861 = vpop.permute.xlu0 %1860
  %1862 = vrot.lane.b32.xlu0 %v978, 56
  %v1863 = vpop.permute.xlu0 %1862
  %1864 = vrot.lane.b32.xlu0 %v979, 56
  %v1865 = vpop.permute.xlu0 %1864
  %1866 = vrot.lane.b32.xlu0 %v980, 56
  %v1867 = vpop.permute.xlu0 %1866
  %1868 = vrot.lane.b32.xlu0 %v981, 56
  %v1869 = vpop.permute.xlu0 %1868
  %1870 = vrot.lane.b32.xlu0 %v982, 56
  %v1871 = vpop.permute.xlu0 %1870
  %1872 = vrot.lane.b32.xlu0 %v983, 56
  %v1873 = vpop.permute.xlu0 %1872
  %1874 = vrot.lane.b32.xlu0 %v984, 56
  %v1875 = vpop.permute.xlu0 %1874
  %1876 = vrot.lane.b32.xlu0 %v985, 56
  %v1877 = vpop.permute.xlu0 %1876
  %1878 = vrot.lane.b32.xlu0 %v986, 56
  %v1879 = vpop.permute.xlu0 %1878
  %1880 = vrot.lane.b32.xlu0 %v987, 56
  %v1881 = vpop.permute.xlu0 %1880
  %1882 = vrot.lane.b32.xlu0 %v988, 56
  %v1883 = vpop.permute.xlu0 %1882
  %1884 = vrot.lane.b32.xlu0 %v989, 56
  %v1885 = vpop.permute.xlu0 %1884
  %1918 = vrot.lane.b32.xlu0 %v990, 60
  %v1919 = vpop.permute.xlu0 %1918
  %1920 = vrot.lane.b32.xlu0 %v991, 60
  %v1921 = vpop.permute.xlu0 %1920
  %1922 = vrot.lane.b32.xlu0 %v992, 60
  %v1923 = vpop.permute.xlu0 %1922
  %1924 = vrot.lane.b32.xlu0 %v993, 60
  %v1925 = vpop.permute.xlu0 %1924
  %1926 = vrot.lane.b32.xlu0 %v994, 60
  %v1927 = vpop.permute.xlu0 %1926
  %1928 = vrot.lane.b32.xlu0 %v995, 60
  %v1929 = vpop.permute.xlu0 %1928
  %1930 = vrot.lane.b32.xlu0 %v996, 60
  %v1931 = vpop.permute.xlu0 %1930
  %1932 = vrot.lane.b32.xlu0 %v997, 60
  %v1933 = vpop.permute.xlu0 %1932
  %1934 = vrot.lane.b32.xlu0 %v998, 60
  %v1935 = vpop.permute.xlu0 %1934
  %1936 = vrot.lane.b32.xlu0 %v999, 60
  %v1937 = vpop.permute.xlu0 %1936
  %1938 = vrot.lane.b32.xlu0 %v1000, 60
  %v1939 = vpop.permute.xlu0 %1938
  %1940 = vrot.lane.b32.xlu0 %v1001, 60
  %v1941 = vpop.permute.xlu0 %1940
  %1942 = vrot.lane.b32.xlu0 %v1002, 60
  %v1943 = vpop.permute.xlu0 %1942
  %1944 = vrot.lane.b32.xlu0 %v1003, 60
  %v1945 = vpop.permute.xlu0 %1944
  %1946 = vrot.lane.b32.xlu0 %v1004, 60
  %v1947 = vpop.permute.xlu0 %1946
  %1948 = vrot.lane.b32.xlu0 %v1005, 60
  %v1949 = vpop.permute.xlu0 %1948
  %v1966 = vsel %vm597, %v743, %v1023
  %v1967 = vsel %vm597, %v744, %v1025
  %v1968 = vsel %vm597, %v745, %v1027
  %v1969 = vsel %vm597, %v746, %v1029
  %v1970 = vsel %vm597, %v747, %v1031
  %v1971 = vsel %vm597, %v748, %v1033
  %v1972 = vsel %vm597, %v749, %v1035
  %v1973 = vsel %vm597, %v750, %v1037
  %v1974 = vsel %vm597, %v751, %v1039
  %v1975 = vsel %vm597, %v752, %v1041
  %v1976 = vsel %vm597, %v753, %v1043
  %v1977 = vsel %vm597, %v754, %v1045
  %v1978 = vsel %vm597, %v755, %v1047
  %v1979 = vsel %vm597, %v756, %v1049
  %v1980 = vsel %vm597, %v757, %v1051
  %v1981 = vsel %vm597, %v758, %v1053
  %vm1982 = vcmask 64512
  %v1983 = vsel %vm1982, %v1966, %v1087
  %v1984 = vsel %vm1982, %v1967, %v1089
  %v1985 = vsel %vm1982, %v1968, %v1091
  %v1986 = vsel %vm1982, %v1969, %v1093
  %v1987 = vsel %vm1982, %v1970, %v1095
  %v1988 = vsel %vm1982, %v1971, %v1097
  %v1989 = vsel %vm1982, %v1972, %v1099
  %v1990 = vsel %vm1982, %v1973, %v1101
  %v1991 = vsel %vm1982, %v1974, %v1103
  %v1992 = vsel %vm1982, %v1975, %v1105
  %v1993 = vsel %vm1982, %v1976, %v1107
  %v1994 = vsel %vm1982, %v1977, %v1109
  %v1995 = vsel %vm1982, %v1978, %v1111
  %v1996 = vsel %vm1982, %v1979, %v1113
  %v1997 = vsel %vm1982, %v1980, %v1115
  %v1998 = vsel %vm1982, %v1981, %v1117
  %vm1999 = vcmask 97280
  %v2000 = vsel %vm1999, %v1983, %v1151
  %v2001 = vsel %vm1999, %v1984, %v1153
  %v2002 = vsel %vm1999, %v1985, %v1155
  %v2003 = vsel %vm1999, %v1986, %v1157
  %v2004 = vsel %vm1999, %v1987, %v1159
  %v2005 = vsel %vm1999, %v1988, %v1161
  %v2006 = vsel %vm1999, %v1989, %v1163
  %v2007 = vsel %vm1999, %v1990, %v1165
  %v2008 = vsel %vm1999, %v1991, %v1167
  %v2009 = vsel %vm1999, %v1992, %v1169
  %v2010 = vsel %vm1999, %v1993, %v1171
  %v2011 = vsel %vm1999, %v1994, %v1173
  %v2012 = vsel %vm1999, %v1995, %v1175
  %v2013 = vsel %vm1999, %v1996, %v1177
  %v2014 = vsel %vm1999, %v1997, %v1179
  %v2015 = vsel %vm1999, %v1998, %v1181
  %vm2016 = vcmask 130048
  %v2017 = vsel %vm2016, %v2000, %v1215
  %v2018 = vsel %vm2016, %v2001, %v1217
  %v2019 = vsel %vm2016, %v2002, %v1219
  %v2020 = vsel %vm2016, %v2003, %v1221
  %v2021 = vsel %vm2016, %v2004, %v1223
  %v2022 = vsel %vm2016, %v2005, %v1225
  %v2023 = vsel %vm2016, %v2006, %v1227
  %v2024 = vsel %vm2016, %v2007, %v1229
  %v2025 = vsel %vm2016, %v2008, %v1231
  %v2026 = vsel %vm2016, %v2009, %v1233
  %v2027 = vsel %vm2016, %v2010, %v1235
  %v2028 = vsel %vm2016, %v2011, %v1237
  %v2029 = vsel %vm2016, %v2012, %v1239
  %v2030 = vsel %vm2016, %v2013, %v1241
  %v2031 = vsel %vm2016, %v2014, %v1243
  %v2032 = vsel %vm2016, %v2015, %v1245
  %vm2033 = vcmask 162816
  %v2034 = vsel %vm2033, %v2017, %v1279
  %v2035 = vsel %vm2033, %v2018, %v1281
  %v2036 = vsel %vm2033, %v2019, %v1283
  %v2037 = vsel %vm2033, %v2020, %v1285
  %v2038 = vsel %vm2033, %v2021, %v1287
  %v2039 = vsel %vm2033, %v2022, %v1289
  %v2040 = vsel %vm2033, %v2023, %v1291
  %v2041 = vsel %vm2033, %v2024, %v1293
  %v2042 = vsel %vm2033, %v2025, %v1295
  %v2043 = vsel %vm2033, %v2026, %v1297
  %v2044 = vsel %vm2033, %v2027, %v1299
  %v2045 = vsel %vm2033, %v2028, %v1301
  %v2046 = vsel %vm2033, %v2029, %v1303
  %v2047 = vsel %vm2033, %v2030, %v1305
  %v2048 = vsel %vm2033, %v2031, %v1307
  %v2049 = vsel %vm2033, %v2032, %v1309
  %vm2050 = vcmask 195584
  %v2051 = vsel %vm2050, %v2034, %v1343
  %v2052 = vsel %vm2050, %v2035, %v1345
  %v2053 = vsel %vm2050, %v2036, %v1347
  %v2054 = vsel %vm2050, %v2037, %v1349
  %v2055 = vsel %vm2050, %v2038, %v1351
  %v2056 = vsel %vm2050, %v2039, %v1353
  %v2057 = vsel %vm2050, %v2040, %v1355
  %v2058 = vsel %vm2050, %v2041, %v1357
  %v2059 = vsel %vm2050, %v2042, %v1359
  %v2060 = vsel %vm2050, %v2043, %v1361
  %v2061 = vsel %vm2050, %v2044, %v1363
  %v2062 = vsel %vm2050, %v2045, %v1365
  %v2063 = vsel %vm2050, %v2046, %v1367
  %v2064 = vsel %vm2050, %v2047, %v1369
  %v2065 = vsel %vm2050, %v2048, %v1371
  %v2066 = vsel %vm2050, %v2049, %v1373
  %vm2067 = vcmask 228352
  %v2068 = vsel %vm2067, %v2051, %v1407
  %v2069 = vsel %vm2067, %v2052, %v1409
  %v2070 = vsel %vm2067, %v2053, %v1411
  %v2071 = vsel %vm2067, %v2054, %v1413
  %v2072 = vsel %vm2067, %v2055, %v1415
  %v2073 = vsel %vm2067, %v2056, %v1417
  %v2074 = vsel %vm2067, %v2057, %v1419
  %v2075 = vsel %vm2067, %v2058, %v1421
  %v2076 = vsel %vm2067, %v2059, %v1423
  %v2077 = vsel %vm2067, %v2060, %v1425
  %v2078 = vsel %vm2067, %v2061, %v1427
  %v2079 = vsel %vm2067, %v2062, %v1429
  %v2080 = vsel %vm2067, %v2063, %v1431
  %v2081 = vsel %vm2067, %v2064, %v1433
  %v2082 = vsel %vm2067, %v2065, %v1435
  %v2083 = vsel %vm2067, %v2066, %v1437
  %vm2084 = vcmask 261120
  %v2085 = vsel %vm2084, %v2068, %v1471
  %v2086 = vsel %vm2084, %v2069, %v1473
  %v2087 = vsel %vm2084, %v2070, %v1475
  %v2088 = vsel %vm2084, %v2071, %v1477
  %v2089 = vsel %vm2084, %v2072, %v1479
  %v2090 = vsel %vm2084, %v2073, %v1481
  %v2091 = vsel %vm2084, %v2074, %v1483
  %v2092 = vsel %vm2084, %v2075, %v1485
  %v2093 = vsel %vm2084, %v2076, %v1487
  %v2094 = vsel %vm2084, %v2077, %v1489
  %v2095 = vsel %vm2084, %v2078, %v1491
  %v2096 = vsel %vm2084, %v2079, %v1493
  %v2097 = vsel %vm2084, %v2080, %v1495
  %v2098 = vsel %vm2084, %v2081, %v1497
  %v2099 = vsel %vm2084, %v2082, %v1499
  %v2100 = vsel %vm2084, %v2083, %v1501
  %vm2101 = vcmask 293888
  %v2102 = vsel %vm2101, %v2085, %v1535
  %v2103 = vsel %vm2101, %v2086, %v1537
  %v2104 = vsel %vm2101, %v2087, %v1539
  %v2105 = vsel %vm2101, %v2088, %v1541
  %v2106 = vsel %vm2101, %v2089, %v1543
  %v2107 = vsel %vm2101, %v2090, %v1545
  %v2108 = vsel %vm2101, %v2091, %v1547
  %v2109 = vsel %vm2101, %v2092, %v1549
  %v2110 = vsel %vm2101, %v2093, %v1551
  %v2111 = vsel %vm2101, %v2094, %v1553
  %v2112 = vsel %vm2101, %v2095, %v1555
  %v2113 = vsel %vm2101, %v2096, %v1557
  %v2114 = vsel %vm2101, %v2097, %v1559
  %v2115 = vsel %vm2101, %v2098, %v1561
  %v2116 = vsel %vm2101, %v2099, %v1563
  %v2117 = vsel %vm2101, %v2100, %v1565
  %vm2118 = vcmask 326656
  %v2119 = vsel %vm2118, %v2102, %v1599
  %v2120 = vsel %vm2118, %v2103, %v1601
  %v2121 = vsel %vm2118, %v2104, %v1603
  %v2122 = vsel %vm2118, %v2105, %v1605
  %v2123 = vsel %vm2118, %v2106, %v1607
  %v2124 = vsel %vm2118, %v2107, %v1609
  %v2125 = vsel %vm2118, %v2108, %v1611
  %v2126 = vsel %vm2118, %v2109, %v1613
  %v2127 = vsel %vm2118, %v2110, %v1615
  %v2128 = vsel %vm2118, %v2111, %v1617
  %v2129 = vsel %vm2118, %v2112, %v1619
  %v2130 = vsel %vm2118, %v2113, %v1621
  %v2131 = vsel %vm2118, %v2114, %v1623
  %v2132 = vsel %vm2118, %v2115, %v1625
  %v2133 = vsel %vm2118, %v2116, %v1627
  %v2134 = vsel %vm2118, %v2117, %v1629
  %vm2135 = vcmask 359424
  %v2136 = vsel %vm2135, %v2119, %v1663
  %v2137 = vsel %vm2135, %v2120, %v1665
  %v2138 = vsel %vm2135, %v2121, %v1667
  %v2139 = vsel %vm2135, %v2122, %v1669
  %v2140 = vsel %vm2135, %v2123, %v1671
  %v2141 = vsel %vm2135, %v2124, %v1673
  %v2142 = vsel %vm2135, %v2125, %v1675
  %v2143 = vsel %vm2135, %v2126, %v1677
  %v2144 = vsel %vm2135, %v2127, %v1679
  %v2145 = vsel %vm2135, %v2128, %v1681
  %v2146 = vsel %vm2135, %v2129, %v1683
  %v2147 = vsel %vm2135, %v2130, %v1685
  %v2148 = vsel %vm2135, %v2131, %v1687
  %v2149 = vsel %vm2135, %v2132, %v1689
  %v2150 = vsel %vm2135, %v2133, %v1691
  %v2151 = vsel %vm2135, %v2134, %v1693
  %vm2152 = vcmask 392192
  %v2153 = vsel %vm2152, %v2136, %v1727
  %v2154 = vsel %vm2152, %v2137, %v1729
  %v2155 = vsel %vm2152, %v2138, %v1731
  %v2156 = vsel %vm2152, %v2139, %v1733
  %v2157 = vsel %vm2152, %v2140, %v1735
  %v2158 = vsel %vm2152, %v2141, %v1737
  %v2159 = vsel %vm2152, %v2142, %v1739
  %v2160 = vsel %vm2152, %v2143, %v1741
  %v2161 = vsel %vm2152, %v2144, %v1743
  %v2162 = vsel %vm2152, %v2145, %v1745
  %v2163 = vsel %vm2152, %v2146, %v1747
  %v2164 = vsel %vm2152, %v2147, %v1749
  %v2165 = vsel %vm2152, %v2148, %v1751
  %v2166 = vsel %vm2152, %v2149, %v1753
  %v2167 = vsel %vm2152, %v2150, %v1755
  %v2168 = vsel %vm2152, %v2151, %v1757
  %vm2169 = vcmask 424960
  %v2170 = vsel %vm2169, %v2153, %v1791
  %v2171 = vsel %vm2169, %v2154, %v1793
  %v2172 = vsel %vm2169, %v2155, %v1795
  %v2173 = vsel %vm2169, %v2156, %v1797
  %v2174 = vsel %vm2169, %v2157, %v1799
  %v2175 = vsel %vm2169, %v2158, %v1801
  %v2176 = vsel %vm2169, %v2159, %v1803
  %v2177 = vsel %vm2169, %v2160, %v1805
  %v2178 = vsel %vm2169, %v2161, %v1807
  %v2179 = vsel %vm2169, %v2162, %v1809
  %v2180 = vsel %vm2169, %v2163, %v1811
  %v2181 = vsel %vm2169, %v2164, %v1813
  %v2182 = vsel %vm2169, %v2165, %v1815
  %v2183 = vsel %vm2169, %v2166, %v1817
  %v2184 = vsel %vm2169, %v2167, %v1819
  %v2185 = vsel %vm2169, %v2168, %v1821
  %vm2186 = vcmask 457728
  %v2187 = vsel %vm2186, %v2170, %v1855
  %v2188 = vsel %vm2186, %v2171, %v1857
  %v2189 = vsel %vm2186, %v2172, %v1859
  %v2190 = vsel %vm2186, %v2173, %v1861
  %v2191 = vsel %vm2186, %v2174, %v1863
  %v2192 = vsel %vm2186, %v2175, %v1865
  %v2193 = vsel %vm2186, %v2176, %v1867
  %v2194 = vsel %vm2186, %v2177, %v1869
  %v2195 = vsel %vm2186, %v2178, %v1871
  %v2196 = vsel %vm2186, %v2179, %v1873
  %v2197 = vsel %vm2186, %v2180, %v1875
  %v2198 = vsel %vm2186, %v2181, %v1877
  %v2199 = vsel %vm2186, %v2182, %v1879
  %v2200 = vsel %vm2186, %v2183, %v1881
  %v2201 = vsel %vm2186, %v2184, %v1883
  %v2202 = vsel %vm2186, %v2185, %v1885
  %vm2203 = vcmask 490496
  %v2204 = vsel %vm2203, %v2187, %v1919
  %v2205 = vsel %vm2203, %v2188, %v1921
  %v2206 = vsel %vm2203, %v2189, %v1923
  %v2207 = vsel %vm2203, %v2190, %v1925
  %v2208 = vsel %vm2203, %v2191, %v1927
  %v2209 = vsel %vm2203, %v2192, %v1929
  %v2210 = vsel %vm2203, %v2193, %v1931
  %v2211 = vsel %vm2203, %v2194, %v1933
  %v2212 = vsel %vm2203, %v2195, %v1935
  %v2213 = vsel %vm2203, %v2196, %v1937
  %v2214 = vsel %vm2203, %v2197, %v1939
  %v2215 = vsel %vm2203, %v2198, %v1941
  %v2216 = vsel %vm2203, %v2199, %v1943
  %v2217 = vsel %vm2203, %v2200, %v1945
  %v2218 = vsel %vm2203, %v2201, %v1947
  %v2219 = vsel %vm2203, %v2202, %v1949
  %v2220 = vpack.c.bf16 %v2205, %v2204
  %v2221 = vpack.c.bf16 %v2207, %v2206
  %v2222 = vpack.c.bf16 %v2209, %v2208
  %v2223 = vpack.c.bf16 %v2211, %v2210
  %v2224 = vpack.c.bf16 %v2213, %v2212
  %v2225 = vpack.c.bf16 %v2215, %v2214
  %v2226 = vpack.c.bf16 %v2217, %v2216
  %v2227 = vpack.c.bf16 %v2219, %v2218
  %v2228 = vld [vmem:[%s1] sm:$0xf]
  %v2229 = vld [vmem:[%s1 + $0x4] sm:$0xf]
  %v2230 = vld [vmem:[%s1 + $0x8] sm:$0xf]
  %v2231 = vld [vmem:[%s1 + $0xc] sm:$0xf]
  %v2232 = vld [vmem:[%s1 + $0x10] sm:$0xf]
  %v2233 = vld [vmem:[%s1 + $0x14] sm:$0xf]
  %v2234 = vld [vmem:[%s1 + $0x18] sm:$0xf]
  %v2235 = vld [vmem:[%s1 + $0x1c] sm:$0xf]
  %v2244 = vunpack.c.l.b16 %v2228
  %v2245 = vunpack.c.l.b16 %v2229
  %v2246 = vunpack.c.l.b16 %v2230
  %v2247 = vunpack.c.l.b16 %v2231
  %v2248 = vunpack.c.l.b16 %v2232
  %v2249 = vunpack.c.l.b16 %v2233
  %v2250 = vunpack.c.l.b16 %v2234
  %v2251 = vunpack.c.l.b16 %v2235
  %v2252 = vpack.c.b16 %v2245, %v2244
  %v2253 = vpack.c.b16 %v2247, %v2246
  %v2254 = vpack.c.b16 %v2249, %v2248
  %v2255 = vpack.c.b16 %v2251, %v2250
  %vm2260 = vcmask 523264
  %v2262 = vsel %vm2260, %v2220, 0
  %v2265 = vsel %vm2260, %v2221, 0
  %v2268 = vsel %vm2260, %v2222, 0
  %v2271 = vsel %vm2260, %v2223, 0
  %v2274 = vsel %vm2260, %v2224, 0
  %v2277 = vsel %vm2260, %v2225, 0
  %v2280 = vsel %vm2260, %v2226, 0
  %v2283 = vsel %vm2260, %v2227, 0
  %2285 = vmatprep.subr.bf16.mxu0 0
  %2286 = vmatpush1.bf16.msra.mxu0 %v2252
  %2287 = vmatprep.subr.bf16.mxu0 0
  %2288 = vmatpush1.bf16.msra.mxu0 %v2253
  %2289 = vmatprep.subr.bf16.mxu0 0
  %2290 = vmatpush1.bf16.msra.mxu0 %v2254
  %2291 = vmatprep.subr.bf16.mxu0 0
  %2292 = vmatpush1.bf16.msra.mxu0 %v2255
  %2293 = vmatprep.subr.bf16.mxu0 0
  %2294 = vmatpush1.bf16.msra.mxu0 0
  %2295 = vmatprep.subr.bf16.mxu0 0
  %2296 = vmatpush1.bf16.msra.mxu0 0
  %2297 = vmatprep.subr.bf16.mxu0 0
  %2298 = vmatpush1.bf16.msra.mxu0 0
  %2299 = vmatprep.subr.bf16.mxu0 0
  %2300 = vmatpush1.bf16.msra.mxu0 0
  %2301 = vmatprep.subr.bf16.mxu0 0
  %2302 = vmatpush1.bf16.msra.mxu0 0
  %2303 = vmatprep.subr.bf16.mxu0 0
  %2304 = vmatpush1.bf16.msra.mxu0 0
  %2305 = vmatprep.subr.bf16.mxu0 0
  %2306 = vmatpush1.bf16.msra.mxu0 0
  %2307 = vmatprep.subr.bf16.mxu0 0
  %2308 = vmatpush1.bf16.msra.mxu0 0
  %2309 = vmatprep.subr.bf16.mxu0 0
  %2310 = vmatpush1.bf16.msra.mxu0 0
  %2311 = vmatprep.subr.bf16.mxu0 0
  %2312 = vmatpush1.bf16.msra.mxu0 0
  %2313 = vmatprep.subr.bf16.mxu0 0
  %2314 = vmatpush1.bf16.msra.mxu0 0
  %2315 = vmatprep.subr.bf16.mxu0 0
  %2316 = vmatpush1.bf16.msra.mxu0 0
  %2317 = vmatprep.mubr.bf16.mxu0 0
  %2318 = vmatmul.mubr.bf16.gmra.mrb[0].mxu0 %v2262
  %v2319 = vpop.f32.mrb[0].mxu0
  %v2320 = vadd.f32 0.0, %v2319
  %v2321 = vpop.f32.mrb[0].mxu0
  %v2322 = vpop.f32.mrb[0].mxu0
  %v2323 = vadd.f32 0.0, %v2322
  %v2324 = vpop.f32.mrb[0].mxu0
  %2325 = vmatprep.mubr.bf16.mxu0 0
  %2326 = vmatmul.mubr.bf16.gmra.mrb[0].mxu0 %v2265
  %v2327 = vpop.f32.mrb[0].mxu0
  %v2328 = vadd.f32 0.0, %v2327
  %v2329 = vpop.f32.mrb[0].mxu0
  %v2330 = vpop.f32.mrb[0].mxu0
  %v2331 = vadd.f32 0.0, %v2330
  %v2332 = vpop.f32.mrb[0].mxu0
  %2333 = vmatprep.mubr.bf16.mxu0 0
  %2334 = vmatmul.mubr.bf16.gmra.mrb[0].mxu0 %v2268
  %v2335 = vpop.f32.mrb[0].mxu0
  %v2336 = vadd.f32 0.0, %v2335
  %v2337 = vpop.f32.mrb[0].mxu0
  %v2338 = vpop.f32.mrb[0].mxu0
  %v2339 = vadd.f32 0.0, %v2338
  %v2340 = vpop.f32.mrb[0].mxu0
  %2341 = vmatprep.mubr.bf16.mxu0 0
  %2342 = vmatmul.mubr.bf16.gmra.mrb[0].mxu0 %v2271
  %v2343 = vpop.f32.mrb[0].mxu0
  %v2344 = vadd.f32 0.0, %v2343
  %v2345 = vpop.f32.mrb[0].mxu0
  %v2346 = vpop.f32.mrb[0].mxu0
  %v2347 = vadd.f32 0.0, %v2346
  %v2348 = vpop.f32.mrb[0].mxu0
  %2349 = vmatprep.mubr.bf16.mxu0 0
  %2350 = vmatmul.mubr.bf16.gmra.mrb[0].mxu0 %v2274
  %v2351 = vpop.f32.mrb[0].mxu0
  %v2352 = vadd.f32 0.0, %v2351
  %v2353 = vpop.f32.mrb[0].mxu0
  %v2354 = vpop.f32.mrb[0].mxu0
  %v2355 = vadd.f32 0.0, %v2354
  %v2356 = vpop.f32.mrb[0].mxu0
  %2357 = vmatprep.mubr.bf16.mxu0 0
  %2358 = vmatmul.mubr.bf16.gmra.mrb[0].mxu0 %v2277
  %v2359 = vpop.f32.mrb[0].mxu0
  %v2360 = vadd.f32 0.0, %v2359
  %v2361 = vpop.f32.mrb[0].mxu0
  %v2362 = vpop.f32.mrb[0].mxu0
  %v2363 = vadd.f32 0.0, %v2362
  %v2364 = vpop.f32.mrb[0].mxu0
  %2365 = vmatprep.mubr.bf16.mxu0 0
  %2366 = vmatmul.mubr.bf16.gmra.mrb[0].mxu0 %v2280
  %v2367 = vpop.f32.mrb[0].mxu0
  %v2368 = vadd.f32 0.0, %v2367
  %v2369 = vpop.f32.mrb[0].mxu0
  %v2370 = vpop.f32.mrb[0].mxu0
  %v2371 = vadd.f32 0.0, %v2370
  %v2372 = vpop.f32.mrb[0].mxu0
  %2373 = vmatprep.mubr.bf16.mxu0 0
  %2374 = vmatmul.mubr.bf16.gmra.mrb[0].mxu0 %v2283
  %v2375 = vpop.f32.mrb[0].mxu0
  %v2376 = vadd.f32 0.0, %v2375
  %v2377 = vpop.f32.mrb[0].mxu0
  %v2378 = vpop.f32.mrb[0].mxu0
  %v2379 = vadd.f32 0.0, %v2378
  %v2380 = vpop.f32.mrb[0].mxu0
  %2381 = vdwg.mxu0
  %v2382 = vmax.f32 %v2320, 0.0
  %v2383 = vmax.f32 %v2323, 0.0
  %v2384 = vmax.f32 %v2328, 0.0
  %v2385 = vmax.f32 %v2331, 0.0
  %v2386 = vmax.f32 %v2336, 0.0
  %v2387 = vmax.f32 %v2339, 0.0
  %v2388 = vmax.f32 %v2344, 0.0
  %v2389 = vmax.f32 %v2347, 0.0
  %v2390 = vmax.f32 %v2352, 0.0
  %v2391 = vmax.f32 %v2355, 0.0
  %v2392 = vmax.f32 %v2360, 0.0
  %v2393 = vmax.f32 %v2363, 0.0
  %v2394 = vmax.f32 %v2368, 0.0
  %v2395 = vmax.f32 %v2371, 0.0
  %v2396 = vmax.f32 %v2376, 0.0
  %v2397 = vmax.f32 %v2379, 0.0
  %s2398 = scalar_lea.vmem [#allocation3], 16
  %2399 = vst.msk [vmem:[%s2398 + $0x1] sm:$0xff] %vm1982, %v2382
  %2400 = vst.msk [vmem:[%s2398 + $0x11] sm:$0xff] %vm1982, %v2383
  %2401 = vst.msk [vmem:[%s2398 + $0x21] sm:$0xff] %vm1982, %v2384
  %2402 = vst.msk [vmem:[%s2398 + $0x31] sm:$0xff] %vm1982, %v2385
  %2403 = vst.msk [vmem:[%s2398 + $0x41] sm:$0xff] %vm1982, %v2386
  %2404 = vst.msk [vmem:[%s2398 + $0x51] sm:$0xff] %vm1982, %v2387
  %2405 = vst.msk [vmem:[%s2398 + $0x61] sm:$0xff] %vm1982, %v2388
  %2406 = vst.msk [vmem:[%s2398 + $0x71] sm:$0xff] %vm1982, %v2389
  %2407 = vst.msk [vmem:[%s2398 + $0xa1] sm:$0xff] %vm1982, %v2390
  %2408 = vst.msk [vmem:[%s2398 + $0xb1] sm:$0xff] %vm1982, %v2391
  %2409 = vst.msk [vmem:[%s2398 + $0xc1] sm:$0xff] %vm1982, %v2392
  %2410 = vst.msk [vmem:[%s2398 + $0xd1] sm:$0xff] %vm1982, %v2393
  %2411 = vst.msk [vmem:[%s2398 + $0xe1] sm:$0xff] %vm1982, %v2394
  %2412 = vst.msk [vmem:[%s2398 + $0xf1] sm:$0xff] %vm1982, %v2395
  %2413 = vst.msk [vmem:[%s2398 + $0x101] sm:$0xff] %vm1982, %v2396
  %2414 = vst.msk [vmem:[%s2398 + $0x111] sm:$0xff] %vm1982, %v2397
  %2415 = vst.msk [vmem:[#allocation3] sm:$0xff] %vm1982, 0.0
  %vm2416 = vcmask 58368
  %2417 = vst.msk [vmem:[#allocation3 + $0x8] sm:$0x3] %vm2416, 0.0
  %2418 = vst.msk [vmem:[#allocation3 + $0xa0] sm:$0xff] %vm1982, 0.0
  %2419 = vst.msk [vmem:[#allocation3 + $0xa8] sm:$0x3] %vm2416, 0.0
  %s2420 = scalar_lea.vmem [#allocation3], 144
  %2421 = vst.msk [vmem:[%s2420] sm:$0xff] %vm1982, 0.0
  %2422 = vst.msk [vmem:[%s2420 + $0x8] sm:$0x3] %vm2416, 0.0
  %2423 = vst.msk [vmem:[%s2420 + $0xa0] sm:$0xff] %vm1982, 0.0
  %2424 = vst.msk [vmem:[%s2420 + $0xa8] sm:$0x3] %vm2416, 0.0
  %vm2425 = vcmask 57344
  %2426 = vst.msk [vmem:[#allocation3] sm:$0x1] %vm2425, 0.0
  %2427 = vst.msk [vmem:[#allocation3 + $0x10] sm:$0x1] %vm2425, 0.0
  %2428 = vst.msk [vmem:[#allocation3 + $0x20] sm:$0x1] %vm2425, 0.0
  %2429 = vst.msk [vmem:[#allocation3 + $0x30] sm:$0x1] %vm2425, 0.0
  %2430 = vst.msk [vmem:[#allocation3 + $0x40] sm:$0x1] %vm2425, 0.0
  %2431 = vst.msk [vmem:[#allocation3 + $0x50] sm:$0x1] %vm2425, 0.0
  %2432 = vst.msk [vmem:[#allocation3 + $0x60] sm:$0x1] %vm2425, 0.0
  %2433 = vst.msk [vmem:[#allocation3 + $0x70] sm:$0x1] %vm2425, 0.0
  %2434 = vst.msk [vmem:[#allocation3 + $0x80] sm:$0x1] %vm2425, 0.0
  %2435 = vst.msk [vmem:[#allocation3 + $0x90] sm:$0x1] %vm2425, 0.0
  %2436 = vst.msk [vmem:[#allocation3 + $0xa0] sm:$0x1] %vm2425, 0.0
  %2437 = vst.msk [vmem:[#allocation3 + $0xb0] sm:$0x1] %vm2425, 0.0
  %2438 = vst.msk [vmem:[#allocation3 + $0xc0] sm:$0x1] %vm2425, 0.0
  %2439 = vst.msk [vmem:[#allocation3 + $0xd0] sm:$0x1] %vm2425, 0.0
  %2440 = vst.msk [vmem:[#allocation3 + $0xe0] sm:$0x1] %vm2425, 0.0
  %2441 = vst.msk [vmem:[#allocation3 + $0xf0] sm:$0x1] %vm2425, 0.0
  %2442 = vst.msk [vmem:[#allocation3 + $0x100] sm:$0x1] %vm2425, 0.0
  %2443 = vst.msk [vmem:[#allocation3 + $0x110] sm:$0x1] %vm2425, 0.0
  %2444 = vst.msk [vmem:[#allocation3 + $0x120] sm:$0x1] %vm2425, 0.0
  %2445 = vst.msk [vmem:[#allocation3 + $0x130] sm:$0x1] %vm2425, 0.0
  %2446 = vst.msk [vmem:[#allocation3 + $0x9] sm:$0x1] %vm2425, 0.0
  %2447 = vst.msk [vmem:[#allocation3 + $0x19] sm:$0x1] %vm2425, 0.0
  %2448 = vst.msk [vmem:[#allocation3 + $0x29] sm:$0x1] %vm2425, 0.0
  %2449 = vst.msk [vmem:[#allocation3 + $0x39] sm:$0x1] %vm2425, 0.0
  %2450 = vst.msk [vmem:[#allocation3 + $0x49] sm:$0x1] %vm2425, 0.0
  %2451 = vst.msk [vmem:[#allocation3 + $0x59] sm:$0x1] %vm2425, 0.0
  %2452 = vst.msk [vmem:[#allocation3 + $0x69] sm:$0x1] %vm2425, 0.0
  %2453 = vst.msk [vmem:[#allocation3 + $0x79] sm:$0x1] %vm2425, 0.0
  %2454 = vst.msk [vmem:[#allocation3 + $0x89] sm:$0x1] %vm2425, 0.0
  %2455 = vst.msk [vmem:[#allocation3 + $0x99] sm:$0x1] %vm2425, 0.0
  %2456 = vst.msk [vmem:[#allocation3 + $0xa9] sm:$0x1] %vm2425, 0.0
  %2457 = vst.msk [vmem:[#allocation3 + $0xb9] sm:$0x1] %vm2425, 0.0
  %2458 = vst.msk [vmem:[#allocation3 + $0xc9] sm:$0x1] %vm2425, 0.0
  %2459 = vst.msk [vmem:[#allocation3 + $0xd9] sm:$0x1] %vm2425, 0.0
  %2460 = vst.msk [vmem:[#allocation3 + $0xe9] sm:$0x1] %vm2425, 0.0
  %2461 = vst.msk [vmem:[#allocation3 + $0xf9] sm:$0x1] %vm2425, 0.0
  %2462 = vst.msk [vmem:[#allocation3 + $0x109] sm:$0x1] %vm2425, 0.0
  %2463 = vst.msk [vmem:[#allocation3 + $0x119] sm:$0x1] %vm2425, 0.0
  %2464 = vst.msk [vmem:[#allocation3 + $0x129] sm:$0x1] %vm2425, 0.0
  %2465 = vst.msk [vmem:[#allocation3 + $0x139] sm:$0x1] %vm2425, 0.0
  %v2466 = vld [vmem:[#allocation3] sm:$0xff]
  %v2467 = vld [vmem:[#allocation3 + $0x10] sm:$0xff]
  %v2468 = vld [vmem:[#allocation3 + $0x20] sm:$0xff]
  %v2469 = vld [vmem:[#allocation3 + $0x30] sm:$0xff]
  %v2470 = vld [vmem:[#allocation3 + $0x40] sm:$0xff]
  %v2471 = vld [vmem:[#allocation3 + $0x50] sm:$0xff]
  %v2472 = vld [vmem:[#allocation3 + $0x60] sm:$0xff]
  %v2473 = vld [vmem:[#allocation3 + $0x70] sm:$0xff]
  %v2474 = vld [vmem:[#allocation3 + $0xa0] sm:$0xff]
  %v2475 = vld [vmem:[#allocation3 + $0xb0] sm:$0xff]
  %v2476 = vld [vmem:[#allocation3 + $0xc0] sm:$0xff]
  %v2477 = vld [vmem:[#allocation3 + $0xd0] sm:$0xff]
  %v2478 = vld [vmem:[#allocation3 + $0xe0] sm:$0xff]
  %v2479 = vld [vmem:[#allocation3 + $0xf0] sm:$0xff]
  %v2480 = vld [vmem:[#allocation3 + $0x100] sm:$0xff]
  %v2481 = vld [vmem:[#allocation3 + $0x110] sm:$0xff]
  %v2482 = vld [vmem:[#allocation3 + $0x1] sm:$0xff]
  %v2483 = vld [vmem:[#allocation3 + $0x11] sm:$0xff]
  %v2484 = vld [vmem:[#allocation3 + $0x21] sm:$0xff]
  %v2485 = vld [vmem:[#allocation3 + $0x31] sm:$0xff]
  %v2486 = vld [vmem:[#allocation3 + $0x41] sm:$0xff]
  %v2487 = vld [vmem:[#allocation3 + $0x51] sm:$0xff]
  %v2488 = vld [vmem:[#allocation3 + $0x61] sm:$0xff]
  %v2489 = vld [vmem:[#allocation3 + $0x71] sm:$0xff]
  %v2490 = vld [vmem:[#allocation3 + $0xa1] sm:$0xff]
  %v2491 = vld [vmem:[#allocation3 + $0xb1] sm:$0xff]
  %v2492 = vld [vmem:[#allocation3 + $0xc1] sm:$0xff]
  %v2493 = vld [vmem:[#allocation3 + $0xd1] sm:$0xff]
  %v2494 = vld [vmem:[#allocation3 + $0xe1] sm:$0xff]
  %v2495 = vld [vmem:[#allocation3 + $0xf1] sm:$0xff]
  %v2496 = vld [vmem:[#allocation3 + $0x101] sm:$0xff]
  %v2497 = vld [vmem:[#allocation3 + $0x111] sm:$0xff]
  %v2498 = vld [vmem:[%s2398] sm:$0xff]
  %v2499 = vld [vmem:[%s2398 + $0x10] sm:$0xff]
  %v2500 = vld [vmem:[%s2398 + $0x20] sm:$0xff]
  %v2501 = vld [vmem:[%s2398 + $0x30] sm:$0xff]
  %v2502 = vld [vmem:[%s2398 + $0x40] sm:$0xff]
  %v2503 = vld [vmem:[%s2398 + $0x50] sm:$0xff]
  %v2504 = vld [vmem:[%s2398 + $0x60] sm:$0xff]
  %v2505 = vld [vmem:[%s2398 + $0x70] sm:$0xff]
  %v2506 = vld [vmem:[%s2398 + $0xa0] sm:$0xff]
  %v2507 = vld [vmem:[%s2398 + $0xb0] sm:$0xff]
  %v2508 = vld [vmem:[%s2398 + $0xc0] sm:$0xff]
  %v2509 = vld [vmem:[%s2398 + $0xd0] sm:$0xff]
  %v2510 = vld [vmem:[%s2398 + $0xe0] sm:$0xff]
  %v2511 = vld [vmem:[%s2398 + $0xf0] sm:$0xff]
  %v2512 = vld [vmem:[%s2398 + $0x100] sm:$0xff]
  %v2513 = vld [vmem:[%s2398 + $0x110] sm:$0xff]
  %v2514 = vld [vmem:[%s2398 + $0x1] sm:$0xff]
  %v2515 = vld [vmem:[%s2398 + $0x11] sm:$0xff]
  %v2516 = vld [vmem:[%s2398 + $0x21] sm:$0xff]
  %v2517 = vld [vmem:[%s2398 + $0x31] sm:$0xff]
  %v2518 = vld [vmem:[%s2398 + $0x41] sm:$0xff]
  %v2519 = vld [vmem:[%s2398 + $0x51] sm:$0xff]
  %v2520 = vld [vmem:[%s2398 + $0x61] sm:$0xff]
  %v2521 = vld [vmem:[%s2398 + $0x71] sm:$0xff]
  %v2522 = vld [vmem:[%s2398 + $0xa1] sm:$0xff]
  %v2523 = vld [vmem:[%s2398 + $0xb1] sm:$0xff]
  %v2524 = vld [vmem:[%s2398 + $0xc1] sm:$0xff]
  %v2525 = vld [vmem:[%s2398 + $0xd1] sm:$0xff]
  %v2526 = vld [vmem:[%s2398 + $0xe1] sm:$0xff]
  %v2527 = vld [vmem:[%s2398 + $0xf1] sm:$0xff]
  %v2528 = vld [vmem:[%s2398 + $0x101] sm:$0xff]
  %v2529 = vld [vmem:[%s2398 + $0x111] sm:$0xff]
  %2546 = vrot.lane.b32.xlu0 %v2482, 8
  %v2547 = vpop.permute.xlu0 %2546
  %2548 = vrot.lane.b32.xlu0 %v2483, 8
  %v2549 = vpop.permute.xlu0 %2548
  %2550 = vrot.lane.b32.xlu0 %v2484, 8
  %v2551 = vpop.permute.xlu0 %2550
  %2552 = vrot.lane.b32.xlu0 %v2485, 8
  %v2553 = vpop.permute.xlu0 %2552
  %2554 = vrot.lane.b32.xlu0 %v2486, 8
  %v2555 = vpop.permute.xlu0 %2554
  %2556 = vrot.lane.b32.xlu0 %v2487, 8
  %v2557 = vpop.permute.xlu0 %2556
  %2558 = vrot.lane.b32.xlu0 %v2488, 8
  %v2559 = vpop.permute.xlu0 %2558
  %2560 = vrot.lane.b32.xlu0 %v2489, 8
  %v2561 = vpop.permute.xlu0 %2560
  %2562 = vrot.lane.b32.xlu0 %v2490, 8
  %v2563 = vpop.permute.xlu0 %2562
  %2564 = vrot.lane.b32.xlu0 %v2491, 8
  %v2565 = vpop.permute.xlu0 %2564
  %2566 = vrot.lane.b32.xlu0 %v2492, 8
  %v2567 = vpop.permute.xlu0 %2566
  %2568 = vrot.lane.b32.xlu0 %v2493, 8
  %v2569 = vpop.permute.xlu0 %2568
  %2570 = vrot.lane.b32.xlu0 %v2494, 8
  %v2571 = vpop.permute.xlu0 %2570
  %2572 = vrot.lane.b32.xlu0 %v2495, 8
  %v2573 = vpop.permute.xlu0 %2572
  %2574 = vrot.lane.b32.xlu0 %v2496, 8
  %v2575 = vpop.permute.xlu0 %2574
  %2576 = vrot.lane.b32.xlu0 %v2497, 8
  %v2577 = vpop.permute.xlu0 %2576
  %2610 = vrot.lane.b32.xlu0 %v2498, 16
  %v2611 = vpop.permute.xlu0 %2610
  %2612 = vrot.lane.b32.xlu0 %v2499, 16
  %v2613 = vpop.permute.xlu0 %2612
  %2614 = vrot.lane.b32.xlu0 %v2500, 16
  %v2615 = vpop.permute.xlu0 %2614
  %2616 = vrot.lane.b32.xlu0 %v2501, 16
  %v2617 = vpop.permute.xlu0 %2616
  %2618 = vrot.lane.b32.xlu0 %v2502, 16
  %v2619 = vpop.permute.xlu0 %2618
  %2620 = vrot.lane.b32.xlu0 %v2503, 16
  %v2621 = vpop.permute.xlu0 %2620
  %2622 = vrot.lane.b32.xlu0 %v2504, 16
  %v2623 = vpop.permute.xlu0 %2622
  %2624 = vrot.lane.b32.xlu0 %v2505, 16
  %v2625 = vpop.permute.xlu0 %2624
  %2626 = vrot.lane.b32.xlu0 %v2506, 16
  %v2627 = vpop.permute.xlu0 %2626
  %2628 = vrot.lane.b32.xlu0 %v2507, 16
  %v2629 = vpop.permute.xlu0 %2628
  %2630 = vrot.lane.b32.xlu0 %v2508, 16
  %v2631 = vpop.permute.xlu0 %2630
  %2632 = vrot.lane.b32.xlu0 %v2509, 16
  %v2633 = vpop.permute.xlu0 %2632
  %2634 = vrot.lane.b32.xlu0 %v2510, 16
  %v2635 = vpop.permute.xlu0 %2634
  %2636 = vrot.lane.b32.xlu0 %v2511, 16
  %v2637 = vpop.permute.xlu0 %2636
  %2638 = vrot.lane.b32.xlu0 %v2512, 16
  %v2639 = vpop.permute.xlu0 %2638
  %2640 = vrot.lane.b32.xlu0 %v2513, 16
  %v2641 = vpop.permute.xlu0 %2640
  %2674 = vrot.lane.b32.xlu0 %v2514, 24
  %v2675 = vpop.permute.xlu0 %2674
  %2676 = vrot.lane.b32.xlu0 %v2515, 24
  %v2677 = vpop.permute.xlu0 %2676
  %2678 = vrot.lane.b32.xlu0 %v2516, 24
  %v2679 = vpop.permute.xlu0 %2678
  %2680 = vrot.lane.b32.xlu0 %v2517, 24
  %v2681 = vpop.permute.xlu0 %2680
  %2682 = vrot.lane.b32.xlu0 %v2518, 24
  %v2683 = vpop.permute.xlu0 %2682
  %2684 = vrot.lane.b32.xlu0 %v2519, 24
  %v2685 = vpop.permute.xlu0 %2684
  %2686 = vrot.lane.b32.xlu0 %v2520, 24
  %v2687 = vpop.permute.xlu0 %2686
  %2688 = vrot.lane.b32.xlu0 %v2521, 24
  %v2689 = vpop.permute.xlu0 %2688
  %2690 = vrot.lane.b32.xlu0 %v2522, 24
  %v2691 = vpop.permute.xlu0 %2690
  %2692 = vrot.lane.b32.xlu0 %v2523, 24
  %v2693 = vpop.permute.xlu0 %2692
  %2694 = vrot.lane.b32.xlu0 %v2524, 24
  %v2695 = vpop.permute.xlu0 %2694
  %2696 = vrot.lane.b32.xlu0 %v2525, 24
  %v2697 = vpop.permute.xlu0 %2696
  %2698 = vrot.lane.b32.xlu0 %v2526, 24
  %v2699 = vpop.permute.xlu0 %2698
  %2700 = vrot.lane.b32.xlu0 %v2527, 24
  %v2701 = vpop.permute.xlu0 %2700
  %2702 = vrot.lane.b32.xlu0 %v2528, 24
  %v2703 = vpop.permute.xlu0 %2702
  %2704 = vrot.lane.b32.xlu0 %v2529, 24
  %v2705 = vpop.permute.xlu0 %2704
  %v2722 = vsel %vm1982, %v2466, %v2547
  %v2723 = vsel %vm1982, %v2467, %v2549
  %v2724 = vsel %vm1982, %v2468, %v2551
  %v2725 = vsel %vm1982, %v2469, %v2553
  %v2726 = vsel %vm1982, %v2470, %v2555
  %v2727 = vsel %vm1982, %v2471, %v2557
  %v2728 = vsel %vm1982, %v2472, %v2559
  %v2729 = vsel %vm1982, %v2473, %v2561
  %v2730 = vsel %vm1982, %v2474, %v2563
  %v2731 = vsel %vm1982, %v2475, %v2565
  %v2732 = vsel %vm1982, %v2476, %v2567
  %v2733 = vsel %vm1982, %v2477, %v2569
  %v2734 = vsel %vm1982, %v2478, %v2571
  %v2735 = vsel %vm1982, %v2479, %v2573
  %v2736 = vsel %vm1982, %v2480, %v2575
  %v2737 = vsel %vm1982, %v2481, %v2577
  %v2738 = vsel %vm2016, %v2722, %v2611
  %v2739 = vsel %vm2016, %v2723, %v2613
  %v2740 = vsel %vm2016, %v2724, %v2615
  %v2741 = vsel %vm2016, %v2725, %v2617
  %v2742 = vsel %vm2016, %v2726, %v2619
  %v2743 = vsel %vm2016, %v2727, %v2621
  %v2744 = vsel %vm2016, %v2728, %v2623
  %v2745 = vsel %vm2016, %v2729, %v2625
  %v2746 = vsel %vm2016, %v2730, %v2627
  %v2747 = vsel %vm2016, %v2731, %v2629
  %v2748 = vsel %vm2016, %v2732, %v2631
  %v2749 = vsel %vm2016, %v2733, %v2633
  %v2750 = vsel %vm2016, %v2734, %v2635
  %v2751 = vsel %vm2016, %v2735, %v2637
  %v2752 = vsel %vm2016, %v2736, %v2639
  %v2753 = vsel %vm2016, %v2737, %v2641
  %v2754 = vsel %vm2050, %v2738, %v2675
  %v2755 = vsel %vm2050, %v2739, %v2677
  %v2756 = vsel %vm2050, %v2740, %v2679
  %v2757 = vsel %vm2050, %v2741, %v2681
  %v2758 = vsel %vm2050, %v2742, %v2683
  %v2759 = vsel %vm2050, %v2743, %v2685
  %v2760 = vsel %vm2050, %v2744, %v2687
  %v2761 = vsel %vm2050, %v2745, %v2689
  %v2762 = vsel %vm2050, %v2746, %v2691
  %v2763 = vsel %vm2050, %v2747, %v2693
  %v2764 = vsel %vm2050, %v2748, %v2695
  %v2765 = vsel %vm2050, %v2749, %v2697
  %v2766 = vsel %vm2050, %v2750, %v2699
  %v2767 = vsel %vm2050, %v2751, %v2701
  %v2768 = vsel %vm2050, %v2752, %v2703
  %v2769 = vsel %vm2050, %v2753, %v2705
  %v2770 = vpack.c.bf16 %v2755, %v2754
  %v2771 = vpack.c.bf16 %v2757, %v2756
  %v2772 = vpack.c.bf16 %v2759, %v2758
  %v2773 = vpack.c.bf16 %v2761, %v2760
  %v2774 = vpack.c.bf16 %v2763, %v2762
  %v2775 = vpack.c.bf16 %v2765, %v2764
  %v2776 = vpack.c.bf16 %v2767, %v2766
  %v2777 = vpack.c.bf16 %v2769, %v2768
  %v2778 = vld [vmem:[%s2] sm:$0xf]
  %v2779 = vld [vmem:[%s2 + $0x4] sm:$0xf]
  %v2780 = vld [vmem:[%s2 + $0x8] sm:$0xf]
  %v2781 = vld [vmem:[%s2 + $0xc] sm:$0xf]
  %v2786 = vunpack.c.l.b16 %v2778
  %v2787 = vunpack.c.l.b16 %v2779
  %v2788 = vunpack.c.l.b16 %v2780
  %v2789 = vunpack.c.l.b16 %v2781
  %v2790 = vpack.c.b16 %v2787, %v2786
  %v2791 = vpack.c.b16 %v2789, %v2788
  %v2795 = vsel %vm2084, %v2770, 0
  %v2798 = vsel %vm2084, %v2771, 0
  %v2801 = vsel %vm2084, %v2772, 0
  %v2804 = vsel %vm2084, %v2773, 0
  %v2807 = vsel %vm2084, %v2774, 0
  %v2810 = vsel %vm2084, %v2775, 0
  %v2813 = vsel %vm2084, %v2776, 0
  %v2816 = vsel %vm2084, %v2777, 0
  %2818 = vmatprep.subr.bf16.mxu0 0
  %2819 = vmatpush1.bf16.msra.mxu0 %v2790
  %2820 = vmatprep.subr.bf16.mxu0 0
  %2821 = vmatpush1.bf16.msra.mxu0 %v2791
  %2822 = vmatprep.subr.bf16.mxu0 0
  %2823 = vmatpush1.bf16.msra.mxu0 0
  %2824 = vmatprep.subr.bf16.mxu0 0
  %2825 = vmatpush1.bf16.msra.mxu0 0
  %2826 = vmatprep.subr.bf16.mxu0 0
  %2827 = vmatpush1.bf16.msra.mxu0 0
  %2828 = vmatprep.subr.bf16.mxu0 0
  %2829 = vmatpush1.bf16.msra.mxu0 0
  %2830 = vmatprep.subr.bf16.mxu0 0
  %2831 = vmatpush1.bf16.msra.mxu0 0
  %2832 = vmatprep.subr.bf16.mxu0 0
  %2833 = vmatpush1.bf16.msra.mxu0 0
  %2834 = vmatprep.subr.bf16.mxu0 0
  %2835 = vmatpush1.bf16.msra.mxu0 0
  %2836 = vmatprep.subr.bf16.mxu0 0
  %2837 = vmatpush1.bf16.msra.mxu0 0
  %2838 = vmatprep.subr.bf16.mxu0 0
  %2839 = vmatpush1.bf16.msra.mxu0 0
  %2840 = vmatprep.subr.bf16.mxu0 0
  %2841 = vmatpush1.bf16.msra.mxu0 0
  %2842 = vmatprep.subr.bf16.mxu0 0
  %2843 = vmatpush1.bf16.msra.mxu0 0
  %2844 = vmatprep.subr.bf16.mxu0 0
  %2845 = vmatpush1.bf16.msra.mxu0 0
  %2846 = vmatprep.subr.bf16.mxu0 0
  %2847 = vmatpush1.bf16.msra.mxu0 0
  %2848 = vmatprep.subr.bf16.mxu0 0
  %2849 = vmatpush1.bf16.msra.mxu0 0
  %2850 = vmatprep.mubr.bf16.mxu0 0
  %2851 = vmatmul.mubr.bf16.gmra.mrb[0].mxu0 %v2795
  %v2852 = vpop.f32.mrb[0].mxu0
  %v2853 = vadd.f32 0.0, %v2852
  %v2854 = vpop.f32.mrb[0].mxu0
  %v2855 = vpop.f32.mrb[0].mxu0
  %v2856 = vadd.f32 0.0, %v2855
  %v2857 = vpop.f32.mrb[0].mxu0
  %2858 = vmatprep.mubr.bf16.mxu0 0
  %2859 = vmatmul.mubr.bf16.gmra.mrb[0].mxu0 %v2798
  %v2860 = vpop.f32.mrb[0].mxu0
  %v2861 = vadd.f32 0.0, %v2860
  %v2862 = vpop.f32.mrb[0].mxu0
  %v2863 = vpop.f32.mrb[0].mxu0
  %v2864 = vadd.f32 0.0, %v2863
  %v2865 = vpop.f32.mrb[0].mxu0
  %2866 = vmatprep.mubr.bf16.mxu0 0
  %2867 = vmatmul.mubr.bf16.gmra.mrb[0].mxu0 %v2801
  %v2868 = vpop.f32.mrb[0].mxu0
  %v2869 = vadd.f32 0.0, %v2868
  %v2870 = vpop.f32.mrb[0].mxu0
  %v2871 = vpop.f32.mrb[0].mxu0
  %v2872 = vadd.f32 0.0, %v2871
  %v2873 = vpop.f32.mrb[0].mxu0
  %2874 = vmatprep.mubr.bf16.mxu0 0
  %2875 = vmatmul.mubr.bf16.gmra.mrb[0].mxu0 %v2804
  %v2876 = vpop.f32.mrb[0].mxu0
  %v2877 = vadd.f32 0.0, %v2876
  %v2878 = vpop.f32.mrb[0].mxu0
  %v2879 = vpop.f32.mrb[0].mxu0
  %v2880 = vadd.f32 0.0, %v2879
  %v2881 = vpop.f32.mrb[0].mxu0
  %2882 = vmatprep.mubr.bf16.mxu0 0
  %2883 = vmatmul.mubr.bf16.gmra.mrb[0].mxu0 %v2807
  %v2884 = vpop.f32.mrb[0].mxu0
  %v2885 = vadd.f32 0.0, %v2884
  %v2886 = vpop.f32.mrb[0].mxu0
  %v2887 = vpop.f32.mrb[0].mxu0
  %v2888 = vadd.f32 0.0, %v2887
  %v2889 = vpop.f32.mrb[0].mxu0
  %2890 = vmatprep.mubr.bf16.mxu0 0
  %2891 = vmatmul.mubr.bf16.gmra.mrb[0].mxu0 %v2810
  %v2892 = vpop.f32.mrb[0].mxu0
  %v2893 = vadd.f32 0.0, %v2892
  %v2894 = vpop.f32.mrb[0].mxu0
  %v2895 = vpop.f32.mrb[0].mxu0
  %v2896 = vadd.f32 0.0, %v2895
  %v2897 = vpop.f32.mrb[0].mxu0
  %2898 = vmatprep.mubr.bf16.mxu0 0
  %2899 = vmatmul.mubr.bf16.gmra.mrb[0].mxu0 %v2813
  %v2900 = vpop.f32.mrb[0].mxu0
  %v2901 = vadd.f32 0.0, %v2900
  %v2902 = vpop.f32.mrb[0].mxu0
  %v2903 = vpop.f32.mrb[0].mxu0
  %v2904 = vadd.f32 0.0, %v2903
  %v2905 = vpop.f32.mrb[0].mxu0
  %2906 = vmatprep.mubr.bf16.mxu0 0
  %2907 = vmatmul.mubr.bf16.gmra.mrb[0].mxu0 %v2816
  %v2908 = vpop.f32.mrb[0].mxu0
  %v2909 = vadd.f32 0.0, %v2908
  %v2910 = vpop.f32.mrb[0].mxu0
  %v2911 = vpop.f32.mrb[0].mxu0
  %v2912 = vadd.f32 0.0, %v2911
  %v2913 = vpop.f32.mrb[0].mxu0
  %2914 = vdwg.mxu0
  %2915 = vst.msk [vmem:[#allocation4] sm:$0xff] %vm597, %v2853
  %2916 = vst.msk [vmem:[#allocation4 + $0x8] sm:$0xff] %vm597, %v2856
  %2917 = vst.msk [vmem:[#allocation4 + $0x10] sm:$0xff] %vm597, %v2861
  %2918 = vst.msk [vmem:[#allocation4 + $0x18] sm:$0xff] %vm597, %v2864
  %2919 = vst.msk [vmem:[#allocation4 + $0x20] sm:$0xff] %vm597, %v2869
  %2920 = vst.msk [vmem:[#allocation4 + $0x28] sm:$0xff] %vm597, %v2872
  %2921 = vst.msk [vmem:[#allocation4 + $0x30] sm:$0xff] %vm597, %v2877
  %2922 = vst.msk [vmem:[#allocation4 + $0x38] sm:$0xff] %vm597, %v2880
  %2923 = vst.msk [vmem:[#allocation4 + $0x40] sm:$0xff] %vm597, %v2885
  %2924 = vst.msk [vmem:[#allocation4 + $0x48] sm:$0xff] %vm597, %v2888
  %2925 = vst.msk [vmem:[#allocation4 + $0x50] sm:$0xff] %vm597, %v2893
  %2926 = vst.msk [vmem:[#allocation4 + $0x58] sm:$0xff] %vm597, %v2896
  %2927 = vst.msk [vmem:[#allocation4 + $0x60] sm:$0xff] %vm597, %v2901
  %2928 = vst.msk [vmem:[#allocation4 + $0x68] sm:$0xff] %vm597, %v2904
  %2929 = vst.msk [vmem:[#allocation4 + $0x70] sm:$0xff] %vm597, %v2909
  %2930 = vst.msk [vmem:[#allocation4 + $0x78] sm:$0xff] %vm597, %v2912
  %v2931 = vsel %vm597, %v2853, 0.0
  %v2932 = vsel %vm597, %v2856, 0.0
  %v2933 = vadd.f32 %v2931, %v2932
  %v2934 = vsel %vm597, %v2861, 0.0
  %v2935 = vadd.f32 %v2933, %v2934
  %v2936 = vsel %vm597, %v2864, 0.0
  %v2937 = vadd.f32 %v2935, %v2936
  %v2938 = vsel %vm597, %v2869, 0.0
  %v2939 = vadd.f32 %v2937, %v2938
  %v2940 = vsel %vm597, %v2872, 0.0
  %v2941 = vadd.f32 %v2939, %v2940
  %v2942 = vsel %vm597, %v2877, 0.0
  %v2943 = vadd.f32 %v2941, %v2942
  %v2944 = vsel %vm597, %v2880, 0.0
  %v2945 = vadd.f32 %v2943, %v2944
  %v2946 = vsel %vm597, %v2885, 0.0
  %v2947 = vadd.f32 %v2945, %v2946
  %v2948 = vsel %vm597, %v2888, 0.0
  %v2949 = vadd.f32 %v2947, %v2948
  %v2950 = vsel %vm597, %v2893, 0.0
  %v2951 = vadd.f32 %v2949, %v2950
  %v2952 = vsel %vm597, %v2896, 0.0
  %v2953 = vadd.f32 %v2951, %v2952
  %v2954 = vsel %vm597, %v2901, 0.0
  %v2955 = vadd.f32 %v2953, %v2954
  %v2956 = vsel %vm597, %v2904, 0.0
  %v2957 = vadd.f32 %v2955, %v2956
  %v2958 = vsel %vm597, %v2909, 0.0
  %v2959 = vadd.f32 %v2957, %v2958
  %v2960 = vsel %vm597, %v2912, 0.0
  %v2961 = vadd.f32 %v2959, %v2960
  %v2962 = vrot.slane %v2961, 4
  %v2963 = vadd.f32 %v2961, %v2962
  %v2964 = vrot.slane %v2963, 2
  %v2965 = vadd.f32 %v2963, %v2964
  %v2966 = vrot.slane %v2965, 1
  %v2967 = vadd.f32 %v2965, %v2966
  %v2968 = vadd.f32 %v2967, 0.0
  %v2969 = vmul.f32 %v2853, %v2853
  %v2970 = vmul.f32 %v2856, %v2856
  %v2971 = vmul.f32 %v2861, %v2861
  %v2972 = vmul.f32 %v2864, %v2864
  %v2973 = vmul.f32 %v2869, %v2869
  %v2974 = vmul.f32 %v2872, %v2872
  %v2975 = vmul.f32 %v2877, %v2877
  %v2976 = vmul.f32 %v2880, %v2880
  %v2977 = vmul.f32 %v2885, %v2885
  %v2978 = vmul.f32 %v2888, %v2888
  %v2979 = vmul.f32 %v2893, %v2893
  %v2980 = vmul.f32 %v2896, %v2896
  %v2981 = vmul.f32 %v2901, %v2901
  %v2982 = vmul.f32 %v2904, %v2904
  %v2983 = vmul.f32 %v2909, %v2909
  %v2984 = vmul.f32 %v2912, %v2912
  %v2985 = vsel %vm597, %v2969, 0.0
  %v2986 = vsel %vm597, %v2970, 0.0
  %v2987 = vadd.f32 %v2985, %v2986
  %v2988 = vsel %vm597, %v2971, 0.0
  %v2989 = vadd.f32 %v2987, %v2988
  %v2990 = vsel %vm597, %v2972, 0.0
  %v2991 = vadd.f32 %v2989, %v2990
  %v2992 = vsel %vm597, %v2973, 0.0
  %v2993 = vadd.f32 %v2991, %v2992
  %v2994 = vsel %vm597, %v2974, 0.0
  %v2995 = vadd.f32 %v2993, %v2994
  %v2996 = vsel %vm597, %v2975, 0.0
  %v2997 = vadd.f32 %v2995, %v2996
  %v2998 = vsel %vm597, %v2976, 0.0
  %v2999 = vadd.f32 %v2997, %v2998
  %v3000 = vsel %vm597, %v2977, 0.0
  %v3001 = vadd.f32 %v2999, %v3000
  %v3002 = vsel %vm597, %v2978, 0.0
  %v3003 = vadd.f32 %v3001, %v3002
  %v3004 = vsel %vm597, %v2979, 0.0
  %v3005 = vadd.f32 %v3003, %v3004
  %v3006 = vsel %vm597, %v2980, 0.0
  %v3007 = vadd.f32 %v3005, %v3006
  %v3008 = vsel %vm597, %v2981, 0.0
  %v3009 = vadd.f32 %v3007, %v3008
  %v3010 = vsel %vm597, %v2982, 0.0
  %v3011 = vadd.f32 %v3009, %v3010
  %v3012 = vsel %vm597, %v2983, 0.0
  %v3013 = vadd.f32 %v3011, %v3012
  %v3014 = vsel %vm597, %v2984, 0.0
  %v3015 = vadd.f32 %v3013, %v3014
  %v3016 = vrot.slane %v3015, 4
  %v3017 = vadd.f32 %v3015, %v3016
  %v3018 = vrot.slane %v3017, 2
  %v3019 = vadd.f32 %v3017, %v3018
  %v3020 = vrot.slane %v3019, 1
  %v3021 = vadd.f32 %v3019, %v3020
  %v3022 = vadd.f32 %v3021, 0.0
  %v3023 = vld [vmem:[#allocation3 + $0x1] sm:$0xff]
  %v3024 = vld [vmem:[#allocation3 + $0x11] sm:$0xff]
  %v3025 = vld [vmem:[#allocation3 + $0x21] sm:$0xff]
  %v3026 = vld [vmem:[#allocation3 + $0x31] sm:$0xff]
  %v3027 = vld [vmem:[#allocation3 + $0x41] sm:$0xff]
  %v3028 = vld [vmem:[#allocation3 + $0x51] sm:$0xff]
  %v3029 = vld [vmem:[#allocation3 + $0x61] sm:$0xff]
  %v3030 = vld [vmem:[#allocation3 + $0x71] sm:$0xff]
  %v3031 = vld [vmem:[#allocation3 + $0xa1] sm:$0xff]
  %v3032 = vld [vmem:[#allocation3 + $0xb1] sm:$0xff]
  %v3033 = vld [vmem:[#allocation3 + $0xc1] sm:$0xff]
  %v3034 = vld [vmem:[#allocation3 + $0xd1] sm:$0xff]
  %v3035 = vld [vmem:[#allocation3 + $0xe1] sm:$0xff]
  %v3036 = vld [vmem:[#allocation3 + $0xf1] sm:$0xff]
  %v3037 = vld [vmem:[#allocation3 + $0x101] sm:$0xff]
  %v3038 = vld [vmem:[#allocation3 + $0x111] sm:$0xff]
  %v3039 = vld [vmem:[#allocation3 + $0x2] sm:$0xff]
  %v3040 = vld [vmem:[#allocation3 + $0x12] sm:$0xff]
  %v3041 = vld [vmem:[#allocation3 + $0x22] sm:$0xff]
  %v3042 = vld [vmem:[#allocation3 + $0x32] sm:$0xff]
  %v3043 = vld [vmem:[#allocation3 + $0x42] sm:$0xff]
  %v3044 = vld [vmem:[#allocation3 + $0x52] sm:$0xff]
  %v3045 = vld [vmem:[#allocation3 + $0x62] sm:$0xff]
  %v3046 = vld [vmem:[#allocation3 + $0x72] sm:$0xff]
  %v3047 = vld [vmem:[#allocation3 + $0xa2] sm:$0xff]
  %v3048 = vld [vmem:[#allocation3 + $0xb2] sm:$0xff]
  %v3049 = vld [vmem:[#allocation3 + $0xc2] sm:$0xff]
  %v3050 = vld [vmem:[#allocation3 + $0xd2] sm:$0xff]
  %v3051 = vld [vmem:[#allocation3 + $0xe2] sm:$0xff]
  %v3052 = vld [vmem:[#allocation3 + $0xf2] sm:$0xff]
  %v3053 = vld [vmem:[#allocation3 + $0x102] sm:$0xff]
  %v3054 = vld [vmem:[#allocation3 + $0x112] sm:$0xff]
  %v3055 = vld [vmem:[%s2398 + $0x1] sm:$0xff]
  %v3056 = vld [vmem:[%s2398 + $0x11] sm:$0xff]
  %v3057 = vld [vmem:[%s2398 + $0x21] sm:$0xff]
  %v3058 = vld [vmem:[%s2398 + $0x31] sm:$0xff]
  %v3059 = vld [vmem:[%s2398 + $0x41] sm:$0xff]
  %v3060 = vld [vmem:[%s2398 + $0x51] sm:$0xff]
  %v3061 = vld [vmem:[%s2398 + $0x61] sm:$0xff]
  %v3062 = vld [vmem:[%s2398 + $0x71] sm:$0xff]
  %v3063 = vld [vmem:[%s2398 + $0xa1] sm:$0xff]
  %v3064 = vld [vmem:[%s2398 + $0xb1] sm:$0xff]
  %v3065 = vld [vmem:[%s2398 + $0xc1] sm:$0xff]
  %v3066 = vld [vmem:[%s2398 + $0xd1] sm:$0xff]
  %v3067 = vld [vmem:[%s2398 + $0xe1] sm:$0xff]
  %v3068 = vld [vmem:[%s2398 + $0xf1] sm:$0xff]
  %v3069 = vld [vmem:[%s2398 + $0x101] sm:$0xff]
  %v3070 = vld [vmem:[%s2398 + $0x111] sm:$0xff]
  %v3071 = vld [vmem:[%s2398 + $0x2] sm:$0xff]
  %v3072 = vld [vmem:[%s2398 + $0x12] sm:$0xff]
  %v3073 = vld [vmem:[%s2398 + $0x22] sm:$0xff]
  %v3074 = vld [vmem:[%s2398 + $0x32] sm:$0xff]
  %v3075 = vld [vmem:[%s2398 + $0x42] sm:$0xff]
  %v3076 = vld [vmem:[%s2398 + $0x52] sm:$0xff]
  %v3077 = vld [vmem:[%s2398 + $0x62] sm:$0xff]
  %v3078 = vld [vmem:[%s2398 + $0x72] sm:$0xff]
  %v3079 = vld [vmem:[%s2398 + $0xa2] sm:$0xff]
  %v3080 = vld [vmem:[%s2398 + $0xb2] sm:$0xff]
  %v3081 = vld [vmem:[%s2398 + $0xc2] sm:$0xff]
  %v3082 = vld [vmem:[%s2398 + $0xd2] sm:$0xff]
  %v3083 = vld [vmem:[%s2398 + $0xe2] sm:$0xff]
  %v3084 = vld [vmem:[%s2398 + $0xf2] sm:$0xff]
  %v3085 = vld [vmem:[%s2398 + $0x102] sm:$0xff]
  %v3086 = vld [vmem:[%s2398 + $0x112] sm:$0xff]
  %3103 = vrot.lane.b32.xlu0 %v3039, 8
  %v3104 = vpop.permute.xlu0 %3103
  %3105 = vrot.lane.b32.xlu0 %v3040, 8
  %v3106 = vpop.permute.xlu0 %3105
  %3107 = vrot.lane.b32.xlu0 %v3041, 8
  %v3108 = vpop.permute.xlu0 %3107
  %3109 = vrot.lane.b32.xlu0 %v3042, 8
  %v3110 = vpop.permute.xlu0 %3109
  %3111 = vrot.lane.b32.xlu0 %v3043, 8
  %v3112 = vpop.permute.xlu0 %3111
  %3113 = vrot.lane.b32.xlu0 %v3044, 8
  %v3114 = vpop.permute.xlu0 %3113
  %3115 = vrot.lane.b32.xlu0 %v3045, 8
  %v3116 = vpop.permute.xlu0 %3115
  %3117 = vrot.lane.b32.xlu0 %v3046, 8
  %v3118 = vpop.permute.xlu0 %3117
  %3119 = vrot.lane.b32.xlu0 %v3047, 8
  %v3120 = vpop.permute.xlu0 %3119
  %3121 = vrot.lane.b32.xlu0 %v3048, 8
  %v3122 = vpop.permute.xlu0 %3121
  %3123 = vrot.lane.b32.xlu0 %v3049, 8
  %v3124 = vpop.permute.xlu0 %3123
  %3125 = vrot.lane.b32.xlu0 %v3050, 8
  %v3126 = vpop.permute.xlu0 %3125
  %3127 = vrot.lane.b32.xlu0 %v3051, 8
  %v3128 = vpop.permute.xlu0 %3127
  %3129 = vrot.lane.b32.xlu0 %v3052, 8
  %v3130 = vpop.permute.xlu0 %3129
  %3131 = vrot.lane.b32.xlu0 %v3053, 8
  %v3132 = vpop.permute.xlu0 %3131
  %3133 = vrot.lane.b32.xlu0 %v3054, 8
  %v3134 = vpop.permute.xlu0 %3133
  %3167 = vrot.lane.b32.xlu0 %v3055, 16
  %v3168 = vpop.permute.xlu0 %3167
  %3169 = vrot.lane.b32.xlu0 %v3056, 16
  %v3170 = vpop.permute.xlu0 %3169
  %3171 = vrot.lane.b32.xlu0 %v3057, 16
  %v3172 = vpop.permute.xlu0 %3171
  %3173 = vrot.lane.b32.xlu0 %v3058, 16
  %v3174 = vpop.permute.xlu0 %3173
  %3175 = vrot.lane.b32.xlu0 %v3059, 16
  %v3176 = vpop.permute.xlu0 %3175
  %3177 = vrot.lane.b32.xlu0 %v3060, 16
  %v3178 = vpop.permute.xlu0 %3177
  %3179 = vrot.lane.b32.xlu0 %v3061, 16
  %v3180 = vpop.permute.xlu0 %3179
  %3181 = vrot.lane.b32.xlu0 %v3062, 16
  %v3182 = vpop.permute.xlu0 %3181
  %3183 = vrot.lane.b32.xlu0 %v3063, 16
  %v3184 = vpop.permute.xlu0 %3183
  %3185 = vrot.lane.b32.xlu0 %v3064, 16
  %v3186 = vpop.permute.xlu0 %3185
  %3187 = vrot.lane.b32.xlu0 %v3065, 16
  %v3188 = vpop.permute.xlu0 %3187
  %3189 = vrot.lane.b32.xlu0 %v3066, 16
  %v3190 = vpop.permute.xlu0 %3189
  %3191 = vrot.lane.b32.xlu0 %v3067, 16
  %v3192 = vpop.permute.xlu0 %3191
  %3193 = vrot.lane.b32.xlu0 %v3068, 16
  %v3194 = vpop.permute.xlu0 %3193
  %3195 = vrot.lane.b32.xlu0 %v3069, 16
  %v3196 = vpop.permute.xlu0 %3195
  %3197 = vrot.lane.b32.xlu0 %v3070, 16
  %v3198 = vpop.permute.xlu0 %3197
  %3231 = vrot.lane.b32.xlu0 %v3071, 24
  %v3232 = vpop.permute.xlu0 %3231
  %3233 = vrot.lane.b32.xlu0 %v3072, 24
  %v3234 = vpop.permute.xlu0 %3233
  %3235 = vrot.lane.b32.xlu0 %v3073, 24
  %v3236 = vpop.permute.xlu0 %3235
  %3237 = vrot.lane.b32.xlu0 %v3074, 24
  %v3238 = vpop.permute.xlu0 %3237
  %3239 = vrot.lane.b32.xlu0 %v3075, 24
  %v3240 = vpop.permute.xlu0 %3239
  %3241 = vrot.lane.b32.xlu0 %v3076, 24
  %v3242 = vpop.permute.xlu0 %3241
  %3243 = vrot.lane.b32.xlu0 %v3077, 24
  %v3244 = vpop.permute.xlu0 %3243
  %3245 = vrot.lane.b32.xlu0 %v3078, 24
  %v3246 = vpop.permute.xlu0 %3245
  %3247 = vrot.lane.b32.xlu0 %v3079, 24
  %v3248 = vpop.permute.xlu0 %3247
  %3249 = vrot.lane.b32.xlu0 %v3080, 24
  %v3250 = vpop.permute.xlu0 %3249
  %3251 = vrot.lane.b32.xlu0 %v3081, 24
  %v3252 = vpop.permute.xlu0 %3251
  %3253 = vrot.lane.b32.xlu0 %v3082, 24
  %v3254 = vpop.permute.xlu0 %3253
  %3255 = vrot.lane.b32.xlu0 %v3083, 24
  %v3256 = vpop.permute.xlu0 %3255
  %3257 = vrot.lane.b32.xlu0 %v3084, 24
  %v3258 = vpop.permute.xlu0 %3257
  %3259 = vrot.lane.b32.xlu0 %v3085, 24
  %v3260 = vpop.permute.xlu0 %3259
  %3261 = vrot.lane.b32.xlu0 %v3086, 24
  %v3262 = vpop.permute.xlu0 %3261
  %v3279 = vsel %vm1982, %v3023, %v3104
  %v3280 = vsel %vm1982, %v3024, %v3106
  %v3281 = vsel %vm1982, %v3025, %v3108
  %v3282 = vsel %vm1982, %v3026, %v3110
  %v3283 = vsel %vm1982, %v3027, %v3112
  %v3284 = vsel %vm1982, %v3028, %v3114
  %v3285 = vsel %vm1982, %v3029, %v3116
  %v3286 = vsel %vm1982, %v3030, %v3118
  %v3287 = vsel %vm1982, %v3031, %v3120
  %v3288 = vsel %vm1982, %v3032, %v3122
  %v3289 = vsel %vm1982, %v3033, %v3124
  %v3290 = vsel %vm1982, %v3034, %v3126
  %v3291 = vsel %vm1982, %v3035, %v3128
  %v3292 = vsel %vm1982, %v3036, %v3130
  %v3293 = vsel %vm1982, %v3037, %v3132
  %v3294 = vsel %vm1982, %v3038, %v3134
  %v3295 = vsel %vm2016, %v3279, %v3168
  %v3296 = vsel %vm2016, %v3280, %v3170
  %v3297 = vsel %vm2016, %v3281, %v3172
  %v3298 = vsel %vm2016, %v3282, %v3174
  %v3299 = vsel %vm2016, %v3283, %v3176
  %v3300 = vsel %vm2016, %v3284, %v3178
  %v3301 = vsel %vm2016, %v3285, %v3180
  %v3302 = vsel %vm2016, %v3286, %v3182
  %v3303 = vsel %vm2016, %v3287, %v3184
  %v3304 = vsel %vm2016, %v3288, %v3186
  %v3305 = vsel %vm2016, %v3289, %v3188
  %v3306 = vsel %vm2016, %v3290, %v3190
  %v3307 = vsel %vm2016, %v3291, %v3192
  %v3308 = vsel %vm2016, %v3292, %v3194
  %v3309 = vsel %vm2016, %v3293, %v3196
  %v3310 = vsel %vm2016, %v3294, %v3198
  %v3311 = vsel %vm2050, %v3295, %v3232
  %v3312 = vsel %vm2050, %v3296, %v3234
  %v3313 = vsel %vm2050, %v3297, %v3236
  %v3314 = vsel %vm2050, %v3298, %v3238
  %v3315 = vsel %vm2050, %v3299, %v3240
  %v3316 = vsel %vm2050, %v3300, %v3242
  %v3317 = vsel %vm2050, %v3301, %v3244
  %v3318 = vsel %vm2050, %v3302, %v3246
  %v3319 = vsel %vm2050, %v3303, %v3248
  %v3320 = vsel %vm2050, %v3304, %v3250
  %v3321 = vsel %vm2050, %v3305, %v3252
  %v3322 = vsel %vm2050, %v3306, %v3254
  %v3323 = vsel %vm2050, %v3307, %v3256
  %v3324 = vsel %vm2050, %v3308, %v3258
  %v3325 = vsel %vm2050, %v3309, %v3260
  %v3326 = vsel %vm2050, %v3310, %v3262
  %v3327 = vpack.c.bf16 %v3312, %v3311
  %v3328 = vpack.c.bf16 %v3314, %v3313
  %v3329 = vpack.c.bf16 %v3316, %v3315
  %v3330 = vpack.c.bf16 %v3318, %v3317
  %v3331 = vpack.c.bf16 %v3320, %v3319
  %v3332 = vpack.c.bf16 %v3322, %v3321
  %v3333 = vpack.c.bf16 %v3324, %v3323
  %v3334 = vpack.c.bf16 %v3326, %v3325
  %s3335 = scalar_lea.vmem %s2, 16
  %v3336 = vld [vmem:[%s3335] sm:$0xf]
  %v3337 = vld [vmem:[%s3335 + $0x4] sm:$0xf]
  %v3338 = vld [vmem:[%s3335 + $0x8] sm:$0xf]
  %v3339 = vld [vmem:[%s3335 + $0xc] sm:$0xf]
  %v3344 = vunpack.c.l.b16 %v3336
  %v3345 = vunpack.c.l.b16 %v3337
  %v3346 = vunpack.c.l.b16 %v3338
  %v3347 = vunpack.c.l.b16 %v3339
  %v3348 = vpack.c.b16 %v3345, %v3344
  %v3349 = vpack.c.b16 %v3347, %v3346
  %v3353 = vsel %vm2084, %v3327, 0
  %v3356 = vsel %vm2084, %v3328, 0
  %v3359 = vsel %vm2084, %v3329, 0
  %v3362 = vsel %vm2084, %v3330, 0
  %v3365 = vsel %vm2084, %v3331, 0
  %v3368 = vsel %vm2084, %v3332, 0
  %v3371 = vsel %vm2084, %v3333, 0
  %v3374 = vsel %vm2084, %v3334, 0
  %3376 = vmatprep.subr.bf16.mxu0 0
  %3377 = vmatpush1.bf16.msra.mxu0 %v3348
  %3378 = vmatprep.subr.bf16.mxu0 0
  %3379 = vmatpush1.bf16.msra.mxu0 %v3349
  %3380 = vmatprep.subr.bf16.mxu0 0
  %3381 = vmatpush1.bf16.msra.mxu0 0
  %3382 = vmatprep.subr.bf16.mxu0 0
  %3383 = vmatpush1.bf16.msra.mxu0 0
  %3384 = vmatprep.subr.bf16.mxu0 0
  %3385 = vmatpush1.bf16.msra.mxu0 0
  %3386 = vmatprep.subr.bf16.mxu0 0
  %3387 = vmatpush1.bf16.msra.mxu0 0
  %3388 = vmatprep.subr.bf16.mxu0 0
  %3389 = vmatpush1.bf16.msra.mxu0 0
  %3390 = vmatprep.subr.bf16.mxu0 0
  %3391 = vmatpush1.bf16.msra.mxu0 0
  %3392 = vmatprep.subr.bf16.mxu0 0
  %3393 = vmatpush1.bf16.msra.mxu0 0
  %3394 = vmatprep.subr.bf16.mxu0 0
  %3395 = vmatpush1.bf16.msra.mxu0 0
  %3396 = vmatprep.subr.bf16.mxu0 0
  %3397 = vmatpush1.bf16.msra.mxu0 0
  %3398 = vmatprep.subr.bf16.mxu0 0
  %3399 = vmatpush1.bf16.msra.mxu0 0
  %3400 = vmatprep.subr.bf16.mxu0 0
  %3401 = vmatpush1.bf16.msra.mxu0 0
  %3402 = vmatprep.subr.bf16.mxu0 0
  %3403 = vmatpush1.bf16.msra.mxu0 0
  %3404 = vmatprep.subr.bf16.mxu0 0
  %3405 = vmatpush1.bf16.msra.mxu0 0
  %3406 = vmatprep.subr.bf16.mxu0 0
  %3407 = vmatpush1.bf16.msra.mxu0 0
  %3408 = vmatprep.mubr.bf16.mxu0 0
  %3409 = vmatmul.mubr.bf16.gmra.mrb[0].mxu0 %v3353
  %v3410 = vpop.f32.mrb[0].mxu0
  %v3411 = vadd.f32 0.0, %v3410
  %v3412 = vpop.f32.mrb[0].mxu0
  %v3413 = vpop.f32.mrb[0].mxu0
  %v3414 = vadd.f32 0.0, %v3413
  %v3415 = vpop.f32.mrb[0].mxu0
  %3416 = vmatprep.mubr.bf16.mxu0 0
  %3417 = vmatmul.mubr.bf16.gmra.mrb[0].mxu0 %v3356
  %v3418 = vpop.f32.mrb[0].mxu0
  %v3419 = vadd.f32 0.0, %v3418
  %v3420 = vpop.f32.mrb[0].mxu0
  %v3421 = vpop.f32.mrb[0].mxu0
  %v3422 = vadd.f32 0.0, %v3421
  %v3423 = vpop.f32.mrb[0].mxu0
  %3424 = vmatprep.mubr.bf16.mxu0 0
  %3425 = vmatmul.mubr.bf16.gmra.mrb[0].mxu0 %v3359
  %v3426 = vpop.f32.mrb[0].mxu0
  %v3427 = vadd.f32 0.0, %v3426
  %v3428 = vpop.f32.mrb[0].mxu0
  %v3429 = vpop.f32.mrb[0].mxu0
  %v3430 = vadd.f32 0.0, %v3429
  %v3431 = vpop.f32.mrb[0].mxu0
  %3432 = vmatprep.mubr.bf16.mxu0 0
  %3433 = vmatmul.mubr.bf16.gmra.mrb[0].mxu0 %v3362
  %v3434 = vpop.f32.mrb[0].mxu0
  %v3435 = vadd.f32 0.0, %v3434
  %v3436 = vpop.f32.mrb[0].mxu0
  %v3437 = vpop.f32.mrb[0].mxu0
  %v3438 = vadd.f32 0.0, %v3437
  %v3439 = vpop.f32.mrb[0].mxu0
  %3440 = vmatprep.mubr.bf16.mxu0 0
  %3441 = vmatmul.mubr.bf16.gmra.mrb[0].mxu0 %v3365
  %v3442 = vpop.f32.mrb[0].mxu0
  %v3443 = vadd.f32 0.0, %v3442
  %v3444 = vpop.f32.mrb[0].mxu0
  %v3445 = vpop.f32.mrb[0].mxu0
  %v3446 = vadd.f32 0.0, %v3445
  %v3447 = vpop.f32.mrb[0].mxu0
  %3448 = vmatprep.mubr.bf16.mxu0 0
  %3449 = vmatmul.mubr.bf16.gmra.mrb[0].mxu0 %v3368
  %v3450 = vpop.f32.mrb[0].mxu0
  %v3451 = vadd.f32 0.0, %v3450
  %v3452 = vpop.f32.mrb[0].mxu0
  %v3453 = vpop.f32.mrb[0].mxu0
  %v3454 = vadd.f32 0.0, %v3453
  %v3455 = vpop.f32.mrb[0].mxu0
  %3456 = vmatprep.mubr.bf16.mxu0 0
  %3457 = vmatmul.mubr.bf16.gmra.mrb[0].mxu0 %v3371
  %v3458 = vpop.f32.mrb[0].mxu0
  %v3459 = vadd.f32 0.0, %v3458
  %v3460 = vpop.f32.mrb[0].mxu0
  %v3461 = vpop.f32.mrb[0].mxu0
  %v3462 = vadd.f32 0.0, %v3461
  %v3463 = vpop.f32.mrb[0].mxu0
  %3464 = vmatprep.mubr.bf16.mxu0 0
  %3465 = vmatmul.mubr.bf16.gmra.mrb[0].mxu0 %v3374
  %v3466 = vpop.f32.mrb[0].mxu0
  %v3467 = vadd.f32 0.0, %v3466
  %v3468 = vpop.f32.mrb[0].mxu0
  %v3469 = vpop.f32.mrb[0].mxu0
  %v3470 = vadd.f32 0.0, %v3469
  %v3471 = vpop.f32.mrb[0].mxu0
  %3472 = vdwg.mxu0
  %s3473 = scalar_lea.vmem [#allocation4], 128
  %3474 = vst.msk [vmem:[%s3473] sm:$0xff] %vm597, %v3411
  %3475 = vst.msk [vmem:[%s3473 + $0x8] sm:$0xff] %vm597, %v3414
  %3476 = vst.msk [vmem:[%s3473 + $0x10] sm:$0xff] %vm597, %v3419
  %3477 = vst.msk [vmem:[%s3473 + $0x18] sm:$0xff] %vm597, %v3422
  %3478 = vst.msk [vmem:[%s3473 + $0x20] sm:$0xff] %vm597, %v3427
  %3479 = vst.msk [vmem:[%s3473 + $0x28] sm:$0xff] %vm597, %v3430
  %3480 = vst.msk [vmem:[%s3473 + $0x30] sm:$0xff] %vm597, %v3435
  %3481 = vst.msk [vmem:[%s3473 + $0x38] sm:$0xff] %vm597, %v3438
  %3482 = vst.msk [vmem:[%s3473 + $0x40] sm:$0xff] %vm597, %v3443
  %3483 = vst.msk [vmem:[%s3473 + $0x48] sm:$0xff] %vm597, %v3446
  %3484 = vst.msk [vmem:[%s3473 + $0x50] sm:$0xff] %vm597, %v3451
  %3485 = vst.msk [vmem:[%s3473 + $0x58] sm:$0xff] %vm597, %v3454
  %3486 = vst.msk [vmem:[%s3473 + $0x60] sm:$0xff] %vm597, %v3459
  %3487 = vst.msk [vmem:[%s3473 + $0x68] sm:$0xff] %vm597, %v3462
  %3488 = vst.msk [vmem:[%s3473 + $0x70] sm:$0xff] %vm597, %v3467
  %3489 = vst.msk [vmem:[%s3473 + $0x78] sm:$0xff] %vm597, %v3470
  %v3490 = vsel %vm597, %v3411, 0.0
  %v3491 = vsel %vm597, %v3414, 0.0
  %v3492 = vadd.f32 %v3490, %v3491
  %v3493 = vsel %vm597, %v3419, 0.0
  %v3494 = vadd.f32 %v3492, %v3493
  %v3495 = vsel %vm597, %v3422, 0.0
  %v3496 = vadd.f32 %v3494, %v3495
  %v3497 = vsel %vm597, %v3427, 0.0
  %v3498 = vadd.f32 %v3496, %v3497
  %v3499 = vsel %vm597, %v3430, 0.0
  %v3500 = vadd.f32 %v3498, %v3499
  %v3501 = vsel %vm597, %v3435, 0.0
  %v3502 = vadd.f32 %v3500, %v3501
  %v3503 = vsel %vm597, %v3438, 0.0
  %v3504 = vadd.f32 %v3502, %v3503
  %v3505 = vsel %vm597, %v3443, 0.0
  %v3506 = vadd.f32 %v3504, %v3505
  %v3507 = vsel %vm597, %v3446, 0.0
  %v3508 = vadd.f32 %v3506, %v3507
  %v3509 = vsel %vm597, %v3451, 0.0
  %v3510 = vadd.f32 %v3508, %v3509
  %v3511 = vsel %vm597, %v3454, 0.0
  %v3512 = vadd.f32 %v3510, %v3511
  %v3513 = vsel %vm597, %v3459, 0.0
  %v3514 = vadd.f32 %v3512, %v3513
  %v3515 = vsel %vm597, %v3462, 0.0
  %v3516 = vadd.f32 %v3514, %v3515
  %v3517 = vsel %vm597, %v3467, 0.0
  %v3518 = vadd.f32 %v3516, %v3517
  %v3519 = vsel %vm597, %v3470, 0.0
  %v3520 = vadd.f32 %v3518, %v3519
  %v3521 = vrot.slane %v3520, 4
  %v3522 = vadd.f32 %v3520, %v3521
  %v3523 = vrot.slane %v3522, 2
  %v3524 = vadd.f32 %v3522, %v3523
  %v3525 = vrot.slane %v3524, 1
  %v3526 = vadd.f32 %v3524, %v3525
  %v3527 = vadd.f32 %v2968, %v3526
  %v3528 = vmul.f32 %v3411, %v3411
  %v3529 = vmul.f32 %v3414, %v3414
  %v3530 = vmul.f32 %v3419, %v3419
  %v3531 = vmul.f32 %v3422, %v3422
  %v3532 = vmul.f32 %v3427, %v3427
  %v3533 = vmul.f32 %v3430, %v3430
  %v3534 = vmul.f32 %v3435, %v3435
  %v3535 = vmul.f32 %v3438, %v3438
  %v3536 = vmul.f32 %v3443, %v3443
  %v3537 = vmul.f32 %v3446, %v3446
  %v3538 = vmul.f32 %v3451, %v3451
  %v3539 = vmul.f32 %v3454, %v3454
  %v3540 = vmul.f32 %v3459, %v3459
  %v3541 = vmul.f32 %v3462, %v3462
  %v3542 = vmul.f32 %v3467, %v3467
  %v3543 = vmul.f32 %v3470, %v3470
  %v3544 = vsel %vm597, %v3528, 0.0
  %v3545 = vsel %vm597, %v3529, 0.0
  %v3546 = vadd.f32 %v3544, %v3545
  %v3547 = vsel %vm597, %v3530, 0.0
  %v3548 = vadd.f32 %v3546, %v3547
  %v3549 = vsel %vm597, %v3531, 0.0
  %v3550 = vadd.f32 %v3548, %v3549
  %v3551 = vsel %vm597, %v3532, 0.0
  %v3552 = vadd.f32 %v3550, %v3551
  %v3553 = vsel %vm597, %v3533, 0.0
  %v3554 = vadd.f32 %v3552, %v3553
  %v3555 = vsel %vm597, %v3534, 0.0
  %v3556 = vadd.f32 %v3554, %v3555
  %v3557 = vsel %vm597, %v3535, 0.0
  %v3558 = vadd.f32 %v3556, %v3557
  %v3559 = vsel %vm597, %v3536, 0.0
  %v3560 = vadd.f32 %v3558, %v3559
  %v3561 = vsel %vm597, %v3537, 0.0
  %v3562 = vadd.f32 %v3560, %v3561
  %v3563 = vsel %vm597, %v3538, 0.0
  %v3564 = vadd.f32 %v3562, %v3563
  %v3565 = vsel %vm597, %v3539, 0.0
  %v3566 = vadd.f32 %v3564, %v3565
  %v3567 = vsel %vm597, %v3540, 0.0
  %v3568 = vadd.f32 %v3566, %v3567
  %v3569 = vsel %vm597, %v3541, 0.0
  %v3570 = vadd.f32 %v3568, %v3569
  %v3571 = vsel %vm597, %v3542, 0.0
  %v3572 = vadd.f32 %v3570, %v3571
  %v3573 = vsel %vm597, %v3543, 0.0
  %v3574 = vadd.f32 %v3572, %v3573
  %v3575 = vrot.slane %v3574, 4
  %v3576 = vadd.f32 %v3574, %v3575
  %v3577 = vrot.slane %v3576, 2
  %v3578 = vadd.f32 %v3576, %v3577
  %v3579 = vrot.slane %v3578, 1
  %v3580 = vadd.f32 %v3578, %v3579
  %v3581 = vadd.f32 %v3022, %v3580
  %v3582 = vld [vmem:[%s2398] sm:$0xff]
  %v3583 = vld [vmem:[%s2398 + $0x10] sm:$0xff]
  %v3584 = vld [vmem:[%s2398 + $0x20] sm:$0xff]
  %v3585 = vld [vmem:[%s2398 + $0x30] sm:$0xff]
  %v3586 = vld [vmem:[%s2398 + $0x40] sm:$0xff]
  %v3587 = vld [vmem:[%s2398 + $0x50] sm:$0xff]
  %v3588 = vld [vmem:[%s2398 + $0x60] sm:$0xff]
  %v3589 = vld [vmem:[%s2398 + $0x70] sm:$0xff]
  %v3590 = vld [vmem:[%s2398 + $0xa0] sm:$0xff]
  %v3591 = vld [vmem:[%s2398 + $0xb0] sm:$0xff]
  %v3592 = vld [vmem:[%s2398 + $0xc0] sm:$0xff]
  %v3593 = vld [vmem:[%s2398 + $0xd0] sm:$0xff]
  %v3594 = vld [vmem:[%s2398 + $0xe0] sm:$0xff]
  %v3595 = vld [vmem:[%s2398 + $0xf0] sm:$0xff]
  %v3596 = vld [vmem:[%s2398 + $0x100] sm:$0xff]
  %v3597 = vld [vmem:[%s2398 + $0x110] sm:$0xff]
  %v3598 = vld [vmem:[%s2398 + $0x1] sm:$0xff]
  %v3599 = vld [vmem:[%s2398 + $0x11] sm:$0xff]
  %v3600 = vld [vmem:[%s2398 + $0x21] sm:$0xff]
  %v3601 = vld [vmem:[%s2398 + $0x31] sm:$0xff]
  %v3602 = vld [vmem:[%s2398 + $0x41] sm:$0xff]
  %v3603 = vld [vmem:[%s2398 + $0x51] sm:$0xff]
  %v3604 = vld [vmem:[%s2398 + $0x61] sm:$0xff]
  %v3605 = vld [vmem:[%s2398 + $0x71] sm:$0xff]
  %v3606 = vld [vmem:[%s2398 + $0xa1] sm:$0xff]
  %v3607 = vld [vmem:[%s2398 + $0xb1] sm:$0xff]
  %v3608 = vld [vmem:[%s2398 + $0xc1] sm:$0xff]
  %v3609 = vld [vmem:[%s2398 + $0xd1] sm:$0xff]
  %v3610 = vld [vmem:[%s2398 + $0xe1] sm:$0xff]
  %v3611 = vld [vmem:[%s2398 + $0xf1] sm:$0xff]
  %v3612 = vld [vmem:[%s2398 + $0x101] sm:$0xff]
  %v3613 = vld [vmem:[%s2398 + $0x111] sm:$0xff]
  %s3614 = scalar_lea.vmem [#allocation3], 32
  %v3615 = vld [vmem:[%s3614] sm:$0xff]
  %v3616 = vld [vmem:[%s3614 + $0x10] sm:$0xff]
  %v3617 = vld [vmem:[%s3614 + $0x20] sm:$0xff]
  %v3618 = vld [vmem:[%s3614 + $0x30] sm:$0xff]
  %v3619 = vld [vmem:[%s3614 + $0x40] sm:$0xff]
  %v3620 = vld [vmem:[%s3614 + $0x50] sm:$0xff]
  %v3621 = vld [vmem:[%s3614 + $0x60] sm:$0xff]
  %v3622 = vld [vmem:[%s3614 + $0x70] sm:$0xff]
  %v3623 = vld [vmem:[%s3614 + $0xa0] sm:$0xff]
  %v3624 = vld [vmem:[%s3614 + $0xb0] sm:$0xff]
  %v3625 = vld [vmem:[%s3614 + $0xc0] sm:$0xff]
  %v3626 = vld [vmem:[%s3614 + $0xd0] sm:$0xff]
  %v3627 = vld [vmem:[%s3614 + $0xe0] sm:$0xff]
  %v3628 = vld [vmem:[%s3614 + $0xf0] sm:$0xff]
  %v3629 = vld [vmem:[%s3614 + $0x100] sm:$0xff]
  %v3630 = vld [vmem:[%s3614 + $0x110] sm:$0xff]
  %v3631 = vld [vmem:[%s3614 + $0x1] sm:$0xff]
  %v3632 = vld [vmem:[%s3614 + $0x11] sm:$0xff]
  %v3633 = vld [vmem:[%s3614 + $0x21] sm:$0xff]
  %v3634 = vld [vmem:[%s3614 + $0x31] sm:$0xff]
  %v3635 = vld [vmem:[%s3614 + $0x41] sm:$0xff]
  %v3636 = vld [vmem:[%s3614 + $0x51] sm:$0xff]
  %v3637 = vld [vmem:[%s3614 + $0x61] sm:$0xff]
  %v3638 = vld [vmem:[%s3614 + $0x71] sm:$0xff]
  %v3639 = vld [vmem:[%s3614 + $0xa1] sm:$0xff]
  %v3640 = vld [vmem:[%s3614 + $0xb1] sm:$0xff]
  %v3641 = vld [vmem:[%s3614 + $0xc1] sm:$0xff]
  %v3642 = vld [vmem:[%s3614 + $0xd1] sm:$0xff]
  %v3643 = vld [vmem:[%s3614 + $0xe1] sm:$0xff]
  %v3644 = vld [vmem:[%s3614 + $0xf1] sm:$0xff]
  %v3645 = vld [vmem:[%s3614 + $0x101] sm:$0xff]
  %v3646 = vld [vmem:[%s3614 + $0x111] sm:$0xff]
  %3663 = vrot.lane.b32.xlu0 %v3598, 8
  %v3664 = vpop.permute.xlu0 %3663
  %3665 = vrot.lane.b32.xlu0 %v3599, 8
  %v3666 = vpop.permute.xlu0 %3665
  %3667 = vrot.lane.b32.xlu0 %v3600, 8
  %v3668 = vpop.permute.xlu0 %3667
  %3669 = vrot.lane.b32.xlu0 %v3601, 8
  %v3670 = vpop.permute.xlu0 %3669
  %3671 = vrot.lane.b32.xlu0 %v3602, 8
  %v3672 = vpop.permute.xlu0 %3671
  %3673 = vrot.lane.b32.xlu0 %v3603, 8
  %v3674 = vpop.permute.xlu0 %3673
  %3675 = vrot.lane.b32.xlu0 %v3604, 8
  %v3676 = vpop.permute.xlu0 %3675
  %3677 = vrot.lane.b32.xlu0 %v3605, 8
  %v3678 = vpop.permute.xlu0 %3677
  %3679 = vrot.lane.b32.xlu0 %v3606, 8
  %v3680 = vpop.permute.xlu0 %3679
  %3681 = vrot.lane.b32.xlu0 %v3607, 8
  %v3682 = vpop.permute.xlu0 %3681
  %3683 = vrot.lane.b32.xlu0 %v3608, 8
  %v3684 = vpop.permute.xlu0 %3683
  %3685 = vrot.lane.b32.xlu0 %v3609, 8
  %v3686 = vpop.permute.xlu0 %3685
  %3687 = vrot.lane.b32.xlu0 %v3610, 8
  %v3688 = vpop.permute.xlu0 %3687
  %3689 = vrot.lane.b32.xlu0 %v3611, 8
  %v3690 = vpop.permute.xlu0 %3689
  %3691 = vrot.lane.b32.xlu0 %v3612, 8
  %v3692 = vpop.permute.xlu0 %3691
  %3693 = vrot.lane.b32.xlu0 %v3613, 8
  %v3694 = vpop.permute.xlu0 %3693
  %3727 = vrot.lane.b32.xlu0 %v3615, 16
  %v3728 = vpop.permute.xlu0 %3727
  %3729 = vrot.lane.b32.xlu0 %v3616, 16
  %v3730 = vpop.permute.xlu0 %3729
  %3731 = vrot.lane.b32.xlu0 %v3617, 16
  %v3732 = vpop.permute.xlu0 %3731
  %3733 = vrot.lane.b32.xlu0 %v3618, 16
  %v3734 = vpop.permute.xlu0 %3733
  %3735 = vrot.lane.b32.xlu0 %v3619, 16
  %v3736 = vpop.permute.xlu0 %3735
  %3737 = vrot.lane.b32.xlu0 %v3620, 16
  %v3738 = vpop.permute.xlu0 %3737
  %3739 = vrot.lane.b32.xlu0 %v3621, 16
  %v3740 = vpop.permute.xlu0 %3739
  %3741 = vrot.lane.b32.xlu0 %v3622, 16
  %v3742 = vpop.permute.xlu0 %3741
  %3743 = vrot.lane.b32.xlu0 %v3623, 16
  %v3744 = vpop.permute.xlu0 %3743
  %3745 = vrot.lane.b32.xlu0 %v3624, 16
  %v3746 = vpop.permute.xlu0 %3745
  %3747 = vrot.lane.b32.xlu0 %v3625, 16
  %v3748 = vpop.permute.xlu0 %3747
  %3749 = vrot.lane.b32.xlu0 %v3626, 16
  %v3750 = vpop.permute.xlu0 %3749
  %3751 = vrot.lane.b32.xlu0 %v3627, 16
  %v3752 = vpop.permute.xlu0 %3751
  %3753 = vrot.lane.b32.xlu0 %v3628, 16
  %v3754 = vpop.permute.xlu0 %3753
  %3755 = vrot.lane.b32.xlu0 %v3629, 16
  %v3756 = vpop.permute.xlu0 %3755
  %3757 = vrot.lane.b32.xlu0 %v3630, 16
  %v3758 = vpop.permute.xlu0 %3757
  %3791 = vrot.lane.b32.xlu0 %v3631, 24
  %v3792 = vpop.permute.xlu0 %3791
  %3793 = vrot.lane.b32.xlu0 %v3632, 24
  %v3794 = vpop.permute.xlu0 %3793
  %3795 = vrot.lane.b32.xlu0 %v3633, 24
  %v3796 = vpop.permute.xlu0 %3795
  %3797 = vrot.lane.b32.xlu0 %v3634, 24
  %v3798 = vpop.permute.xlu0 %3797
  %3799 = vrot.lane.b32.xlu0 %v3635, 24
  %v3800 = vpop.permute.xlu0 %3799
  %3801 = vrot.lane.b32.xlu0 %v3636, 24
  %v3802 = vpop.permute.xlu0 %3801
  %3803 = vrot.lane.b32.xlu0 %v3637, 24
  %v3804 = vpop.permute.xlu0 %3803
  %3805 = vrot.lane.b32.xlu0 %v3638, 24
  %v3806 = vpop.permute.xlu0 %3805
  %3807 = vrot.lane.b32.xlu0 %v3639, 24
  %v3808 = vpop.permute.xlu0 %3807
  %3809 = vrot.lane.b32.xlu0 %v3640, 24
  %v3810 = vpop.permute.xlu0 %3809
  %3811 = vrot.lane.b32.xlu0 %v3641, 24
  %v3812 = vpop.permute.xlu0 %3811
  %3813 = vrot.lane.b32.xlu0 %v3642, 24
  %v3814 = vpop.permute.xlu0 %3813
  %3815 = vrot.lane.b32.xlu0 %v3643, 24
  %v3816 = vpop.permute.xlu0 %3815
  %3817 = vrot.lane.b32.xlu0 %v3644, 24
  %v3818 = vpop.permute.xlu0 %3817
  %3819 = vrot.lane.b32.xlu0 %v3645, 24
  %v3820 = vpop.permute.xlu0 %3819
  %3821 = vrot.lane.b32.xlu0 %v3646, 24
  %v3822 = vpop.permute.xlu0 %3821
  %v3839 = vsel %vm1982, %v3582, %v3664
  %v3840 = vsel %vm1982, %v3583, %v3666
  %v3841 = vsel %vm1982, %v3584, %v3668
  %v3842 = vsel %vm1982, %v3585, %v3670
  %v3843 = vsel %vm1982, %v3586, %v3672
  %v3844 = vsel %vm1982, %v3587, %v3674
  %v3845 = vsel %vm1982, %v3588, %v3676
  %v3846 = vsel %vm1982, %v3589, %v3678
  %v3847 = vsel %vm1982, %v3590, %v3680
  %v3848 = vsel %vm1982, %v3591, %v3682
  %v3849 = vsel %vm1982, %v3592, %v3684
  %v3850 = vsel %vm1982, %v3593, %v3686
  %v3851 = vsel %vm1982, %v3594, %v3688
  %v3852 = vsel %vm1982, %v3595, %v3690
  %v3853 = vsel %vm1982, %v3596, %v3692
  %v3854 = vsel %vm1982, %v3597, %v3694
  %v3855 = vsel %vm2016, %v3839, %v3728
  %v3856 = vsel %vm2016, %v3840, %v3730
  %v3857 = vsel %vm2016, %v3841, %v3732
  %v3858 = vsel %vm2016, %v3842, %v3734
  %v3859 = vsel %vm2016, %v3843, %v3736
  %v3860 = vsel %vm2016, %v3844, %v3738
  %v3861 = vsel %vm2016, %v3845, %v3740
  %v3862 = vsel %vm2016, %v3846, %v3742
  %v3863 = vsel %vm2016, %v3847, %v3744
  %v3864 = vsel %vm2016, %v3848, %v3746
  %v3865 = vsel %vm2016, %v3849, %v3748
  %v3866 = vsel %vm2016, %v3850, %v3750
  %v3867 = vsel %vm2016, %v3851, %v3752
  %v3868 = vsel %vm2016, %v3852, %v3754
  %v3869 = vsel %vm2016, %v3853, %v3756
  %v3870 = vsel %vm2016, %v3854, %v3758
  %v3871 = vsel %vm2050, %v3855, %v3792
  %v3872 = vsel %vm2050, %v3856, %v3794
  %v3873 = vsel %vm2050, %v3857, %v3796
  %v3874 = vsel %vm2050, %v3858, %v3798
  %v3875 = vsel %vm2050, %v3859, %v3800
  %v3876 = vsel %vm2050, %v3860, %v3802
  %v3877 = vsel %vm2050, %v3861, %v3804
  %v3878 = vsel %vm2050, %v3862, %v3806
  %v3879 = vsel %vm2050, %v3863, %v3808
  %v3880 = vsel %vm2050, %v3864, %v3810
  %v3881 = vsel %vm2050, %v3865, %v3812
  %v3882 = vsel %vm2050, %v3866, %v3814
  %v3883 = vsel %vm2050, %v3867, %v3816
  %v3884 = vsel %vm2050, %v3868, %v3818
  %v3885 = vsel %vm2050, %v3869, %v3820
  %v3886 = vsel %vm2050, %v3870, %v3822
  %v3887 = vpack.c.bf16 %v3872, %v3871
  %v3888 = vpack.c.bf16 %v3874, %v3873
  %v3889 = vpack.c.bf16 %v3876, %v3875
  %v3890 = vpack.c.bf16 %v3878, %v3877
  %v3891 = vpack.c.bf16 %v3880, %v3879
  %v3892 = vpack.c.bf16 %v3882, %v3881
  %v3893 = vpack.c.bf16 %v3884, %v3883
  %v3894 = vpack.c.bf16 %v3886, %v3885
  %s3895 = scalar_lea.vmem %s2, 32
  %v3896 = vld [vmem:[%s3895] sm:$0xf]
  %v3897 = vld [vmem:[%s3895 + $0x4] sm:$0xf]
  %v3898 = vld [vmem:[%s3895 + $0x8] sm:$0xf]
  %v3899 = vld [vmem:[%s3895 + $0xc] sm:$0xf]
  %v3904 = vunpack.c.l.b16 %v3896
  %v3905 = vunpack.c.l.b16 %v3897
  %v3906 = vunpack.c.l.b16 %v3898
  %v3907 = vunpack.c.l.b16 %v3899
  %v3908 = vpack.c.b16 %v3905, %v3904
  %v3909 = vpack.c.b16 %v3907, %v3906
  %v3913 = vsel %vm2084, %v3887, 0
  %v3916 = vsel %vm2084, %v3888, 0
  %v3919 = vsel %vm2084, %v3889, 0
  %v3922 = vsel %vm2084, %v3890, 0
  %v3925 = vsel %vm2084, %v3891, 0
  %v3928 = vsel %vm2084, %v3892, 0
  %v3931 = vsel %vm2084, %v3893, 0
  %v3934 = vsel %vm2084, %v3894, 0
  %3936 = vmatprep.subr.bf16.mxu0 0
  %3937 = vmatpush1.bf16.msra.mxu0 %v3908
  %3938 = vmatprep.subr.bf16.mxu0 0
  %3939 = vmatpush1.bf16.msra.mxu0 %v3909
  %3940 = vmatprep.subr.bf16.mxu0 0
  %3941 = vmatpush1.bf16.msra.mxu0 0
  %3942 = vmatprep.subr.bf16.mxu0 0
  %3943 = vmatpush1.bf16.msra.mxu0 0
  %3944 = vmatprep.subr.bf16.mxu0 0
  %3945 = vmatpush1.bf16.msra.mxu0 0
  %3946 = vmatprep.subr.bf16.mxu0 0
  %3947 = vmatpush1.bf16.msra.mxu0 0
  %3948 = vmatprep.subr.bf16.mxu0 0
  %3949 = vmatpush1.bf16.msra.mxu0 0
  %3950 = vmatprep.subr.bf16.mxu0 0
  %3951 = vmatpush1.bf16.msra.mxu0 0
  %3952 = vmatprep.subr.bf16.mxu0 0
  %3953 = vmatpush1.bf16.msra.mxu0 0
  %3954 = vmatprep.subr.bf16.mxu0 0
  %3955 = vmatpush1.bf16.msra.mxu0 0
  %3956 = vmatprep.subr.bf16.mxu0 0
  %3957 = vmatpush1.bf16.msra.mxu0 0
  %3958 = vmatprep.subr.bf16.mxu0 0
  %3959 = vmatpush1.bf16.msra.mxu0 0
  %3960 = vmatprep.subr.bf16.mxu0 0
  %3961 = vmatpush1.bf16.msra.mxu0 0
  %3962 = vmatprep.subr.bf16.mxu0 0
  %3963 = vmatpush1.bf16.msra.mxu0 0
  %3964 = vmatprep.subr.bf16.mxu0 0
  %3965 = vmatpush1.bf16.msra.mxu0 0
  %3966 = vmatprep.subr.bf16.mxu0 0
  %3967 = vmatpush1.bf16.msra.mxu0 0
  %3968 = vmatprep.mubr.bf16.mxu0 0
  %3969 = vmatmul.mubr.bf16.gmra.mrb[0].mxu0 %v3913
  %v3970 = vpop.f32.mrb[0].mxu0
  %v3971 = vadd.f32 0.0, %v3970
  %v3972 = vpop.f32.mrb[0].mxu0
  %v3973 = vpop.f32.mrb[0].mxu0
  %v3974 = vadd.f32 0.0, %v3973
  %v3975 = vpop.f32.mrb[0].mxu0
  %3976 = vmatprep.mubr.bf16.mxu0 0
  %3977 = vmatmul.mubr.bf16.gmra.mrb[0].mxu0 %v3916
  %v3978 = vpop.f32.mrb[0].mxu0
  %v3979 = vadd.f32 0.0, %v3978
  %v3980 = vpop.f32.mrb[0].mxu0
  %v3981 = vpop.f32.mrb[0].mxu0
  %v3982 = vadd.f32 0.0, %v3981
  %v3983 = vpop.f32.mrb[0].mxu0
  %3984 = vmatprep.mubr.bf16.mxu0 0
  %3985 = vmatmul.mubr.bf16.gmra.mrb[0].mxu0 %v3919
  %v3986 = vpop.f32.mrb[0].mxu0
  %v3987 = vadd.f32 0.0, %v3986
  %v3988 = vpop.f32.mrb[0].mxu0
  %v3989 = vpop.f32.mrb[0].mxu0
  %v3990 = vadd.f32 0.0, %v3989
  %v3991 = vpop.f32.mrb[0].mxu0
  %3992 = vmatprep.mubr.bf16.mxu0 0
  %3993 = vmatmul.mubr.bf16.gmra.mrb[0].mxu0 %v3922
  %v3994 = vpop.f32.mrb[0].mxu0
  %v3995 = vadd.f32 0.0, %v3994
  %v3996 = vpop.f32.mrb[0].mxu0
  %v3997 = vpop.f32.mrb[0].mxu0
  %v3998 = vadd.f32 0.0, %v3997
  %v3999 = vpop.f32.mrb[0].mxu0
  %4000 = vmatprep.mubr.bf16.mxu0 0
  %4001 = vmatmul.mubr.bf16.gmra.mrb[0].mxu0 %v3925
  %v4002 = vpop.f32.mrb[0].mxu0
  %v4003 = vadd.f32 0.0, %v4002
  %v4004 = vpop.f32.mrb[0].mxu0
  %v4005 = vpop.f32.mrb[0].mxu0
  %v4006 = vadd.f32 0.0, %v4005
  %v4007 = vpop.f32.mrb[0].mxu0
  %4008 = vmatprep.mubr.bf16.mxu0 0
  %4009 = vmatmul.mubr.bf16.gmra.mrb[0].mxu0 %v3928
  %v4010 = vpop.f32.mrb[0].mxu0
  %v4011 = vadd.f32 0.0, %v4010
  %v4012 = vpop.f32.mrb[0].mxu0
  %v4013 = vpop.f32.mrb[0].mxu0
  %v4014 = vadd.f32 0.0, %v4013
  %v4015 = vpop.f32.mrb[0].mxu0
  %4016 = vmatprep.mubr.bf16.mxu0 0
  %4017 = vmatmul.mubr.bf16.gmra.mrb[0].mxu0 %v3931
  %v4018 = vpop.f32.mrb[0].mxu0
  %v4019 = vadd.f32 0.0, %v4018
  %v4020 = vpop.f32.mrb[0].mxu0
  %v4021 = vpop.f32.mrb[0].mxu0
  %v4022 = vadd.f32 0.0, %v4021
  %v4023 = vpop.f32.mrb[0].mxu0
  %4024 = vmatprep.mubr.bf16.mxu0 0
  %4025 = vmatmul.mubr.bf16.gmra.mrb[0].mxu0 %v3934
  %v4026 = vpop.f32.mrb[0].mxu0
  %v4027 = vadd.f32 0.0, %v4026
  %v4028 = vpop.f32.mrb[0].mxu0
  %v4029 = vpop.f32.mrb[0].mxu0
  %v4030 = vadd.f32 0.0, %v4029
  %v4031 = vpop.f32.mrb[0].mxu0
  %4032 = vdwg.mxu0
  %s4033 = scalar_lea.vmem [#allocation4], 256
  %4034 = vst.msk [vmem:[%s4033] sm:$0xff] %vm597, %v3971
  %4035 = vst.msk [vmem:[%s4033 + $0x8] sm:$0xff] %vm597, %v3974
  %4036 = vst.msk [vmem:[%s4033 + $0x10] sm:$0xff] %vm597, %v3979
  %4037 = vst.msk [vmem:[%s4033 + $0x18] sm:$0xff] %vm597, %v3982
  %4038 = vst.msk [vmem:[%s4033 + $0x20] sm:$0xff] %vm597, %v3987
  %4039 = vst.msk [vmem:[%s4033 + $0x28] sm:$0xff] %vm597, %v3990
  %4040 = vst.msk [vmem:[%s4033 + $0x30] sm:$0xff] %vm597, %v3995
  %4041 = vst.msk [vmem:[%s4033 + $0x38] sm:$0xff] %vm597, %v3998
  %4042 = vst.msk [vmem:[%s4033 + $0x40] sm:$0xff] %vm597, %v4003
  %4043 = vst.msk [vmem:[%s4033 + $0x48] sm:$0xff] %vm597, %v4006
  %4044 = vst.msk [vmem:[%s4033 + $0x50] sm:$0xff] %vm597, %v4011
  %4045 = vst.msk [vmem:[%s4033 + $0x58] sm:$0xff] %vm597, %v4014
  %4046 = vst.msk [vmem:[%s4033 + $0x60] sm:$0xff] %vm597, %v4019
  %4047 = vst.msk [vmem:[%s4033 + $0x68] sm:$0xff] %vm597, %v4022
  %4048 = vst.msk [vmem:[%s4033 + $0x70] sm:$0xff] %vm597, %v4027
  %4049 = vst.msk [vmem:[%s4033 + $0x78] sm:$0xff] %vm597, %v4030
  %v4050 = vsel %vm597, %v3971, 0.0
  %v4051 = vsel %vm597, %v3974, 0.0
  %v4052 = vadd.f32 %v4050, %v4051
  %v4053 = vsel %vm597, %v3979, 0.0
  %v4054 = vadd.f32 %v4052, %v4053
  %v4055 = vsel %vm597, %v3982, 0.0
  %v4056 = vadd.f32 %v4054, %v4055
  %v4057 = vsel %vm597, %v3987, 0.0
  %v4058 = vadd.f32 %v4056, %v4057
  %v4059 = vsel %vm597, %v3990, 0.0
  %v4060 = vadd.f32 %v4058, %v4059
  %v4061 = vsel %vm597, %v3995, 0.0
  %v4062 = vadd.f32 %v4060, %v4061
  %v4063 = vsel %vm597, %v3998, 0.0
  %v4064 = vadd.f32 %v4062, %v4063
  %v4065 = vsel %vm597, %v4003, 0.0
  %v4066 = vadd.f32 %v4064, %v4065
  %v4067 = vsel %vm597, %v4006, 0.0
  %v4068 = vadd.f32 %v4066, %v4067
  %v4069 = vsel %vm597, %v4011, 0.0
  %v4070 = vadd.f32 %v4068, %v4069
  %v4071 = vsel %vm597, %v4014, 0.0
  %v4072 = vadd.f32 %v4070, %v4071
  %v4073 = vsel %vm597, %v4019, 0.0
  %v4074 = vadd.f32 %v4072, %v4073
  %v4075 = vsel %vm597, %v4022, 0.0
  %v4076 = vadd.f32 %v4074, %v4075
  %v4077 = vsel %vm597, %v4027, 0.0
  %v4078 = vadd.f32 %v4076, %v4077
  %v4079 = vsel %vm597, %v4030, 0.0
  %v4080 = vadd.f32 %v4078, %v4079
  %v4081 = vrot.slane %v4080, 4
  %v4082 = vadd.f32 %v4080, %v4081
  %v4083 = vrot.slane %v4082, 2
  %v4084 = vadd.f32 %v4082, %v4083
  %v4085 = vrot.slane %v4084, 1
  %v4086 = vadd.f32 %v4084, %v4085
  %v4087 = vadd.f32 %v3527, %v4086
  %v4088 = vmul.f32 %v3971, %v3971
  %v4089 = vmul.f32 %v3974, %v3974
  %v4090 = vmul.f32 %v3979, %v3979
  %v4091 = vmul.f32 %v3982, %v3982
  %v4092 = vmul.f32 %v3987, %v3987
  %v4093 = vmul.f32 %v3990, %v3990
  %v4094 = vmul.f32 %v3995, %v3995
  %v4095 = vmul.f32 %v3998, %v3998
  %v4096 = vmul.f32 %v4003, %v4003
  %v4097 = vmul.f32 %v4006, %v4006
  %v4098 = vmul.f32 %v4011, %v4011
  %v4099 = vmul.f32 %v4014, %v4014
  %v4100 = vmul.f32 %v4019, %v4019
  %v4101 = vmul.f32 %v4022, %v4022
  %v4102 = vmul.f32 %v4027, %v4027
  %v4103 = vmul.f32 %v4030, %v4030
  %v4104 = vsel %vm597, %v4088, 0.0
  %v4105 = vsel %vm597, %v4089, 0.0
  %v4106 = vadd.f32 %v4104, %v4105
  %v4107 = vsel %vm597, %v4090, 0.0
  %v4108 = vadd.f32 %v4106, %v4107
  %v4109 = vsel %vm597, %v4091, 0.0
  %v4110 = vadd.f32 %v4108, %v4109
  %v4111 = vsel %vm597, %v4092, 0.0
  %v4112 = vadd.f32 %v4110, %v4111
  %v4113 = vsel %vm597, %v4093, 0.0
  %v4114 = vadd.f32 %v4112, %v4113
  %v4115 = vsel %vm597, %v4094, 0.0
  %v4116 = vadd.f32 %v4114, %v4115
  %v4117 = vsel %vm597, %v4095, 0.0
  %v4118 = vadd.f32 %v4116, %v4117
  %v4119 = vsel %vm597, %v4096, 0.0
  %v4120 = vadd.f32 %v4118, %v4119
  %v4121 = vsel %vm597, %v4097, 0.0
  %v4122 = vadd.f32 %v4120, %v4121
  %v4123 = vsel %vm597, %v4098, 0.0
  %v4124 = vadd.f32 %v4122, %v4123
  %v4125 = vsel %vm597, %v4099, 0.0
  %v4126 = vadd.f32 %v4124, %v4125
  %v4127 = vsel %vm597, %v4100, 0.0
  %v4128 = vadd.f32 %v4126, %v4127
  %v4129 = vsel %vm597, %v4101, 0.0
  %v4130 = vadd.f32 %v4128, %v4129
  %v4131 = vsel %vm597, %v4102, 0.0
  %v4132 = vadd.f32 %v4130, %v4131
  %v4133 = vsel %vm597, %v4103, 0.0
  %v4134 = vadd.f32 %v4132, %v4133
  %v4135 = vrot.slane %v4134, 4
  %v4136 = vadd.f32 %v4134, %v4135
  %v4137 = vrot.slane %v4136, 2
  %v4138 = vadd.f32 %v4136, %v4137
  %v4139 = vrot.slane %v4138, 1
  %v4140 = vadd.f32 %v4138, %v4139
  %v4141 = vadd.f32 %v3581, %v4140
  %v4142 = vld [vmem:[%s2398 + $0x1] sm:$0xff]
  %v4143 = vld [vmem:[%s2398 + $0x11] sm:$0xff]
  %v4144 = vld [vmem:[%s2398 + $0x21] sm:$0xff]
  %v4145 = vld [vmem:[%s2398 + $0x31] sm:$0xff]
  %v4146 = vld [vmem:[%s2398 + $0x41] sm:$0xff]
  %v4147 = vld [vmem:[%s2398 + $0x51] sm:$0xff]
  %v4148 = vld [vmem:[%s2398 + $0x61] sm:$0xff]
  %v4149 = vld [vmem:[%s2398 + $0x71] sm:$0xff]
  %v4150 = vld [vmem:[%s2398 + $0xa1] sm:$0xff]
  %v4151 = vld [vmem:[%s2398 + $0xb1] sm:$0xff]
  %v4152 = vld [vmem:[%s2398 + $0xc1] sm:$0xff]
  %v4153 = vld [vmem:[%s2398 + $0xd1] sm:$0xff]
  %v4154 = vld [vmem:[%s2398 + $0xe1] sm:$0xff]
  %v4155 = vld [vmem:[%s2398 + $0xf1] sm:$0xff]
  %v4156 = vld [vmem:[%s2398 + $0x101] sm:$0xff]
  %v4157 = vld [vmem:[%s2398 + $0x111] sm:$0xff]
  %v4158 = vld [vmem:[%s2398 + $0x2] sm:$0xff]
  %v4159 = vld [vmem:[%s2398 + $0x12] sm:$0xff]
  %v4160 = vld [vmem:[%s2398 + $0x22] sm:$0xff]
  %v4161 = vld [vmem:[%s2398 + $0x32] sm:$0xff]
  %v4162 = vld [vmem:[%s2398 + $0x42] sm:$0xff]
  %v4163 = vld [vmem:[%s2398 + $0x52] sm:$0xff]
  %v4164 = vld [vmem:[%s2398 + $0x62] sm:$0xff]
  %v4165 = vld [vmem:[%s2398 + $0x72] sm:$0xff]
  %v4166 = vld [vmem:[%s2398 + $0xa2] sm:$0xff]
  %v4167 = vld [vmem:[%s2398 + $0xb2] sm:$0xff]
  %v4168 = vld [vmem:[%s2398 + $0xc2] sm:$0xff]
  %v4169 = vld [vmem:[%s2398 + $0xd2] sm:$0xff]
  %v4170 = vld [vmem:[%s2398 + $0xe2] sm:$0xff]
  %v4171 = vld [vmem:[%s2398 + $0xf2] sm:$0xff]
  %v4172 = vld [vmem:[%s2398 + $0x102] sm:$0xff]
  %v4173 = vld [vmem:[%s2398 + $0x112] sm:$0xff]
  %v4174 = vld [vmem:[%s3614 + $0x1] sm:$0xff]
  %v4175 = vld [vmem:[%s3614 + $0x11] sm:$0xff]
  %v4176 = vld [vmem:[%s3614 + $0x21] sm:$0xff]
  %v4177 = vld [vmem:[%s3614 + $0x31] sm:$0xff]
  %v4178 = vld [vmem:[%s3614 + $0x41] sm:$0xff]
  %v4179 = vld [vmem:[%s3614 + $0x51] sm:$0xff]
  %v4180 = vld [vmem:[%s3614 + $0x61] sm:$0xff]
  %v4181 = vld [vmem:[%s3614 + $0x71] sm:$0xff]
  %v4182 = vld [vmem:[%s3614 + $0xa1] sm:$0xff]
  %v4183 = vld [vmem:[%s3614 + $0xb1] sm:$0xff]
  %v4184 = vld [vmem:[%s3614 + $0xc1] sm:$0xff]
  %v4185 = vld [vmem:[%s3614 + $0xd1] sm:$0xff]
  %v4186 = vld [vmem:[%s3614 + $0xe1] sm:$0xff]
  %v4187 = vld [vmem:[%s3614 + $0xf1] sm:$0xff]
  %v4188 = vld [vmem:[%s3614 + $0x101] sm:$0xff]
  %v4189 = vld [vmem:[%s3614 + $0x111] sm:$0xff]
  %v4190 = vld [vmem:[%s3614 + $0x2] sm:$0xff]
  %v4191 = vld [vmem:[%s3614 + $0x12] sm:$0xff]
  %v4192 = vld [vmem:[%s3614 + $0x22] sm:$0xff]
  %v4193 = vld [vmem:[%s3614 + $0x32] sm:$0xff]
  %v4194 = vld [vmem:[%s3614 + $0x42] sm:$0xff]
  %v4195 = vld [vmem:[%s3614 + $0x52] sm:$0xff]
  %v4196 = vld [vmem:[%s3614 + $0x62] sm:$0xff]
  %v4197 = vld [vmem:[%s3614 + $0x72] sm:$0xff]
  %v4198 = vld [vmem:[%s3614 + $0xa2] sm:$0xff]
  %v4199 = vld [vmem:[%s3614 + $0xb2] sm:$0xff]
  %v4200 = vld [vmem:[%s3614 + $0xc2] sm:$0xff]
  %v4201 = vld [vmem:[%s3614 + $0xd2] sm:$0xff]
  %v4202 = vld [vmem:[%s3614 + $0xe2] sm:$0xff]
  %v4203 = vld [vmem:[%s3614 + $0xf2] sm:$0xff]
  %v4204 = vld [vmem:[%s3614 + $0x102] sm:$0xff]
  %v4205 = vld [vmem:[%s3614 + $0x112] sm:$0xff]
  %4222 = vrot.lane.b32.xlu0 %v4158, 8
  %v4223 = vpop.permute.xlu0 %4222
  %4224 = vrot.lane.b32.xlu0 %v4159, 8
  %v4225 = vpop.permute.xlu0 %4224
  %4226 = vrot.lane.b32.xlu0 %v4160, 8
  %v4227 = vpop.permute.xlu0 %4226
  %4228 = vrot.lane.b32.xlu0 %v4161, 8
  %v4229 = vpop.permute.xlu0 %4228
  %4230 = vrot.lane.b32.xlu0 %v4162, 8
  %v4231 = vpop.permute.xlu0 %4230
  %4232 = vrot.lane.b32.xlu0 %v4163, 8
  %v4233 = vpop.permute.xlu0 %4232
  %4234 = vrot.lane.b32.xlu0 %v4164, 8
  %v4235 = vpop.permute.xlu0 %4234
  %4236 = vrot.lane.b32.xlu0 %v4165, 8
  %v4237 = vpop.permute.xlu0 %4236
  %4238 = vrot.lane.b32.xlu0 %v4166, 8
  %v4239 = vpop.permute.xlu0 %4238
  %4240 = vrot.lane.b32.xlu0 %v4167, 8
  %v4241 = vpop.permute.xlu0 %4240
  %4242 = vrot.lane.b32.xlu0 %v4168, 8
  %v4243 = vpop.permute.xlu0 %4242
  %4244 = vrot.lane.b32.xlu0 %v4169, 8
  %v4245 = vpop.permute.xlu0 %4244
  %4246 = vrot.lane.b32.xlu0 %v4170, 8
  %v4247 = vpop.permute.xlu0 %4246
  %4248 = vrot.lane.b32.xlu0 %v4171, 8
  %v4249 = vpop.permute.xlu0 %4248
  %4250 = vrot.lane.b32.xlu0 %v4172, 8
  %v4251 = vpop.permute.xlu0 %4250
  %4252 = vrot.lane.b32.xlu0 %v4173, 8
  %v4253 = vpop.permute.xlu0 %4252
  %4286 = vrot.lane.b32.xlu0 %v4174, 16
  %v4287 = vpop.permute.xlu0 %4286
  %4288 = vrot.lane.b32.xlu0 %v4175, 16
  %v4289 = vpop.permute.xlu0 %4288
  %4290 = vrot.lane.b32.xlu0 %v4176, 16
  %v4291 = vpop.permute.xlu0 %4290
  %4292 = vrot.lane.b32.xlu0 %v4177, 16
  %v4293 = vpop.permute.xlu0 %4292
  %4294 = vrot.lane.b32.xlu0 %v4178, 16
  %v4295 = vpop.permute.xlu0 %4294
  %4296 = vrot.lane.b32.xlu0 %v4179, 16
  %v4297 = vpop.permute.xlu0 %4296
  %4298 = vrot.lane.b32.xlu0 %v4180, 16
  %v4299 = vpop.permute.xlu0 %4298
  %4300 = vrot.lane.b32.xlu0 %v4181, 16
  %v4301 = vpop.permute.xlu0 %4300
  %4302 = vrot.lane.b32.xlu0 %v4182, 16
  %v4303 = vpop.permute.xlu0 %4302
  %4304 = vrot.lane.b32.xlu0 %v4183, 16
  %v4305 = vpop.permute.xlu0 %4304
  %4306 = vrot.lane.b32.xlu0 %v4184, 16
  %v4307 = vpop.permute.xlu0 %4306
  %4308 = vrot.lane.b32.xlu0 %v4185, 16
  %v4309 = vpop.permute.xlu0 %4308
  %4310 = vrot.lane.b32.xlu0 %v4186, 16
  %v4311 = vpop.permute.xlu0 %4310
  %4312 = vrot.lane.b32.xlu0 %v4187, 16
  %v4313 = vpop.permute.xlu0 %4312
  %4314 = vrot.lane.b32.xlu0 %v4188, 16
  %v4315 = vpop.permute.xlu0 %4314
  %4316 = vrot.lane.b32.xlu0 %v4189, 16
  %v4317 = vpop.permute.xlu0 %4316
  %4350 = vrot.lane.b32.xlu0 %v4190, 24
  %v4351 = vpop.permute.xlu0 %4350
  %4352 = vrot.lane.b32.xlu0 %v4191, 24
  %v4353 = vpop.permute.xlu0 %4352
  %4354 = vrot.lane.b32.xlu0 %v4192, 24
  %v4355 = vpop.permute.xlu0 %4354
  %4356 = vrot.lane.b32.xlu0 %v4193, 24
  %v4357 = vpop.permute.xlu0 %4356
  %4358 = vrot.lane.b32.xlu0 %v4194, 24
  %v4359 = vpop.permute.xlu0 %4358
  %4360 = vrot.lane.b32.xlu0 %v4195, 24
  %v4361 = vpop.permute.xlu0 %4360
  %4362 = vrot.lane.b32.xlu0 %v4196, 24
  %v4363 = vpop.permute.xlu0 %4362
  %4364 = vrot.lane.b32.xlu0 %v4197, 24
  %v4365 = vpop.permute.xlu0 %4364
  %4366 = vrot.lane.b32.xlu0 %v4198, 24
  %v4367 = vpop.permute.xlu0 %4366
  %4368 = vrot.lane.b32.xlu0 %v4199, 24
  %v4369 = vpop.permute.xlu0 %4368
  %4370 = vrot.lane.b32.xlu0 %v4200, 24
  %v4371 = vpop.permute.xlu0 %4370
  %4372 = vrot.lane.b32.xlu0 %v4201, 24
  %v4373 = vpop.permute.xlu0 %4372
  %4374 = vrot.lane.b32.xlu0 %v4202, 24
  %v4375 = vpop.permute.xlu0 %4374
  %4376 = vrot.lane.b32.xlu0 %v4203, 24
  %v4377 = vpop.permute.xlu0 %4376
  %4378 = vrot.lane.b32.xlu0 %v4204, 24
  %v4379 = vpop.permute.xlu0 %4378
  %4380 = vrot.lane.b32.xlu0 %v4205, 24
  %v4381 = vpop.permute.xlu0 %4380
  %v4398 = vsel %vm1982, %v4142, %v4223
  %v4399 = vsel %vm1982, %v4143, %v4225
  %v4400 = vsel %vm1982, %v4144, %v4227
  %v4401 = vsel %vm1982, %v4145, %v4229
  %v4402 = vsel %vm1982, %v4146, %v4231
  %v4403 = vsel %vm1982, %v4147, %v4233
  %v4404 = vsel %vm1982, %v4148, %v4235
  %v4405 = vsel %vm1982, %v4149, %v4237
  %v4406 = vsel %vm1982, %v4150, %v4239
  %v4407 = vsel %vm1982, %v4151, %v4241
  %v4408 = vsel %vm1982, %v4152, %v4243
  %v4409 = vsel %vm1982, %v4153, %v4245
  %v4410 = vsel %vm1982, %v4154, %v4247
  %v4411 = vsel %vm1982, %v4155, %v4249
  %v4412 = vsel %vm1982, %v4156, %v4251
  %v4413 = vsel %vm1982, %v4157, %v4253
  %v4414 = vsel %vm2016, %v4398, %v4287
  %v4415 = vsel %vm2016, %v4399, %v4289
  %v4416 = vsel %vm2016, %v4400, %v4291
  %v4417 = vsel %vm2016, %v4401, %v4293
  %v4418 = vsel %vm2016, %v4402, %v4295
  %v4419 = vsel %vm2016, %v4403, %v4297
  %v4420 = vsel %vm2016, %v4404, %v4299
  %v4421 = vsel %vm2016, %v4405, %v4301
  %v4422 = vsel %vm2016, %v4406, %v4303
  %v4423 = vsel %vm2016, %v4407, %v4305
  %v4424 = vsel %vm2016, %v4408, %v4307
  %v4425 = vsel %vm2016, %v4409, %v4309
  %v4426 = vsel %vm2016, %v4410, %v4311
  %v4427 = vsel %vm2016, %v4411, %v4313
  %v4428 = vsel %vm2016, %v4412, %v4315
  %v4429 = vsel %vm2016, %v4413, %v4317
  %v4430 = vsel %vm2050, %v4414, %v4351
  %v4431 = vsel %vm2050, %v4415, %v4353
  %v4432 = vsel %vm2050, %v4416, %v4355
  %v4433 = vsel %vm2050, %v4417, %v4357
  %v4434 = vsel %vm2050, %v4418, %v4359
  %v4435 = vsel %vm2050, %v4419, %v4361
  %v4436 = vsel %vm2050, %v4420, %v4363
  %v4437 = vsel %vm2050, %v4421, %v4365
  %v4438 = vsel %vm2050, %v4422, %v4367
  %v4439 = vsel %vm2050, %v4423, %v4369
  %v4440 = vsel %vm2050, %v4424, %v4371
  %v4441 = vsel %vm2050, %v4425, %v4373
  %v4442 = vsel %vm2050, %v4426, %v4375
  %v4443 = vsel %vm2050, %v4427, %v4377
  %v4444 = vsel %vm2050, %v4428, %v4379
  %v4445 = vsel %vm2050, %v4429, %v4381
  %v4446 = vpack.c.bf16 %v4431, %v4430
  %v4447 = vpack.c.bf16 %v4433, %v4432
  %v4448 = vpack.c.bf16 %v4435, %v4434
  %v4449 = vpack.c.bf16 %v4437, %v4436
  %v4450 = vpack.c.bf16 %v4439, %v4438
  %v4451 = vpack.c.bf16 %v4441, %v4440
  %v4452 = vpack.c.bf16 %v4443, %v4442
  %v4453 = vpack.c.bf16 %v4445, %v4444
  %s4454 = scalar_lea.vmem %s2, 48
  %v4455 = vld [vmem:[%s4454] sm:$0xf]
  %v4456 = vld [vmem:[%s4454 + $0x4] sm:$0xf]
  %v4457 = vld [vmem:[%s4454 + $0x8] sm:$0xf]
  %v4458 = vld [vmem:[%s4454 + $0xc] sm:$0xf]
  %v4463 = vunpack.c.l.b16 %v4455
  %v4464 = vunpack.c.l.b16 %v4456
  %v4465 = vunpack.c.l.b16 %v4457
  %v4466 = vunpack.c.l.b16 %v4458
  %v4467 = vpack.c.b16 %v4464, %v4463
  %v4468 = vpack.c.b16 %v4466, %v4465
  %v4472 = vsel %vm2084, %v4446, 0
  %v4475 = vsel %vm2084, %v4447, 0
  %v4478 = vsel %vm2084, %v4448, 0
  %v4481 = vsel %vm2084, %v4449, 0
  %v4484 = vsel %vm2084, %v4450, 0
  %v4487 = vsel %vm2084, %v4451, 0
  %v4490 = vsel %vm2084, %v4452, 0
  %v4493 = vsel %vm2084, %v4453, 0
  %4495 = vmatprep.subr.bf16.mxu0 0
  %4496 = vmatpush1.bf16.msra.mxu0 %v4467
  %4497 = vmatprep.subr.bf16.mxu0 0
  %4498 = vmatpush1.bf16.msra.mxu0 %v4468
  %4499 = vmatprep.subr.bf16.mxu0 0
  %4500 = vmatpush1.bf16.msra.mxu0 0
  %4501 = vmatprep.subr.bf16.mxu0 0
  %4502 = vmatpush1.bf16.msra.mxu0 0
  %4503 = vmatprep.subr.bf16.mxu0 0
  %4504 = vmatpush1.bf16.msra.mxu0 0
  %4505 = vmatprep.subr.bf16.mxu0 0
  %4506 = vmatpush1.bf16.msra.mxu0 0
  %4507 = vmatprep.subr.bf16.mxu0 0
  %4508 = vmatpush1.bf16.msra.mxu0 0
  %4509 = vmatprep.subr.bf16.mxu0 0
  %4510 = vmatpush1.bf16.msra.mxu0 0
  %4511 = vmatprep.subr.bf16.mxu0 0
  %4512 = vmatpush1.bf16.msra.mxu0 0
  %4513 = vmatprep.subr.bf16.mxu0 0
  %4514 = vmatpush1.bf16.msra.mxu0 0
  %4515 = vmatprep.subr.bf16.mxu0 0
  %4516 = vmatpush1.bf16.msra.mxu0 0
  %4517 = vmatprep.subr.bf16.mxu0 0
  %4518 = vmatpush1.bf16.msra.mxu0 0
  %4519 = vmatprep.subr.bf16.mxu0 0
  %4520 = vmatpush1.bf16.msra.mxu0 0
  %4521 = vmatprep.subr.bf16.mxu0 0
  %4522 = vmatpush1.bf16.msra.mxu0 0
  %4523 = vmatprep.subr.bf16.mxu0 0
  %4524 = vmatpush1.bf16.msra.mxu0 0
  %4525 = vmatprep.subr.bf16.mxu0 0
  %4526 = vmatpush1.bf16.msra.mxu0 0
  %4527 = vmatprep.mubr.bf16.mxu0 0
  %4528 = vmatmul.mubr.bf16.gmra.mrb[0].mxu0 %v4472
  %v4529 = vpop.f32.mrb[0].mxu0
  %v4530 = vadd.f32 0.0, %v4529
  %v4531 = vpop.f32.mrb[0].mxu0
  %v4532 = vpop.f32.mrb[0].mxu0
  %v4533 = vadd.f32 0.0, %v4532
  %v4534 = vpop.f32.mrb[0].mxu0
  %4535 = vmatprep.mubr.bf16.mxu0 0
  %4536 = vmatmul.mubr.bf16.gmra.mrb[0].mxu0 %v4475
  %v4537 = vpop.f32.mrb[0].mxu0
  %v4538 = vadd.f32 0.0, %v4537
  %v4539 = vpop.f32.mrb[0].mxu0
  %v4540 = vpop.f32.mrb[0].mxu0
  %v4541 = vadd.f32 0.0, %v4540
  %v4542 = vpop.f32.mrb[0].mxu0
  %4543 = vmatprep.mubr.bf16.mxu0 0
  %4544 = vmatmul.mubr.bf16.gmra.mrb[0].mxu0 %v4478
  %v4545 = vpop.f32.mrb[0].mxu0
  %v4546 = vadd.f32 0.0, %v4545
  %v4547 = vpop.f32.mrb[0].mxu0
  %v4548 = vpop.f32.mrb[0].mxu0
  %v4549 = vadd.f32 0.0, %v4548
  %v4550 = vpop.f32.mrb[0].mxu0
  %4551 = vmatprep.mubr.bf16.mxu0 0
  %4552 = vmatmul.mubr.bf16.gmra.mrb[0].mxu0 %v4481
  %v4553 = vpop.f32.mrb[0].mxu0
  %v4554 = vadd.f32 0.0, %v4553
  %v4555 = vpop.f32.mrb[0].mxu0
  %v4556 = vpop.f32.mrb[0].mxu0
  %v4557 = vadd.f32 0.0, %v4556
  %v4558 = vpop.f32.mrb[0].mxu0
  %4559 = vmatprep.mubr.bf16.mxu0 0
  %4560 = vmatmul.mubr.bf16.gmra.mrb[0].mxu0 %v4484
  %v4561 = vpop.f32.mrb[0].mxu0
  %v4562 = vadd.f32 0.0, %v4561
  %v4563 = vpop.f32.mrb[0].mxu0
  %v4564 = vpop.f32.mrb[0].mxu0
  %v4565 = vadd.f32 0.0, %v4564
  %v4566 = vpop.f32.mrb[0].mxu0
  %4567 = vmatprep.mubr.bf16.mxu0 0
  %4568 = vmatmul.mubr.bf16.gmra.mrb[0].mxu0 %v4487
  %v4569 = vpop.f32.mrb[0].mxu0
  %v4570 = vadd.f32 0.0, %v4569
  %v4571 = vpop.f32.mrb[0].mxu0
  %v4572 = vpop.f32.mrb[0].mxu0
  %v4573 = vadd.f32 0.0, %v4572
  %v4574 = vpop.f32.mrb[0].mxu0
  %4575 = vmatprep.mubr.bf16.mxu0 0
  %4576 = vmatmul.mubr.bf16.gmra.mrb[0].mxu0 %v4490
  %v4577 = vpop.f32.mrb[0].mxu0
  %v4578 = vadd.f32 0.0, %v4577
  %v4579 = vpop.f32.mrb[0].mxu0
  %v4580 = vpop.f32.mrb[0].mxu0
  %v4581 = vadd.f32 0.0, %v4580
  %v4582 = vpop.f32.mrb[0].mxu0
  %4583 = vmatprep.mubr.bf16.mxu0 0
  %4584 = vmatmul.mubr.bf16.gmra.mrb[0].mxu0 %v4493
  %v4585 = vpop.f32.mrb[0].mxu0
  %v4586 = vadd.f32 0.0, %v4585
  %v4587 = vpop.f32.mrb[0].mxu0
  %v4588 = vpop.f32.mrb[0].mxu0
  %v4589 = vadd.f32 0.0, %v4588
  %v4590 = vpop.f32.mrb[0].mxu0
  %4591 = vdwg.mxu0
  %s4592 = scalar_lea.vmem [#allocation4], 384
  %4593 = vst.msk [vmem:[%s4592] sm:$0xff] %vm597, %v4530
  %4594 = vst.msk [vmem:[%s4592 + $0x8] sm:$0xff] %vm597, %v4533
  %4595 = vst.msk [vmem:[%s4592 + $0x10] sm:$0xff] %vm597, %v4538
  %4596 = vst.msk [vmem:[%s4592 + $0x18] sm:$0xff] %vm597, %v4541
  %4597 = vst.msk [vmem:[%s4592 + $0x20] sm:$0xff] %vm597, %v4546
  %4598 = vst.msk [vmem:[%s4592 + $0x28] sm:$0xff] %vm597, %v4549
  %4599 = vst.msk [vmem:[%s4592 + $0x30] sm:$0xff] %vm597, %v4554
  %4600 = vst.msk [vmem:[%s4592 + $0x38] sm:$0xff] %vm597, %v4557
  %4601 = vst.msk [vmem:[%s4592 + $0x40] sm:$0xff] %vm597, %v4562
  %4602 = vst.msk [vmem:[%s4592 + $0x48] sm:$0xff] %vm597, %v4565
  %4603 = vst.msk [vmem:[%s4592 + $0x50] sm:$0xff] %vm597, %v4570
  %4604 = vst.msk [vmem:[%s4592 + $0x58] sm:$0xff] %vm597, %v4573
  %4605 = vst.msk [vmem:[%s4592 + $0x60] sm:$0xff] %vm597, %v4578
  %4606 = vst.msk [vmem:[%s4592 + $0x68] sm:$0xff] %vm597, %v4581
  %4607 = vst.msk [vmem:[%s4592 + $0x70] sm:$0xff] %vm597, %v4586
  %4608 = vst.msk [vmem:[%s4592 + $0x78] sm:$0xff] %vm597, %v4589
  %v4609 = vsel %vm597, %v4530, 0.0
  %v4610 = vsel %vm597, %v4533, 0.0
  %v4611 = vadd.f32 %v4609, %v4610
  %v4612 = vsel %vm597, %v4538, 0.0
  %v4613 = vadd.f32 %v4611, %v4612
  %v4614 = vsel %vm597, %v4541, 0.0
  %v4615 = vadd.f32 %v4613, %v4614
  %v4616 = vsel %vm597, %v4546, 0.0
  %v4617 = vadd.f32 %v4615, %v4616
  %v4618 = vsel %vm597, %v4549, 0.0
  %v4619 = vadd.f32 %v4617, %v4618
  %v4620 = vsel %vm597, %v4554, 0.0
  %v4621 = vadd.f32 %v4619, %v4620
  %v4622 = vsel %vm597, %v4557, 0.0
  %v4623 = vadd.f32 %v4621, %v4622
  %v4624 = vsel %vm597, %v4562, 0.0
  %v4625 = vadd.f32 %v4623, %v4624
  %v4626 = vsel %vm597, %v4565, 0.0
  %v4627 = vadd.f32 %v4625, %v4626
  %v4628 = vsel %vm597, %v4570, 0.0
  %v4629 = vadd.f32 %v4627, %v4628
  %v4630 = vsel %vm597, %v4573, 0.0
  %v4631 = vadd.f32 %v4629, %v4630
  %v4632 = vsel %vm597, %v4578, 0.0
  %v4633 = vadd.f32 %v4631, %v4632
  %v4634 = vsel %vm597, %v4581, 0.0
  %v4635 = vadd.f32 %v4633, %v4634
  %v4636 = vsel %vm597, %v4586, 0.0
  %v4637 = vadd.f32 %v4635, %v4636
  %v4638 = vsel %vm597, %v4589, 0.0
  %v4639 = vadd.f32 %v4637, %v4638
  %v4640 = vrot.slane %v4639, 4
  %v4641 = vadd.f32 %v4639, %v4640
  %v4642 = vrot.slane %v4641, 2
  %v4643 = vadd.f32 %v4641, %v4642
  %v4644 = vrot.slane %v4643, 1
  %v4645 = vadd.f32 %v4643, %v4644
  %v4646 = vadd.f32 %v4087, %v4645
  %v4647 = vmul.f32 %v4530, %v4530
  %v4648 = vmul.f32 %v4533, %v4533
  %v4649 = vmul.f32 %v4538, %v4538
  %v4650 = vmul.f32 %v4541, %v4541
  %v4651 = vmul.f32 %v4546, %v4546
  %v4652 = vmul.f32 %v4549, %v4549
  %v4653 = vmul.f32 %v4554, %v4554
  %v4654 = vmul.f32 %v4557, %v4557
  %v4655 = vmul.f32 %v4562, %v4562
  %v4656 = vmul.f32 %v4565, %v4565
  %v4657 = vmul.f32 %v4570, %v4570
  %v4658 = vmul.f32 %v4573, %v4573
  %v4659 = vmul.f32 %v4578, %v4578
  %v4660 = vmul.f32 %v4581, %v4581
  %v4661 = vmul.f32 %v4586, %v4586
  %v4662 = vmul.f32 %v4589, %v4589
  %v4663 = vsel %vm597, %v4647, 0.0
  %v4664 = vsel %vm597, %v4648, 0.0
  %v4665 = vadd.f32 %v4663, %v4664
  %v4666 = vsel %vm597, %v4649, 0.0
  %v4667 = vadd.f32 %v4665, %v4666
  %v4668 = vsel %vm597, %v4650, 0.0
  %v4669 = vadd.f32 %v4667, %v4668
  %v4670 = vsel %vm597, %v4651, 0.0
  %v4671 = vadd.f32 %v4669, %v4670
  %v4672 = vsel %vm597, %v4652, 0.0
  %v4673 = vadd.f32 %v4671, %v4672
  %v4674 = vsel %vm597, %v4653, 0.0
  %v4675 = vadd.f32 %v4673, %v4674
  %v4676 = vsel %vm597, %v4654, 0.0
  %v4677 = vadd.f32 %v4675, %v4676
  %v4678 = vsel %vm597, %v4655, 0.0
  %v4679 = vadd.f32 %v4677, %v4678
  %v4680 = vsel %vm597, %v4656, 0.0
  %v4681 = vadd.f32 %v4679, %v4680
  %v4682 = vsel %vm597, %v4657, 0.0
  %v4683 = vadd.f32 %v4681, %v4682
  %v4684 = vsel %vm597, %v4658, 0.0
  %v4685 = vadd.f32 %v4683, %v4684
  %v4686 = vsel %vm597, %v4659, 0.0
  %v4687 = vadd.f32 %v4685, %v4686
  %v4688 = vsel %vm597, %v4660, 0.0
  %v4689 = vadd.f32 %v4687, %v4688
  %v4690 = vsel %vm597, %v4661, 0.0
  %v4691 = vadd.f32 %v4689, %v4690
  %v4692 = vsel %vm597, %v4662, 0.0
  %v4693 = vadd.f32 %v4691, %v4692
  %v4694 = vrot.slane %v4693, 4
  %v4695 = vadd.f32 %v4693, %v4694
  %v4696 = vrot.slane %v4695, 2
  %v4697 = vadd.f32 %v4695, %v4696
  %v4698 = vrot.slane %v4697, 1
  %v4699 = vadd.f32 %v4697, %v4698
  %v4700 = vadd.f32 %v4141, %v4699
  %v4701 = vrcp.pop 512.0
  %v4702 = vmul.f32 %v4646, %v4701
  %v4703 = vmul.f32 %v4700, %v4701
  %v4704 = vmul.f32 %v4702, %v4702
  %v4705 = vsub.f32 %v4703, %v4704
  %v4706 = vmax.f32 %v4705, 0.0
  %v4707 = vadd.f32 %v4706, 1e-05
  %v4708 = vrsqrt.pop %v4707
  %v4709 = vld [vmem:[%s3] sm:$0x1]
  %v4710 = vmul.f32 %v4708, %v4709
  %v4711 = vld [vmem:[%s4] sm:$0x1]
  %v4712 = vmul.f32 %v4702, %v4710
  %v4713 = vsub.f32 %v4711, %v4712
  %v4714 = vld [vmem:[#allocation4] sm:$0xff]
  %v4715 = vld [vmem:[#allocation4 + $0x8] sm:$0xff]
  %v4716 = vld [vmem:[#allocation4 + $0x10] sm:$0xff]
  %v4717 = vld [vmem:[#allocation4 + $0x18] sm:$0xff]
  %v4718 = vld [vmem:[#allocation4 + $0x20] sm:$0xff]
  %v4719 = vld [vmem:[#allocation4 + $0x28] sm:$0xff]
  %v4720 = vld [vmem:[#allocation4 + $0x30] sm:$0xff]
  %v4721 = vld [vmem:[#allocation4 + $0x38] sm:$0xff]
  %v4722 = vld [vmem:[#allocation4 + $0x40] sm:$0xff]
  %v4723 = vld [vmem:[#allocation4 + $0x48] sm:$0xff]
  %v4724 = vld [vmem:[#allocation4 + $0x50] sm:$0xff]
  %v4725 = vld [vmem:[#allocation4 + $0x58] sm:$0xff]
  %v4726 = vld [vmem:[#allocation4 + $0x60] sm:$0xff]
  %v4727 = vld [vmem:[#allocation4 + $0x68] sm:$0xff]
  %v4728 = vld [vmem:[#allocation4 + $0x70] sm:$0xff]
  %v4729 = vld [vmem:[#allocation4 + $0x78] sm:$0xff]
  %v4730 = vlaneseq
  %v4731 = vshrl.u32 %v4730, 7
  %v4732 = vsub.s32 0, %v4731
  %v4733 = vrot.slane %v4710, %v4732
  %v4734 = vmul.f32 %v4714, %v4733
  %v4735 = vmul.f32 %v4715, %v4733
  %v4736 = vmul.f32 %v4716, %v4733
  %v4737 = vmul.f32 %v4717, %v4733
  %v4738 = vmul.f32 %v4718, %v4733
  %v4739 = vmul.f32 %v4719, %v4733
  %v4740 = vmul.f32 %v4720, %v4733
  %v4741 = vmul.f32 %v4721, %v4733
  %v4742 = vmul.f32 %v4722, %v4733
  %v4743 = vmul.f32 %v4723, %v4733
  %v4744 = vmul.f32 %v4724, %v4733
  %v4745 = vmul.f32 %v4725, %v4733
  %v4746 = vmul.f32 %v4726, %v4733
  %v4747 = vmul.f32 %v4727, %v4733
  %v4748 = vmul.f32 %v4728, %v4733
  %v4749 = vmul.f32 %v4729, %v4733
  %v4751 = vlaneseq
  %v4752 = vshrl.u32 %v4751, 7
  %v4753 = vsub.s32 0, %v4752
  %v4754 = vrot.slane %v4713, %v4753
  %v4756 = vadd.f32 %v4734, %v4754
  %v4757 = vadd.f32 %v4735, %v4754
  %v4758 = vadd.f32 %v4736, %v4754
  %v4759 = vadd.f32 %v4737, %v4754
  %v4760 = vadd.f32 %v4738, %v4754
  %v4761 = vadd.f32 %v4739, %v4754
  %v4762 = vadd.f32 %v4740, %v4754
  %v4763 = vadd.f32 %v4741, %v4754
  %v4764 = vadd.f32 %v4742, %v4754
  %v4765 = vadd.f32 %v4743, %v4754
  %v4766 = vadd.f32 %v4744, %v4754
  %v4767 = vadd.f32 %v4745, %v4754
  %v4768 = vadd.f32 %v4746, %v4754
  %v4769 = vadd.f32 %v4747, %v4754
  %v4770 = vadd.f32 %v4748, %v4754
  %v4771 = vadd.f32 %v4749, %v4754
  %s4772 = scalar_lea.vmem %s0, 864
  %v4773 = vld [vmem:[%s4772] sm:$0xff]
  %v4774 = vld [vmem:[%s4772 + $0x10] sm:$0xff]
  %v4775 = vld [vmem:[%s4772 + $0x20] sm:$0xff]
  %v4776 = vld [vmem:[%s4772 + $0x30] sm:$0xff]
  %v4777 = vld [vmem:[%s4772 + $0x40] sm:$0xff]
  %v4778 = vld [vmem:[%s4772 + $0x50] sm:$0xff]
  %v4779 = vld [vmem:[%s4772 + $0x60] sm:$0xff]
  %v4780 = vld [vmem:[%s4772 + $0x70] sm:$0xff]
  %v4781 = vld [vmem:[%s4772 + $0x90] sm:$0xff]
  %v4782 = vld [vmem:[%s4772 + $0xa0] sm:$0xff]
  %v4783 = vld [vmem:[%s4772 + $0xb0] sm:$0xff]
  %v4784 = vld [vmem:[%s4772 + $0xc0] sm:$0xff]
  %v4785 = vld [vmem:[%s4772 + $0xd0] sm:$0xff]
  %v4786 = vld [vmem:[%s4772 + $0xe0] sm:$0xff]
  %v4787 = vld [vmem:[%s4772 + $0xf0] sm:$0xff]
  %v4788 = vld [vmem:[%s4772 + $0x100] sm:$0xff]
  %4805 = vrot.lane.b32.xlu0 %v4756, 4
  %v4806 = vpop.permute.xlu0 %4805
  %4807 = vrot.lane.b32.xlu0 %v4757, 4
  %v4808 = vpop.permute.xlu0 %4807
  %4809 = vrot.lane.b32.xlu0 %v4758, 4
  %v4810 = vpop.permute.xlu0 %4809
  %4811 = vrot.lane.b32.xlu0 %v4759, 4
  %v4812 = vpop.permute.xlu0 %4811
  %4813 = vrot.lane.b32.xlu0 %v4760, 4
  %v4814 = vpop.permute.xlu0 %4813
  %4815 = vrot.lane.b32.xlu0 %v4761, 4
  %v4816 = vpop.permute.xlu0 %4815
  %4817 = vrot.lane.b32.xlu0 %v4762, 4
  %v4818 = vpop.permute.xlu0 %4817
  %4819 = vrot.lane.b32.xlu0 %v4763, 4
  %v4820 = vpop.permute.xlu0 %4819
  %4821 = vrot.lane.b32.xlu0 %v4764, 4
  %v4822 = vpop.permute.xlu0 %4821
  %4823 = vrot.lane.b32.xlu0 %v4765, 4
  %v4824 = vpop.permute.xlu0 %4823
  %4825 = vrot.lane.b32.xlu0 %v4766, 4
  %v4826 = vpop.permute.xlu0 %4825
  %4827 = vrot.lane.b32.xlu0 %v4767, 4
  %v4828 = vpop.permute.xlu0 %4827
  %4829 = vrot.lane.b32.xlu0 %v4768, 4
  %v4830 = vpop.permute.xlu0 %4829
  %4831 = vrot.lane.b32.xlu0 %v4769, 4
  %v4832 = vpop.permute.xlu0 %4831
  %4833 = vrot.lane.b32.xlu0 %v4770, 4
  %v4834 = vpop.permute.xlu0 %4833
  %4835 = vrot.lane.b32.xlu0 %v4771, 4
  %v4836 = vpop.permute.xlu0 %4835
  %v4853 = vsel %vm597, %v4773, %v4806
  %v4854 = vsel %vm597, %v4774, %v4808
  %v4855 = vsel %vm597, %v4775, %v4810
  %v4856 = vsel %vm597, %v4776, %v4812
  %v4857 = vsel %vm597, %v4777, %v4814
  %v4858 = vsel %vm597, %v4778, %v4816
  %v4859 = vsel %vm597, %v4779, %v4818
  %v4860 = vsel %vm597, %v4780, %v4820
  %v4861 = vsel %vm597, %v4781, %v4822
  %v4862 = vsel %vm597, %v4782, %v4824
  %v4863 = vsel %vm597, %v4783, %v4826
  %v4864 = vsel %vm597, %v4784, %v4828
  %v4865 = vsel %vm597, %v4785, %v4830
  %v4866 = vsel %vm597, %v4786, %v4832
  %v4867 = vsel %vm597, %v4787, %v4834
  %v4868 = vsel %vm597, %v4788, %v4836
  %4869 = vst.msk [vmem:[%s5] sm:$0xff] %vm1982, %v4853
  %4870 = vst.msk [vmem:[%s5 + $0x8] sm:$0xff] %vm1982, %v4854
  %4871 = vst.msk [vmem:[%s5 + $0x10] sm:$0xff] %vm1982, %v4855
  %4872 = vst.msk [vmem:[%s5 + $0x18] sm:$0xff] %vm1982, %v4856
  %4873 = vst.msk [vmem:[%s5 + $0x20] sm:$0xff] %vm1982, %v4857
  %4874 = vst.msk [vmem:[%s5 + $0x28] sm:$0xff] %vm1982, %v4858
  %4875 = vst.msk [vmem:[%s5 + $0x30] sm:$0xff] %vm1982, %v4859
  %4876 = vst.msk [vmem:[%s5 + $0x38] sm:$0xff] %vm1982, %v4860
  %4877 = vst.msk [vmem:[%s5 + $0x40] sm:$0xff] %vm1982, %v4861
  %4878 = vst.msk [vmem:[%s5 + $0x48] sm:$0xff] %vm1982, %v4862
  %4879 = vst.msk [vmem:[%s5 + $0x50] sm:$0xff] %vm1982, %v4863
  %4880 = vst.msk [vmem:[%s5 + $0x58] sm:$0xff] %vm1982, %v4864
  %4881 = vst.msk [vmem:[%s5 + $0x60] sm:$0xff] %vm1982, %v4865
  %4882 = vst.msk [vmem:[%s5 + $0x68] sm:$0xff] %vm1982, %v4866
  %4883 = vst.msk [vmem:[%s5 + $0x70] sm:$0xff] %vm1982, %v4867
  %4884 = vst.msk [vmem:[%s5 + $0x78] sm:$0xff] %vm1982, %v4868
  %v4885 = vld [vmem:[%s3473] sm:$0xff]
  %v4886 = vld [vmem:[%s3473 + $0x8] sm:$0xff]
  %v4887 = vld [vmem:[%s3473 + $0x10] sm:$0xff]
  %v4888 = vld [vmem:[%s3473 + $0x18] sm:$0xff]
  %v4889 = vld [vmem:[%s3473 + $0x20] sm:$0xff]
  %v4890 = vld [vmem:[%s3473 + $0x28] sm:$0xff]
  %v4891 = vld [vmem:[%s3473 + $0x30] sm:$0xff]
  %v4892 = vld [vmem:[%s3473 + $0x38] sm:$0xff]
  %v4893 = vld [vmem:[%s3473 + $0x40] sm:$0xff]
  %v4894 = vld [vmem:[%s3473 + $0x48] sm:$0xff]
  %v4895 = vld [vmem:[%s3473 + $0x50] sm:$0xff]
  %v4896 = vld [vmem:[%s3473 + $0x58] sm:$0xff]
  %v4897 = vld [vmem:[%s3473 + $0x60] sm:$0xff]
  %v4898 = vld [vmem:[%s3473 + $0x68] sm:$0xff]
  %v4899 = vld [vmem:[%s3473 + $0x70] sm:$0xff]
  %v4900 = vld [vmem:[%s3473 + $0x78] sm:$0xff]
  %v4901 = vmul.f32 %v4885, %v4733
  %v4902 = vmul.f32 %v4886, %v4733
  %v4903 = vmul.f32 %v4887, %v4733
  %v4904 = vmul.f32 %v4888, %v4733
  %v4905 = vmul.f32 %v4889, %v4733
  %v4906 = vmul.f32 %v4890, %v4733
  %v4907 = vmul.f32 %v4891, %v4733
  %v4908 = vmul.f32 %v4892, %v4733
  %v4909 = vmul.f32 %v4893, %v4733
  %v4910 = vmul.f32 %v4894, %v4733
  %v4911 = vmul.f32 %v4895, %v4733
  %v4912 = vmul.f32 %v4896, %v4733
  %v4913 = vmul.f32 %v4897, %v4733
  %v4914 = vmul.f32 %v4898, %v4733
  %v4915 = vmul.f32 %v4899, %v4733
  %v4916 = vmul.f32 %v4900, %v4733
  %v4917 = vadd.f32 %v4901, %v4754
  %v4918 = vadd.f32 %v4902, %v4754
  %v4919 = vadd.f32 %v4903, %v4754
  %v4920 = vadd.f32 %v4904, %v4754
  %v4921 = vadd.f32 %v4905, %v4754
  %v4922 = vadd.f32 %v4906, %v4754
  %v4923 = vadd.f32 %v4907, %v4754
  %v4924 = vadd.f32 %v4908, %v4754
  %v4925 = vadd.f32 %v4909, %v4754
  %v4926 = vadd.f32 %v4910, %v4754
  %v4927 = vadd.f32 %v4911, %v4754
  %v4928 = vadd.f32 %v4912, %v4754
  %v4929 = vadd.f32 %v4913, %v4754
  %v4930 = vadd.f32 %v4914, %v4754
  %v4931 = vadd.f32 %v4915, %v4754
  %v4932 = vadd.f32 %v4916, %v4754
  %s4933 = scalar_lea.vmem %s0, 576
  %v4934 = vld [vmem:[%s4933 + $0x1] sm:$0xff]
  %v4935 = vld [vmem:[%s4933 + $0x11] sm:$0xff]
  %v4936 = vld [vmem:[%s4933 + $0x21] sm:$0xff]
  %v4937 = vld [vmem:[%s4933 + $0x31] sm:$0xff]
  %v4938 = vld [vmem:[%s4933 + $0x41] sm:$0xff]
  %v4939 = vld [vmem:[%s4933 + $0x51] sm:$0xff]
  %v4940 = vld [vmem:[%s4933 + $0x61] sm:$0xff]
  %v4941 = vld [vmem:[%s4933 + $0x71] sm:$0xff]
  %v4942 = vld [vmem:[%s4933 + $0x91] sm:$0xff]
  %v4943 = vld [vmem:[%s4933 + $0xa1] sm:$0xff]
  %v4944 = vld [vmem:[%s4933 + $0xb1] sm:$0xff]
  %v4945 = vld [vmem:[%s4933 + $0xc1] sm:$0xff]
  %v4946 = vld [vmem:[%s4933 + $0xd1] sm:$0xff]
  %v4947 = vld [vmem:[%s4933 + $0xe1] sm:$0xff]
  %v4948 = vld [vmem:[%s4933 + $0xf1] sm:$0xff]
  %v4949 = vld [vmem:[%s4933 + $0x101] sm:$0xff]
  %4966 = vrot.lane.b32.xlu0 %v4917, 4
  %v4967 = vpop.permute.xlu0 %4966
  %4968 = vrot.lane.b32.xlu0 %v4918, 4
  %v4969 = vpop.permute.xlu0 %4968
  %4970 = vrot.lane.b32.xlu0 %v4919, 4
  %v4971 = vpop.permute.xlu0 %4970
  %4972 = vrot.lane.b32.xlu0 %v4920, 4
  %v4973 = vpop.permute.xlu0 %4972
  %4974 = vrot.lane.b32.xlu0 %v4921, 4
  %v4975 = vpop.permute.xlu0 %4974
  %4976 = vrot.lane.b32.xlu0 %v4922, 4
  %v4977 = vpop.permute.xlu0 %4976
  %4978 = vrot.lane.b32.xlu0 %v4923, 4
  %v4979 = vpop.permute.xlu0 %4978
  %4980 = vrot.lane.b32.xlu0 %v4924, 4
  %v4981 = vpop.permute.xlu0 %4980
  %4982 = vrot.lane.b32.xlu0 %v4925, 4
  %v4983 = vpop.permute.xlu0 %4982
  %4984 = vrot.lane.b32.xlu0 %v4926, 4
  %v4985 = vpop.permute.xlu0 %4984
  %4986 = vrot.lane.b32.xlu0 %v4927, 4
  %v4987 = vpop.permute.xlu0 %4986
  %4988 = vrot.lane.b32.xlu0 %v4928, 4
  %v4989 = vpop.permute.xlu0 %4988
  %4990 = vrot.lane.b32.xlu0 %v4929, 4
  %v4991 = vpop.permute.xlu0 %4990
  %4992 = vrot.lane.b32.xlu0 %v4930, 4
  %v4993 = vpop.permute.xlu0 %4992
  %4994 = vrot.lane.b32.xlu0 %v4931, 4
  %v4995 = vpop.permute.xlu0 %4994
  %4996 = vrot.lane.b32.xlu0 %v4932, 4
  %v4997 = vpop.permute.xlu0 %4996
  %v5014 = vsel %vm597, %v4934, %v4967
  %v5015 = vsel %vm597, %v4935, %v4969
  %v5016 = vsel %vm597, %v4936, %v4971
  %v5017 = vsel %vm597, %v4937, %v4973
  %v5018 = vsel %vm597, %v4938, %v4975
  %v5019 = vsel %vm597, %v4939, %v4977
  %v5020 = vsel %vm597, %v4940, %v4979
  %v5021 = vsel %vm597, %v4941, %v4981
  %v5022 = vsel %vm597, %v4942, %v4983
  %v5023 = vsel %vm597, %v4943, %v4985
  %v5024 = vsel %vm597, %v4944, %v4987
  %v5025 = vsel %vm597, %v4945, %v4989
  %v5026 = vsel %vm597, %v4946, %v4991
  %v5027 = vsel %vm597, %v4947, %v4993
  %v5028 = vsel %vm597, %v4948, %v4995
  %v5029 = vsel %vm597, %v4949, %v4997
  %s5030 = scalar_lea.vmem %s5, 128
  %5031 = vst.msk [vmem:[%s5030] sm:$0xff] %vm1982, %v5014
  %5032 = vst.msk [vmem:[%s5030 + $0x8] sm:$0xff] %vm1982, %v5015
  %5033 = vst.msk [vmem:[%s5030 + $0x10] sm:$0xff] %vm1982, %v5016
  %5034 = vst.msk [vmem:[%s5030 + $0x18] sm:$0xff] %vm1982, %v5017
  %5035 = vst.msk [vmem:[%s5030 + $0x20] sm:$0xff] %vm1982, %v5018
  %5036 = vst.msk [vmem:[%s5030 + $0x28] sm:$0xff] %vm1982, %v5019
  %5037 = vst.msk [vmem:[%s5030 + $0x30] sm:$0xff] %vm1982, %v5020
  %5038 = vst.msk [vmem:[%s5030 + $0x38] sm:$0xff] %vm1982, %v5021
  %5039 = vst.msk [vmem:[%s5030 + $0x40] sm:$0xff] %vm1982, %v5022
  %5040 = vst.msk [vmem:[%s5030 + $0x48] sm:$0xff] %vm1982, %v5023
  %5041 = vst.msk [vmem:[%s5030 + $0x50] sm:$0xff] %vm1982, %v5024
  %5042 = vst.msk [vmem:[%s5030 + $0x58] sm:$0xff] %vm1982, %v5025
  %5043 = vst.msk [vmem:[%s5030 + $0x60] sm:$0xff] %vm1982, %v5026
  %5044 = vst.msk [vmem:[%s5030 + $0x68] sm:$0xff] %vm1982, %v5027
  %5045 = vst.msk [vmem:[%s5030 + $0x70] sm:$0xff] %vm1982, %v5028
  %5046 = vst.msk [vmem:[%s5030 + $0x78] sm:$0xff] %vm1982, %v5029
  %v5047 = vld [vmem:[%s4033] sm:$0xff]
  %v5048 = vld [vmem:[%s4033 + $0x8] sm:$0xff]
  %v5049 = vld [vmem:[%s4033 + $0x10] sm:$0xff]
  %v5050 = vld [vmem:[%s4033 + $0x18] sm:$0xff]
  %v5051 = vld [vmem:[%s4033 + $0x20] sm:$0xff]
  %v5052 = vld [vmem:[%s4033 + $0x28] sm:$0xff]
  %v5053 = vld [vmem:[%s4033 + $0x30] sm:$0xff]
  %v5054 = vld [vmem:[%s4033 + $0x38] sm:$0xff]
  %v5055 = vld [vmem:[%s4033 + $0x40] sm:$0xff]
  %v5056 = vld [vmem:[%s4033 + $0x48] sm:$0xff]
  %v5057 = vld [vmem:[%s4033 + $0x50] sm:$0xff]
  %v5058 = vld [vmem:[%s4033 + $0x58] sm:$0xff]
  %v5059 = vld [vmem:[%s4033 + $0x60] sm:$0xff]
  %v5060 = vld [vmem:[%s4033 + $0x68] sm:$0xff]
  %v5061 = vld [vmem:[%s4033 + $0x70] sm:$0xff]
  %v5062 = vld [vmem:[%s4033 + $0x78] sm:$0xff]
  %v5063 = vmul.f32 %v5047, %v4733
  %v5064 = vmul.f32 %v5048, %v4733
  %v5065 = vmul.f32 %v5049, %v4733
  %v5066 = vmul.f32 %v5050, %v4733
  %v5067 = vmul.f32 %v5051, %v4733
  %v5068 = vmul.f32 %v5052, %v4733
  %v5069 = vmul.f32 %v5053, %v4733
  %v5070 = vmul.f32 %v5054, %v4733
  %v5071 = vmul.f32 %v5055, %v4733
  %v5072 = vmul.f32 %v5056, %v4733
  %v5073 = vmul.f32 %v5057, %v4733
  %v5074 = vmul.f32 %v5058, %v4733
  %v5075 = vmul.f32 %v5059, %v4733
  %v5076 = vmul.f32 %v5060, %v4733
  %v5077 = vmul.f32 %v5061, %v4733
  %v5078 = vmul.f32 %v5062, %v4733
  %v5079 = vadd.f32 %v5063, %v4754
  %v5080 = vadd.f32 %v5064, %v4754
  %v5081 = vadd.f32 %v5065, %v4754
  %v5082 = vadd.f32 %v5066, %v4754
  %v5083 = vadd.f32 %v5067, %v4754
  %v5084 = vadd.f32 %v5068, %v4754
  %v5085 = vadd.f32 %v5069, %v4754
  %v5086 = vadd.f32 %v5070, %v4754
  %v5087 = vadd.f32 %v5071, %v4754
  %v5088 = vadd.f32 %v5072, %v4754
  %v5089 = vadd.f32 %v5073, %v4754
  %v5090 = vadd.f32 %v5074, %v4754
  %v5091 = vadd.f32 %v5075, %v4754
  %v5092 = vadd.f32 %v5076, %v4754
  %v5093 = vadd.f32 %v5077, %v4754
  %v5094 = vadd.f32 %v5078, %v4754
  %s5095 = scalar_lea.vmem %s0, 304
  %v5096 = vld [vmem:[%s5095] sm:$0xff]
  %v5097 = vld [vmem:[%s5095 + $0x10] sm:$0xff]
  %v5098 = vld [vmem:[%s5095 + $0x20] sm:$0xff]
  %v5099 = vld [vmem:[%s5095 + $0x30] sm:$0xff]
  %v5100 = vld [vmem:[%s5095 + $0x40] sm:$0xff]
  %v5101 = vld [vmem:[%s5095 + $0x50] sm:$0xff]
  %v5102 = vld [vmem:[%s5095 + $0x60] sm:$0xff]
  %v5103 = vld [vmem:[%s5095 + $0x70] sm:$0xff]
  %v5104 = vld [vmem:[%s5095 + $0x90] sm:$0xff]
  %v5105 = vld [vmem:[%s5095 + $0xa0] sm:$0xff]
  %v5106 = vld [vmem:[%s5095 + $0xb0] sm:$0xff]
  %v5107 = vld [vmem:[%s5095 + $0xc0] sm:$0xff]
  %v5108 = vld [vmem:[%s5095 + $0xd0] sm:$0xff]
  %v5109 = vld [vmem:[%s5095 + $0xe0] sm:$0xff]
  %v5110 = vld [vmem:[%s5095 + $0xf0] sm:$0xff]
  %v5111 = vld [vmem:[%s5095 + $0x100] sm:$0xff]
  %5128 = vrot.lane.b32.xlu0 %v5079, 4
  %v5129 = vpop.permute.xlu0 %5128
  %5130 = vrot.lane.b32.xlu0 %v5080, 4
  %v5131 = vpop.permute.xlu0 %5130
  %5132 = vrot.lane.b32.xlu0 %v5081, 4
  %v5133 = vpop.permute.xlu0 %5132
  %5134 = vrot.lane.b32.xlu0 %v5082, 4
  %v5135 = vpop.permute.xlu0 %5134
  %5136 = vrot.lane.b32.xlu0 %v5083, 4
  %v5137 = vpop.permute.xlu0 %5136
  %5138 = vrot.lane.b32.xlu0 %v5084, 4
  %v5139 = vpop.permute.xlu0 %5138
  %5140 = vrot.lane.b32.xlu0 %v5085, 4
  %v5141 = vpop.permute.xlu0 %5140
  %5142 = vrot.lane.b32.xlu0 %v5086, 4
  %v5143 = vpop.permute.xlu0 %5142
  %5144 = vrot.lane.b32.xlu0 %v5087, 4
  %v5145 = vpop.permute.xlu0 %5144
  %5146 = vrot.lane.b32.xlu0 %v5088, 4
  %v5147 = vpop.permute.xlu0 %5146
  %5148 = vrot.lane.b32.xlu0 %v5089, 4
  %v5149 = vpop.permute.xlu0 %5148
  %5150 = vrot.lane.b32.xlu0 %v5090, 4
  %v5151 = vpop.permute.xlu0 %5150
  %5152 = vrot.lane.b32.xlu0 %v5091, 4
  %v5153 = vpop.permute.xlu0 %5152
  %5154 = vrot.lane.b32.xlu0 %v5092, 4
  %v5155 = vpop.permute.xlu0 %5154
  %5156 = vrot.lane.b32.xlu0 %v5093, 4
  %v5157 = vpop.permute.xlu0 %5156
  %5158 = vrot.lane.b32.xlu0 %v5094, 4
  %v5159 = vpop.permute.xlu0 %5158
  %v5176 = vsel %vm597, %v5096, %v5129
  %v5177 = vsel %vm597, %v5097, %v5131
  %v5178 = vsel %vm597, %v5098, %v5133
  %v5179 = vsel %vm597, %v5099, %v5135
  %v5180 = vsel %vm597, %v5100, %v5137
  %v5181 = vsel %vm597, %v5101, %v5139
  %v5182 = vsel %vm597, %v5102, %v5141
  %v5183 = vsel %vm597, %v5103, %v5143
  %v5184 = vsel %vm597, %v5104, %v5145
  %v5185 = vsel %vm597, %v5105, %v5147
  %v5186 = vsel %vm597, %v5106, %v5149
  %v5187 = vsel %vm597, %v5107, %v5151
  %v5188 = vsel %vm597, %v5108, %v5153
  %v5189 = vsel %vm597, %v5109, %v5155
  %v5190 = vsel %vm597, %v5110, %v5157
  %v5191 = vsel %vm597, %v5111, %v5159
  %s5192 = scalar_lea.vmem %s5, 256
  %5193 = vst.msk [vmem:[%s5192] sm:$0xff] %vm1982, %v5176
  %5194 = vst.msk [vmem:[%s5192 + $0x8] sm:$0xff] %vm1982, %v5177
  %5195 = vst.msk [vmem:[%s5192 + $0x10] sm:$0xff] %vm1982, %v5178
  %5196 = vst.msk [vmem:[%s5192 + $0x18] sm:$0xff] %vm1982, %v5179
  %5197 = vst.msk [vmem:[%s5192 + $0x20] sm:$0xff] %vm1982, %v5180
  %5198 = vst.msk [vmem:[%s5192 + $0x28] sm:$0xff] %vm1982, %v5181
  %5199 = vst.msk [vmem:[%s5192 + $0x30] sm:$0xff] %vm1982, %v5182
  %5200 = vst.msk [vmem:[%s5192 + $0x38] sm:$0xff] %vm1982, %v5183
  %5201 = vst.msk [vmem:[%s5192 + $0x40] sm:$0xff] %vm1982, %v5184
  %5202 = vst.msk [vmem:[%s5192 + $0x48] sm:$0xff] %vm1982, %v5185
  %5203 = vst.msk [vmem:[%s5192 + $0x50] sm:$0xff] %vm1982, %v5186
  %5204 = vst.msk [vmem:[%s5192 + $0x58] sm:$0xff] %vm1982, %v5187
  %5205 = vst.msk [vmem:[%s5192 + $0x60] sm:$0xff] %vm1982, %v5188
  %5206 = vst.msk [vmem:[%s5192 + $0x68] sm:$0xff] %vm1982, %v5189
  %5207 = vst.msk [vmem:[%s5192 + $0x70] sm:$0xff] %vm1982, %v5190
  %5208 = vst.msk [vmem:[%s5192 + $0x78] sm:$0xff] %vm1982, %v5191
  %v5209 = vld [vmem:[%s4592] sm:$0xff]
  %v5210 = vld [vmem:[%s4592 + $0x8] sm:$0xff]
  %v5211 = vld [vmem:[%s4592 + $0x10] sm:$0xff]
  %v5212 = vld [vmem:[%s4592 + $0x18] sm:$0xff]
  %v5213 = vld [vmem:[%s4592 + $0x20] sm:$0xff]
  %v5214 = vld [vmem:[%s4592 + $0x28] sm:$0xff]
  %v5215 = vld [vmem:[%s4592 + $0x30] sm:$0xff]
  %v5216 = vld [vmem:[%s4592 + $0x38] sm:$0xff]
  %v5217 = vld [vmem:[%s4592 + $0x40] sm:$0xff]
  %v5218 = vld [vmem:[%s4592 + $0x48] sm:$0xff]
  %v5219 = vld [vmem:[%s4592 + $0x50] sm:$0xff]
  %v5220 = vld [vmem:[%s4592 + $0x58] sm:$0xff]
  %v5221 = vld [vmem:[%s4592 + $0x60] sm:$0xff]
  %v5222 = vld [vmem:[%s4592 + $0x68] sm:$0xff]
  %v5223 = vld [vmem:[%s4592 + $0x70] sm:$0xff]
  %v5224 = vld [vmem:[%s4592 + $0x78] sm:$0xff]
  %v5225 = vmul.f32 %v5209, %v4733
  %v5226 = vmul.f32 %v5210, %v4733
  %v5227 = vmul.f32 %v5211, %v4733
  %v5228 = vmul.f32 %v5212, %v4733
  %v5229 = vmul.f32 %v5213, %v4733
  %v5230 = vmul.f32 %v5214, %v4733
  %v5231 = vmul.f32 %v5215, %v4733
  %v5232 = vmul.f32 %v5216, %v4733
  %v5233 = vmul.f32 %v5217, %v4733
  %v5234 = vmul.f32 %v5218, %v4733
  %v5235 = vmul.f32 %v5219, %v4733
  %v5236 = vmul.f32 %v5220, %v4733
  %v5237 = vmul.f32 %v5221, %v4733
  %v5238 = vmul.f32 %v5222, %v4733
  %v5239 = vmul.f32 %v5223, %v4733
  %v5240 = vmul.f32 %v5224, %v4733
  %v5241 = vadd.f32 %v5225, %v4754
  %v5242 = vadd.f32 %v5226, %v4754
  %v5243 = vadd.f32 %v5227, %v4754
  %v5244 = vadd.f32 %v5228, %v4754
  %v5245 = vadd.f32 %v5229, %v4754
  %v5246 = vadd.f32 %v5230, %v4754
  %v5247 = vadd.f32 %v5231, %v4754
  %v5248 = vadd.f32 %v5232, %v4754
  %v5249 = vadd.f32 %v5233, %v4754
  %v5250 = vadd.f32 %v5234, %v4754
  %v5251 = vadd.f32 %v5235, %v4754
  %v5252 = vadd.f32 %v5236, %v4754
  %v5253 = vadd.f32 %v5237, %v4754
  %v5254 = vadd.f32 %v5238, %v4754
  %v5255 = vadd.f32 %v5239, %v4754
  %v5256 = vadd.f32 %v5240, %v4754
  %s5257 = scalar_lea.vmem %s0, 16
  %v5258 = vld [vmem:[%s5257 + $0x1] sm:$0xff]
  %v5259 = vld [vmem:[%s5257 + $0x11] sm:$0xff]
  %v5260 = vld [vmem:[%s5257 + $0x21] sm:$0xff]
  %v5261 = vld [vmem:[%s5257 + $0x31] sm:$0xff]
  %v5262 = vld [vmem:[%s5257 + $0x41] sm:$0xff]
  %v5263 = vld [vmem:[%s5257 + $0x51] sm:$0xff]
  %v5264 = vld [vmem:[%s5257 + $0x61] sm:$0xff]
  %v5265 = vld [vmem:[%s5257 + $0x71] sm:$0xff]
  %v5266 = vld [vmem:[%s5257 + $0x91] sm:$0xff]
  %v5267 = vld [vmem:[%s5257 + $0xa1] sm:$0xff]
  %v5268 = vld [vmem:[%s5257 + $0xb1] sm:$0xff]
  %v5269 = vld [vmem:[%s5257 + $0xc1] sm:$0xff]
  %v5270 = vld [vmem:[%s5257 + $0xd1] sm:$0xff]
  %v5271 = vld [vmem:[%s5257 + $0xe1] sm:$0xff]
  %v5272 = vld [vmem:[%s5257 + $0xf1] sm:$0xff]
  %v5273 = vld [vmem:[%s5257 + $0x101] sm:$0xff]
  %5290 = vrot.lane.b32.xlu0 %v5241, 4
  %v5291 = vpop.permute.xlu0 %5290
  %5292 = vrot.lane.b32.xlu0 %v5242, 4
  %v5293 = vpop.permute.xlu0 %5292
  %5294 = vrot.lane.b32.xlu0 %v5243, 4
  %v5295 = vpop.permute.xlu0 %5294
  %5296 = vrot.lane.b32.xlu0 %v5244, 4
  %v5297 = vpop.permute.xlu0 %5296
  %5298 = vrot.lane.b32.xlu0 %v5245, 4
  %v5299 = vpop.permute.xlu0 %5298
  %5300 = vrot.lane.b32.xlu0 %v5246, 4
  %v5301 = vpop.permute.xlu0 %5300
  %5302 = vrot.lane.b32.xlu0 %v5247, 4
  %v5303 = vpop.permute.xlu0 %5302
  %5304 = vrot.lane.b32.xlu0 %v5248, 4
  %v5305 = vpop.permute.xlu0 %5304
  %5306 = vrot.lane.b32.xlu0 %v5249, 4
  %v5307 = vpop.permute.xlu0 %5306
  %5308 = vrot.lane.b32.xlu0 %v5250, 4
  %v5309 = vpop.permute.xlu0 %5308
  %5310 = vrot.lane.b32.xlu0 %v5251, 4
  %v5311 = vpop.permute.xlu0 %5310
  %5312 = vrot.lane.b32.xlu0 %v5252, 4
  %v5313 = vpop.permute.xlu0 %5312
  %5314 = vrot.lane.b32.xlu0 %v5253, 4
  %v5315 = vpop.permute.xlu0 %5314
  %5316 = vrot.lane.b32.xlu0 %v5254, 4
  %v5317 = vpop.permute.xlu0 %5316
  %5318 = vrot.lane.b32.xlu0 %v5255, 4
  %v5319 = vpop.permute.xlu0 %5318
  %5320 = vrot.lane.b32.xlu0 %v5256, 4
  %v5321 = vpop.permute.xlu0 %5320
  %v5338 = vsel %vm597, %v5258, %v5291
  %v5339 = vsel %vm597, %v5259, %v5293
  %v5340 = vsel %vm597, %v5260, %v5295
  %v5341 = vsel %vm597, %v5261, %v5297
  %v5342 = vsel %vm597, %v5262, %v5299
  %v5343 = vsel %vm597, %v5263, %v5301
  %v5344 = vsel %vm597, %v5264, %v5303
  %v5345 = vsel %vm597, %v5265, %v5305
  %v5346 = vsel %vm597, %v5266, %v5307
  %v5347 = vsel %vm597, %v5267, %v5309
  %v5348 = vsel %vm597, %v5268, %v5311
  %v5349 = vsel %vm597, %v5269, %v5313
  %v5350 = vsel %vm597, %v5270, %v5315
  %v5351 = vsel %vm597, %v5271, %v5317
  %v5352 = vsel %vm597, %v5272, %v5319
  %v5353 = vsel %vm597, %v5273, %v5321
  %s5354 = scalar_lea.vmem %s5, 384
  %5355 = vst.msk [vmem:[%s5354] sm:$0xff] %vm1982, %v5338
  %5356 = vst.msk [vmem:[%s5354 + $0x8] sm:$0xff] %vm1982, %v5339
  %5357 = vst.msk [vmem:[%s5354 + $0x10] sm:$0xff] %vm1982, %v5340
  %5358 = vst.msk [vmem:[%s5354 + $0x18] sm:$0xff] %vm1982, %v5341
  %5359 = vst.msk [vmem:[%s5354 + $0x20] sm:$0xff] %vm1982, %v5342
  %5360 = vst.msk [vmem:[%s5354 + $0x28] sm:$0xff] %vm1982, %v5343
  %5361 = vst.msk [vmem:[%s5354 + $0x30] sm:$0xff] %vm1982, %v5344
  %5362 = vst.msk [vmem:[%s5354 + $0x38] sm:$0xff] %vm1982, %v5345
  %5363 = vst.msk [vmem:[%s5354 + $0x40] sm:$0xff] %vm1982, %v5346
  %5364 = vst.msk [vmem:[%s5354 + $0x48] sm:$0xff] %vm1982, %v5347
  %5365 = vst.msk [vmem:[%s5354 + $0x50] sm:$0xff] %vm1982, %v5348
  %5366 = vst.msk [vmem:[%s5354 + $0x58] sm:$0xff] %vm1982, %v5349
  %5367 = vst.msk [vmem:[%s5354 + $0x60] sm:$0xff] %vm1982, %v5350
  %5368 = vst.msk [vmem:[%s5354 + $0x68] sm:$0xff] %vm1982, %v5351
  %5369 = vst.msk [vmem:[%s5354 + $0x70] sm:$0xff] %vm1982, %v5352
  %5370 = vst.msk [vmem:[%s5354 + $0x78] sm:$0xff] %vm1982, %v5353
  // Predicated region
  $region22: #{unet_block_innermost.1} parent=0 // pred_check
    _
  $region23: #{unet_block_innermost.1} parent=0 // pred_check_branch
    %5372 = sbr.rel (0) target = $region25
  $region24: #{unet_block_innermost.1} parent=0 // pred_region
    _
  $region25: #{unet_block_innermost.1} parent=0 // pred_fallthru
    _
  // Predicated region
  $region26: #{unet_block_innermost.1} parent=0 // pred_check
    _
  $region27: #{unet_block_innermost.1} parent=0 // pred_check_branch
    %5374 = sbr.rel (0) target = $region29
  $region28: #{unet_block_innermost.1} parent=0 // pred_region
    _
  $region29: #{unet_block_innermost.1} parent=0 // pred_fallthru
    _

</llo_original>
